<compile_context>
chip_gen: v6e
topology: v6e:2x2x1
jax: 0.10.0
libtpu: 0.0.40
codegen_flags: <defaults>
</compile_context>

<pallas_src>
import functools
import math

import jax
import jax.numpy as jnp
from jax import lax
from jax.experimental import pallas as pl
from jax.experimental.pallas import tpu as pltpu

NEG = -1e30       # "minus infinity" for masked softmax / masked max
LEAKY = 0.2       # GATConv negative_slope

_VMEM = pl.BlockSpec(memory_space=pltpu.MemorySpace.VMEM)
_SMEM = pl.BlockSpec(memory_space=pltpu.MemorySpace.SMEM)


def _sigmoid(v):
    return 1.0 / (1.0 + jnp.exp(-v))


# ----------------------------------------------------------------------------
# In-kernel building blocks (plain functions traced inside the kernels)
# ----------------------------------------------------------------------------
def _gat_block(x, mask, w, a_src, a_dst, bias):
    """Single-head GATConv on the folded [M, M] graph.  `mask` already contains
    the block-diagonal structure and the self loops GATConv would add."""
    h = jnp.dot(x, w, preferred_element_type=jnp.float32)              # [M, D]
    e_dst = jnp.sum(h * a_dst, axis=-1, keepdims=True)                 # [M, 1]  (VPU)
    e_src = lax.dot_general(a_src, h, (((1,), (1,)), ((), ())),
                            preferred_element_type=jnp.float32)        # [1, M]
    logits = e_dst + e_src
    logits = jnp.where(logits > 0, logits, LEAKY * logits)             # LeakyReLU(0.2)
    logits = jnp.where(mask, logits, NEG)
    lmax = jnp.max(logits, axis=-1, keepdims=True)
    p = jnp.where(mask, jnp.exp(logits - lmax), 0.0)
    denom = jnp.maximum(jnp.sum(p, axis=-1, keepdims=True), 1e-16)
    alpha = p / denom                                                  # softmax over sources
    return jnp.dot(alpha, h, preferred_element_type=jnp.float32) + bias


def _score_gat_block(h, mask, w_row, a_src, a_dst, bias):
    """GATConv(fin, 1) used by SAGPooling: out-dim 1, so feature transform and
    aggregation are VPU reductions (no narrow M=1 / N=1 MXU passes)."""
    hs_col = jnp.sum(h * w_row, axis=-1, keepdims=True)                # [M, 1]
    hs_row = lax.dot_general(w_row, h, (((1,), (1,)), ((), ())),
                             preferred_element_type=jnp.float32)       # [1, M]
    logits = a_dst * hs_col + a_src * hs_row
    logits = jnp.where(logits > 0, logits, LEAKY * logits)
    logits = jnp.where(mask, logits, NEG)
    lmax = jnp.max(logits, axis=-1, keepdims=True)
    p = jnp.where(mask, jnp.exp(logits - lmax), 0.0)
    denom = jnp.maximum(jnp.sum(p, axis=-1, keepdims=True), 1e-16)
    alpha = p / denom
    return jnp.sum(alpha * hs_row, axis=-1, keepdims=True) + bias      # [M, 1]


# ----------------------------------------------------------------------------
# Stage 1: conv1 + pool1 score GNN (fused), mask built in-kernel
# ----------------------------------------------------------------------------
def _stage1_kernel(x_ref, adj_ref, w_ref, asrc_ref, adst_ref, b_ref,
                   wsrow_ref, ssc_ref, out_ref):
    x = x_ref[...]                          # [BN, Fin]
    adj = adj_ref[...]                      # [BN, BN] block-diagonal
    BN = adj.shape[0]
    D = w_ref.shape[1]
    row = lax.broadcasted_iota(jnp.int32, (BN, BN), 0)
    col = lax.broadcasted_iota(jnp.int32, (BN, BN), 1)
    mask = (adj != 0.0) | (row == col)      # GATConv adds self loops

    h1 = _gat_block(x, mask, w_ref[...], asrc_ref[...], adst_ref[...], b_ref[...])
    score = _score_gat_block(h1, mask, wsrow_ref[...],
                             ssc_ref[0], ssc_ref[1], ssc_ref[2])        # [BN, 1]
    # lane-dense packed output: [h1 | score broadcast] -> single 128-wide store
    out_ref[...] = jnp.concatenate(
        [h1, jnp.broadcast_to(score, (BN, D))], axis=-1)


def gat_stage1(x2d, adj_bd, conv_p, score_p):
    BN = x2d.shape[0]
    D = conv_p["w"].shape[1]
    ssc = jnp.stack([score_p["a_src"], score_p["a_dst"],
                     score_p["bias"]]).astype(jnp.float32)
    return pl.pallas_call(
        _stage1_kernel,
        out_shape=jax.ShapeDtypeStruct((BN, 2 * D), jnp.float32),
        in_specs=[_VMEM] * 7 + [_SMEM],
        out_specs=_VMEM,
    )(x2d, adj_bd, conv_p["w"], conv_p["a_src"], conv_p["a_dst"], conv_p["bias"],
      score_p["w_row"], ssc)


# ----------------------------------------------------------------------------
# Stage 2: SAGPool gating + augment_adj + conv2 + pool2 score GNN (fused)
# ----------------------------------------------------------------------------
def _stage2_kernel(adj_ref, kcol_ref, krow_ref, slab1_ref,
                   w_ref, asrc_ref, adst_ref, b_ref,
                   wsrow_ref, ssc_ref, out_ref):
    adj = adj_ref[...]                      # [BN, BN]
    kcol = kcol_ref[...]                    # [BN, 1]  keep1 (column)
    krow = krow_ref[...]                    # [1, BN]  keep1 (row)
    BN = adj.shape[0]
    D = w_ref.shape[1]

    slab1 = slab1_ref[...]                  # [BN, 2D]
    h1 = slab1[:, :D]
    s1b = slab1[:, D:]                      # score1 broadcast over lanes
    xp1 = h1 * _sigmoid(s1b) * kcol         # SAGPool gating (dropped nodes -> 0)

    # augment_adj: self loops on kept nodes, (A+I)@(A+I), remove self loops.
    row = lax.broadcasted_iota(jnp.int32, (BN, BN), 0)
    col = lax.broadcasted_iota(jnp.int32, (BN, BN), 1)
    diag = row == col
    a_sl = adj * (kcol * krow) + jnp.where(diag, kcol, 0.0)
    a2 = jnp.dot(a_sl, a_sl, preferred_element_type=jnp.float32)
    adj2 = jnp.where(diag, 0.0, a2)
    # adj2 is only ever tested for != 0 downstream -> emit the conv2 mask directly
    mask2 = (adj2 != 0.0) | (diag & (kcol > 0.0))

    h2 = _gat_block(xp1, mask2, w_ref[...], asrc_ref[...], adst_ref[...], b_ref[...])
    score = _score_gat_block(h2, mask2, wsrow_ref[...],
                             ssc_ref[0], ssc_ref[1], ssc_ref[2])
    out_ref[...] = jnp.concatenate(
        [h2, jnp.broadcast_to(score, (BN, D))], axis=-1)


def gat_stage2(adj_bd, kcol, krow, slab1, conv_p, score_p):
    BN = adj_bd.shape[0]
    D = conv_p["w"].shape[1]
    ssc = jnp.stack([score_p["a_src"], score_p["a_dst"],
                     score_p["bias"]]).astype(jnp.float32)
    return pl.pallas_call(
        _stage2_kernel,
        out_shape=jax.ShapeDtypeStruct((BN, 2 * D), jnp.float32),
        in_specs=[_VMEM] * 9 + [_SMEM],
        out_specs=_VMEM,
    )(adj_bd, kcol, krow, slab1, conv_p["w"], conv_p["a_src"], conv_p["a_dst"],
      conv_p["bias"], score_p["w_row"], ssc)


# ----------------------------------------------------------------------------
# Head: gating + masked gmp/gap pooling + concat + MLP + log_softmax (fused)
# ----------------------------------------------------------------------------
def _head_kernel(slab1_ref, kc1_ref, km1_ref, slab2_ref, kc2_ref, km2_ref, pen_ref,
                 w1a_ref, w1b_ref, w1c_ref, b1_ref, s1_ref, t1_ref,
                 w2_ref, b2_ref, s2_ref, t2_ref, w3_ref, b3_ref, out_ref):
    D = slab1_ref.shape[1] // 2

    def gated(slab_ref, kcol):
        slab = slab_ref[...]
        h = slab[:, :D]
        sb = slab[:, D:]
        return h * _sigmoid(sb) * kcol                                 # [BN, D]

    def pool(xp, km3):                                                 # km3: [B, BN, 1]
        masked = jnp.where(km3 > 0, xp[None, :, :], NEG)
        xmax = jnp.max(masked, axis=1)                                 # gmp  [B, D]
        cnt = jnp.maximum(jnp.sum(km3, axis=1), 1.0)                   # [B, 1]
        xmean = jnp.sum(xp[None, :, :] * km3, axis=1) / cnt            # gap  [B, D]
        return jnp.concatenate([xmax, xmean], axis=-1)                 # [B, 2D]

    x1 = pool(gated(slab1_ref, kc1_ref[...]), km1_ref[...])
    x2 = pool(gated(slab2_ref, kc2_ref[...]), km2_ref[...])

    # fc1 on concat([x1, x2, pen]) expressed as a split matmul (lane-aligned)
    h = (jnp.dot(x1, w1a_ref[...], preferred_element_type=jnp.float32)
         + jnp.dot(x2, w1b_ref[...], preferred_element_type=jnp.float32)
         + jnp.dot(pen_ref[...], w1c_ref[...], preferred_element_type=jnp.float32)
         + b1_ref[...])
    h = jnp.maximum(h, 0.0)
    h = h * s1_ref[...] + t1_ref[...]                                  # bn1 (eval)
    h = jnp.maximum(jnp.dot(h, w2_ref[...], preferred_element_type=jnp.float32)
                    + b2_ref[...], 0.0)
    h = h * s2_ref[...] + t2_ref[...]                                  # bn2 (eval)
    logits = jnp.dot(h, w3_ref[...], preferred_element_type=jnp.float32) + b3_ref[...]
    m = jnp.max(logits, axis=-1, keepdims=True)
    lse = m + jnp.log(jnp.sum(jnp.exp(logits - m), axis=-1, keepdims=True))
    out_ref[...] = logits - lse                                        # log_softmax


def head_forward(slab1, kc1, km1, slab2, kc2, km2, pen, params):
    B = km1.shape[0]
    D = slab1.shape[1] // 2
    nclass = params["w3"].shape[1]
    w1 = params["w1"]
    w1a, w1b, w1c = w1[:2 * D], w1[2 * D:4 * D], w1[4 * D:]
    args = (slab1, kc1, km1, slab2, kc2, km2, pen,
            w1a, w1b, w1c, params["b1"], params["bn1_scale"], params["bn1_shift"],
            params["w2"], params["b2"], params["bn2_scale"], params["bn2_shift"],
            params["w3"], params["b3"])
    return pl.pallas_call(
        _head_kernel,
        out_shape=jax.ShapeDtypeStruct((B, nclass), jnp.float32),
        in_specs=[_VMEM] * len(args),
        out_specs=_VMEM,
    )(*args)


# ----------------------------------------------------------------------------
# Full network forward (plain-JAX glue only for data-dependent top-k)
# ----------------------------------------------------------------------------
def network_forward(params, x, adj, pen, *, ratio):
    B, N, Fin = x.shape
    BN = B * N
    D = params["conv1"]["w"].shape[1]

    # Fold the batch into a block-diagonal super graph (cheap, done once in XLA).
    eyeB = jnp.eye(B, dtype=jnp.float32)
    adj_bd = (eyeB[:, None, :, None] * adj[:, :, None, :]).reshape(BN, BN)
    x2d = x.reshape(BN, Fin)

    # conv1 + pool1 score GNN
    slab1 = gat_stage1(x2d, adj_bd, params["conv1"], params["pool1_gnn"])   # [BN, 2D]
    score1 = slab1[:, D].reshape(B, N)

    k1 = int(math.ceil(ratio * N))
    # TODO(synk): per-graph top-k node selection (data-dependent sort) stays in plain JAX.
    top_s1, top_i1 = lax.top_k(score1, k1)
    keep1 = jnp.zeros((B, N), jnp.float32).at[jnp.arange(B)[:, None], top_i1].set(1.0)
    kc1 = keep1.reshape(BN, 1)
    kr1 = keep1.reshape(1, BN)

    # SAGPool gating + augment_adj + conv2 + pool2 score GNN
    slab2 = gat_stage2(adj_bd, kc1, kr1, slab1, params["conv2"], params["pool2_gnn"])
    score2 = slab2[:, D].reshape(B, N)

    k2 = int(math.ceil(ratio * k1))
    score2_m = jnp.where(keep1 > 0, score2, -jnp.inf)
    top_s2, top_i2 = lax.top_k(score2_m, k2)
    keep2 = jnp.zeros((B, N), jnp.float32).at[jnp.arange(B)[:, None], top_i2].set(1.0)
    kc2 = keep2.reshape(BN, 1)

    # per-graph keep matrices for pooling inside the head kernel
    km1 = (eyeB[:, :, None] * keep1[None, :, :]).reshape(B, BN)[:, :, None]
    km2 = (eyeB[:, :, None] * keep2[None, :, :]).reshape(B, BN)[:, :, None]

    logp = head_forward(slab1, kc1, km1, slab2, kc2, km2, pen, params)
    return logp, top_s1, top_s2


# ----------------------------------------------------------------------------
# Deterministic parameter init (shapes follow the module __init__)
# ----------------------------------------------------------------------------
def _gat_params(key, fin, dout):
    kw, ks, kd = jax.random.split(key, 3)
    w = (jax.random.normal(kw, (fin, dout)) / jnp.sqrt(fin)).astype(jnp.float32)
    a_src = (0.1 * jax.random.normal(ks, (1, dout))).astype(jnp.float32)
    a_dst = (0.1 * jax.random.normal(kd, (1, dout))).astype(jnp.float32)
    bias = jnp.zeros((1, dout), jnp.float32)
    return {"w": w, "a_src": a_src, "a_dst": a_dst, "bias": bias}


def _score_gat_params(key, fin):
    # GATConv(fin, 1): weight column (stored as a row), scalar attention params
    kw, ks, kd = jax.random.split(key, 3)
    w_row = (jax.random.normal(kw, (1, fin)) / jnp.sqrt(fin)).astype(jnp.float32)
    a_src = (0.1 * jax.random.normal(ks, ())).astype(jnp.float32)
    a_dst = (0.1 * jax.random.normal(kd, ())).astype(jnp.float32)
    bias = jnp.zeros((), jnp.float32)
    return {"w_row": w_row, "a_src": a_src, "a_dst": a_dst, "bias": bias}


def _linear(key, fin, fout):
    kw, kb = jax.random.split(key)
    w = (jax.random.normal(kw, (fin, fout)) / jnp.sqrt(fin)).astype(jnp.float32)
    b = (0.01 * jax.random.normal(kb, (1, fout))).astype(jnp.float32)
    return w, b


def _bn(key, dim, eps=1e-5):
    kg, kb, km, kv = jax.random.split(key, 4)
    gamma = 1.0 + 0.1 * jax.random.normal(kg, (1, dim))
    beta = 0.1 * jax.random.normal(kb, (1, dim))
    mean = 0.1 * jax.random.normal(km, (1, dim))
    var = jnp.abs(1.0 + 0.1 * jax.random.normal(kv, (1, dim)))
    scale = gamma / jnp.sqrt(var + eps)
    shift = beta - mean * scale
    return scale.astype(jnp.float32), shift.astype(jnp.float32)


def build_params(key, indim, nclass):
    dim1, dim2, dim3 = 64, 64, 32
    ks = jax.random.split(key, 9)
    p = {}
    p["conv1"] = _gat_params(ks[0], indim, dim1)
    p["pool1_gnn"] = _score_gat_params(ks[1], dim1)
    p["conv2"] = _gat_params(ks[2], dim1, dim2)
    p["pool2_gnn"] = _score_gat_params(ks[3], dim2)
    p["w1"], p["b1"] = _linear(ks[4], (dim1 + dim2) * 2 + 12, dim2)
    p["bn1_scale"], p["bn1_shift"] = _bn(ks[5], dim2)
    p["w2"], p["b2"] = _linear(ks[6], dim2, dim3)
    p["bn2_scale"], p["bn2_shift"] = _bn(ks[7], dim3)
    p["w3"], p["b3"] = _linear(ks[8], dim3, nclass)
    return p


if __name__ == "__main__":
    key = jax.random.PRNGKey(0)
    B, N, indim, nclass, ratio = 4, 16, 16, 2, 0.5
    k_x, k_a, k_p, k_params = jax.random.split(key, 4)

    x = jax.random.normal(k_x, (B, N, indim), jnp.float32)
    a = jax.random.uniform(k_a, (B, N, N))
    a = 0.5 * (a + jnp.swapaxes(a, 1, 2))                 # symmetric weights
    eye = jnp.eye(N)[None]
    adj = jnp.where((a > 0.55) & (eye == 0), a, 0.0).astype(jnp.float32)
    pen = jax.random.normal(k_p, (B, 12), jnp.float32)

    params = build_params(k_params, indim, nclass)

    fwd = jax.jit(functools.partial(network_forward, ratio=ratio))
    logp, top_s1, top_s2 = jax.block_until_ready(fwd(params, x, adj, pen))

    k1 = int(math.ceil(ratio * N))
    k2 = int(math.ceil(ratio * k1))
    assert logp.shape == (B, nclass)
    assert top_s1.shape == (B, k1)
    assert top_s2.shape == (B, k2)
    assert bool(jnp.all(jnp.isfinite(logp)))
    print("KERNEL_OK")
</pallas_src>

<mosaic_0001>
module attributes {stable_mosaic.version = 11 : i64} {
  func.func @_stage1_kernel(%arg0: memref<64x16xf32, #tpu.memory_space<vmem>>, %arg1: memref<64x64xf32, #tpu.memory_space<vmem>>, %arg2: memref<16x64xf32, #tpu.memory_space<vmem>>, %arg3: memref<1x64xf32, #tpu.memory_space<vmem>>, %arg4: memref<1x64xf32, #tpu.memory_space<vmem>>, %arg5: memref<1x64xf32, #tpu.memory_space<vmem>>, %arg6: memref<1x64xf32, #tpu.memory_space<vmem>>, %arg7: memref<3xf32, #tpu.memory_space<smem>>, %arg8: memref<64x128xf32, #tpu.memory_space<vmem>>) attributes {dimension_semantics = [], scalar_prefetch = 0 : i64, scratch_operands = 0 : i64, tpu.core_type = #tpu.core_type<tc>} {
    %c0 = arith.constant 0 : index
    %c0_0 = arith.constant 0 : index
    %0 = vector.load %arg0[%c0, %c0_0] : memref<64x16xf32, #tpu.memory_space<vmem>>, vector<64x16xf32>
    %c0_1 = arith.constant 0 : index
    %c0_2 = arith.constant 0 : index
    %1 = vector.load %arg1[%c0_1, %c0_2] : memref<64x64xf32, #tpu.memory_space<vmem>>, vector<64x64xf32>
    %2 = tpu.iota {dimensions = array<i32: 0>} : vector<64x64xi32>
    %3 = tpu.iota {dimensions = array<i32: 1>} : vector<64x64xi32>
    %cst = arith.constant 0.000000e+00 : f32
    %4 = vector.broadcast %cst : f32 to vector<64x64xf32>
    %5 = arith.cmpf one, %1, %4 : vector<64x64xf32>
    %6 = arith.cmpi eq, %2, %3 : vector<64x64xi32>
    %7 = arith.ori %5, %6 : vector<64x64xi1>
    %c0_3 = arith.constant 0 : index
    %c0_4 = arith.constant 0 : index
    %8 = vector.load %arg2[%c0_3, %c0_4] : memref<16x64xf32, #tpu.memory_space<vmem>>, vector<16x64xf32>
    %c0_5 = arith.constant 0 : index
    %c0_6 = arith.constant 0 : index
    %9 = vector.load %arg3[%c0_5, %c0_6] : memref<1x64xf32, #tpu.memory_space<vmem>>, vector<1x64xf32>
    %c0_7 = arith.constant 0 : index
    %c0_8 = arith.constant 0 : index
    %10 = vector.load %arg4[%c0_7, %c0_8] : memref<1x64xf32, #tpu.memory_space<vmem>>, vector<1x64xf32>
    %c0_9 = arith.constant 0 : index
    %c0_10 = arith.constant 0 : index
    %11 = vector.load %arg5[%c0_9, %c0_10] : memref<1x64xf32, #tpu.memory_space<vmem>>, vector<1x64xf32>
    %cst_11 = arith.constant dense<0.000000e+00> : vector<64x64xf32>
    %12 = tpu.matmul %0, %8, %cst_11 {dimension_numbers = #tpu.dot_dimension_numbers<[1], [0], [0], [1], [0, 0, 1, 1], [], []>} : vector<64x16xf32>, vector<16x64xf32>, vector<64x64xf32> -> vector<64x64xf32>
    %13 = vector.broadcast %10 : vector<1x64xf32> to vector<64x64xf32>
    %14 = arith.mulf %12, %13 : vector<64x64xf32>
    %cst_12 = arith.constant dense<0.000000e+00> : vector<64xf32>
    %15 = vector.multi_reduction <add>, %14, %cst_12 [1] : vector<64x64xf32> to vector<64xf32>
    %16 = vector.shape_cast %15 : vector<64xf32> to vector<64x1xf32>
    %cst_13 = arith.constant dense<0.000000e+00> : vector<1x64xf32>
    %17 = tpu.matmul %9, %12, %cst_13 {dimension_numbers = #tpu.dot_dimension_numbers<[1], [1], [0], [0], [0, 0, 1, 0], [], []>} : vector<1x64xf32>, vector<64x64xf32>, vector<1x64xf32> -> vector<1x64xf32>
    %18 = vector.broadcast %16 : vector<64x1xf32> to vector<64x64xf32>
    %19 = vector.broadcast %17 : vector<1x64xf32> to vector<64x64xf32>
    %20 = arith.addf %18, %19 : vector<64x64xf32>
    %cst_14 = arith.constant 0.000000e+00 : f32
    %21 = vector.broadcast %cst_14 : f32 to vector<64x64xf32>
    %22 = arith.cmpf ogt, %20, %21 : vector<64x64xf32>
    %cst_15 = arith.constant 2.000000e-01 : f32
    %23 = vector.broadcast %cst_15 : f32 to vector<64x64xf32>
    %24 = arith.mulf %23, %20 : vector<64x64xf32>
    %25 = arith.select %22, %20, %24 : vector<64x64xi1>, vector<64x64xf32>
    %cst_16 = arith.constant -1.000000e+30 : f32
    %26 = vector.broadcast %cst_16 : f32 to vector<64x64xf32>
    %27 = arith.select %7, %25, %26 : vector<64x64xi1>, vector<64x64xf32>
    %cst_17 = arith.constant dense<0xFF800000> : vector<64xf32>
    %28 = vector.multi_reduction <maximumf>, %27, %cst_17 [1] : vector<64x64xf32> to vector<64xf32>
    %29 = vector.shape_cast %28 : vector<64xf32> to vector<64x1xf32>
    %30 = vector.broadcast %29 : vector<64x1xf32> to vector<64x64xf32>
    %31 = arith.subf %27, %30 : vector<64x64xf32>
    %32 = math.exp %31 : vector<64x64xf32>
    %cst_18 = arith.constant 0.000000e+00 : f32
    %33 = vector.broadcast %cst_18 : f32 to vector<64x64xf32>
    %34 = arith.select %7, %32, %33 : vector<64x64xi1>, vector<64x64xf32>
    %cst_19 = arith.constant dense<0.000000e+00> : vector<64xf32>
    %35 = vector.multi_reduction <add>, %34, %cst_19 [1] : vector<64x64xf32> to vector<64xf32>
    %36 = vector.shape_cast %35 : vector<64xf32> to vector<64x1xf32>
    %cst_20 = arith.constant 1.000000e-16 : f32
    %37 = vector.broadcast %cst_20 : f32 to vector<64x1xf32>
    %38 = arith.maximumf %36, %37 : vector<64x1xf32>
    %39 = vector.broadcast %38 : vector<64x1xf32> to vector<64x64xf32>
    %40 = arith.divf %34, %39 : vector<64x64xf32>
    %cst_21 = arith.constant dense<0.000000e+00> : vector<64x64xf32>
    %41 = tpu.matmul %40, %12, %cst_21 {dimension_numbers = #tpu.dot_dimension_numbers<[1], [0], [0], [1], [0, 0, 1, 1], [], []>} : vector<64x64xf32>, vector<64x64xf32>, vector<64x64xf32> -> vector<64x64xf32>
    %42 = vector.broadcast %11 : vector<1x64xf32> to vector<64x64xf32>
    %43 = arith.addf %41, %42 : vector<64x64xf32>
    %c0_22 = arith.constant 0 : index
    %c0_23 = arith.constant 0 : index
    %44 = vector.load %arg6[%c0_22, %c0_23] : memref<1x64xf32, #tpu.memory_space<vmem>>, vector<1x64xf32>
    %c0_24 = arith.constant 0 : index
    %45 = memref.load %arg7[%c0_24] : memref<3xf32, #tpu.memory_space<smem>>
    %c1 = arith.constant 1 : index
    %46 = memref.load %arg7[%c1] : memref<3xf32, #tpu.memory_space<smem>>
    %c2 = arith.constant 2 : index
    %47 = memref.load %arg7[%c2] : memref<3xf32, #tpu.memory_space<smem>>
    %48 = vector.broadcast %44 : vector<1x64xf32> to vector<64x64xf32>
    %49 = arith.mulf %43, %48 : vector<64x64xf32>
    %cst_25 = arith.constant dense<0.000000e+00> : vector<64xf32>
    %50 = vector.multi_reduction <add>, %49, %cst_25 [1] : vector<64x64xf32> to vector<64xf32>
    %51 = vector.shape_cast %50 : vector<64xf32> to vector<64x1xf32>
    %cst_26 = arith.constant dense<0.000000e+00> : vector<1x64xf32>
    %52 = tpu.matmul %44, %43, %cst_26 {dimension_numbers = #tpu.dot_dimension_numbers<[1], [1], [0], [0], [0, 0, 1, 0], [], []>} : vector<1x64xf32>, vector<64x64xf32>, vector<1x64xf32> -> vector<1x64xf32>
    %53 = vector.broadcast %46 : f32 to vector<64x1xf32>
    %54 = arith.mulf %53, %51 : vector<64x1xf32>
    %55 = vector.broadcast %45 : f32 to vector<1x64xf32>
    %56 = arith.mulf %55, %52 : vector<1x64xf32>
    %57 = vector.broadcast %54 : vector<64x1xf32> to vector<64x64xf32>
    %58 = vector.broadcast %56 : vector<1x64xf32> to vector<64x64xf32>
    %59 = arith.addf %57, %58 : vector<64x64xf32>
    %cst_27 = arith.constant 0.000000e+00 : f32
    %60 = vector.broadcast %cst_27 : f32 to vector<64x64xf32>
    %61 = arith.cmpf ogt, %59, %60 : vector<64x64xf32>
    %cst_28 = arith.constant 2.000000e-01 : f32
    %62 = vector.broadcast %cst_28 : f32 to vector<64x64xf32>
    %63 = arith.mulf %62, %59 : vector<64x64xf32>
    %64 = arith.select %61, %59, %63 : vector<64x64xi1>, vector<64x64xf32>
    %cst_29 = arith.constant -1.000000e+30 : f32
    %65 = vector.broadcast %cst_29 : f32 to vector<64x64xf32>
    %66 = arith.select %7, %64, %65 : vector<64x64xi1>, vector<64x64xf32>
    %cst_30 = arith.constant dense<0xFF800000> : vector<64xf32>
    %67 = vector.multi_reduction <maximumf>, %66, %cst_30 [1] : vector<64x64xf32> to vector<64xf32>
    %68 = vector.shape_cast %67 : vector<64xf32> to vector<64x1xf32>
    %69 = vector.broadcast %68 : vector<64x1xf32> to vector<64x64xf32>
    %70 = arith.subf %66, %69 : vector<64x64xf32>
    %71 = math.exp %70 : vector<64x64xf32>
    %cst_31 = arith.constant 0.000000e+00 : f32
    %72 = vector.broadcast %cst_31 : f32 to vector<64x64xf32>
    %73 = arith.select %7, %71, %72 : vector<64x64xi1>, vector<64x64xf32>
    %cst_32 = arith.constant dense<0.000000e+00> : vector<64xf32>
    %74 = vector.multi_reduction <add>, %73, %cst_32 [1] : vector<64x64xf32> to vector<64xf32>
    %75 = vector.shape_cast %74 : vector<64xf32> to vector<64x1xf32>
    %cst_33 = arith.constant 1.000000e-16 : f32
    %76 = vector.broadcast %cst_33 : f32 to vector<64x1xf32>
    %77 = arith.maximumf %75, %76 : vector<64x1xf32>
    %78 = vector.broadcast %77 : vector<64x1xf32> to vector<64x64xf32>
    %79 = arith.divf %73, %78 : vector<64x64xf32>
    %80 = vector.broadcast %52 : vector<1x64xf32> to vector<64x64xf32>
    %81 = arith.mulf %79, %80 : vector<64x64xf32>
    %cst_34 = arith.constant dense<0.000000e+00> : vector<64xf32>
    %82 = vector.multi_reduction <add>, %81, %cst_34 [1] : vector<64x64xf32> to vector<64xf32>
    %83 = vector.shape_cast %82 : vector<64xf32> to vector<64x1xf32>
    %84 = vector.broadcast %47 : f32 to vector<64x1xf32>
    %85 = arith.addf %83, %84 : vector<64x1xf32>
    %86 = vector.shape_cast %85 : vector<64x1xf32> to vector<64x1xf32>
    %87 = vector.broadcast %86 : vector<64x1xf32> to vector<64x64xf32>
    %88 = tpu.concatenate %43, %87 in 1 : vector<64x64xf32>, vector<64x64xf32> -> vector<64x128xf32>
    %c0_35 = arith.constant 0 : index
    %c0_36 = arith.constant 0 : index
    %89 = vector.load %arg8[%c0_35, %c0_36] : memref<64x128xf32, #tpu.memory_space<vmem>>, vector<64x128xf32>
    tpu.vector_store %arg8[%c0_35, %c0_36], %88 {strides = array<i32>} : memref<64x128xf32, #tpu.memory_space<vmem>>, vector<64x128xf32>,
    return
  }
}

module attributes {stable_mosaic.version = 11 : i64} {
  func.func @_stage2_kernel(%arg0: memref<64x64xf32, #tpu.memory_space<vmem>>, %arg1: memref<64x1xf32, #tpu.memory_space<vmem>>, %arg2: memref<1x64xf32, #tpu.memory_space<vmem>>, %arg3: memref<64x128xf32, #tpu.memory_space<vmem>>, %arg4: memref<64x64xf32, #tpu.memory_space<vmem>>, %arg5: memref<1x64xf32, #tpu.memory_space<vmem>>, %arg6: memref<1x64xf32, #tpu.memory_space<vmem>>, %arg7: memref<1x64xf32, #tpu.memory_space<vmem>>, %arg8: memref<1x64xf32, #tpu.memory_space<vmem>>, %arg9: memref<3xf32, #tpu.memory_space<smem>>, %arg10: memref<64x128xf32, #tpu.memory_space<vmem>>) attributes {dimension_semantics = [], scalar_prefetch = 0 : i64, scratch_operands = 0 : i64, tpu.core_type = #tpu.core_type<tc>} {
    %c0 = arith.constant 0 : index
    %c0_0 = arith.constant 0 : index
    %0 = vector.load %arg0[%c0, %c0_0] : memref<64x64xf32, #tpu.memory_space<vmem>>, vector<64x64xf32>
    %c0_1 = arith.constant 0 : index
    %c0_2 = arith.constant 0 : index
    %1 = vector.load %arg1[%c0_1, %c0_2] : memref<64x1xf32, #tpu.memory_space<vmem>>, vector<64x1xf32>
    %c0_3 = arith.constant 0 : index
    %c0_4 = arith.constant 0 : index
    %2 = vector.load %arg2[%c0_3, %c0_4] : memref<1x64xf32, #tpu.memory_space<vmem>>, vector<1x64xf32>
    %c0_5 = arith.constant 0 : index
    %c0_6 = arith.constant 0 : index
    %3 = vector.load %arg3[%c0_5, %c0_6] : memref<64x128xf32, #tpu.memory_space<vmem>>, vector<64x128xf32>
    %4 = vector.extract_strided_slice %3 {offsets = [0, 0], sizes = [64, 64], strides = [1, 1]} : vector<64x128xf32> to vector<64x64xf32>
    %5 = vector.extract_strided_slice %3 {offsets = [0, 64], sizes = [64, 64], strides = [1, 1]} : vector<64x128xf32> to vector<64x64xf32>
    %cst = arith.constant 0.000000e+00 : f32
    %6 = vector.broadcast %cst : f32 to vector<64x64xf32>
    %7 = arith.subf %6, %5 : vector<64x64xf32>
    %8 = math.exp %7 : vector<64x64xf32>
    %cst_7 = arith.constant 1.000000e+00 : f32
    %9 = vector.broadcast %cst_7 : f32 to vector<64x64xf32>
    %10 = arith.addf %9, %8 : vector<64x64xf32>
    %cst_8 = arith.constant 1.000000e+00 : f32
    %11 = vector.broadcast %cst_8 : f32 to vector<64x64xf32>
    %12 = arith.divf %11, %10 : vector<64x64xf32>
    %13 = arith.mulf %4, %12 : vector<64x64xf32>
    %14 = vector.broadcast %1 : vector<64x1xf32> to vector<64x64xf32>
    %15 = arith.mulf %13, %14 : vector<64x64xf32>
    %16 = tpu.iota {dimensions = array<i32: 0>} : vector<64x64xi32>
    %17 = tpu.iota {dimensions = array<i32: 1>} : vector<64x64xi32>
    %18 = arith.cmpi eq, %16, %17 : vector<64x64xi32>
    %19 = vector.broadcast %1 : vector<64x1xf32> to vector<64x64xf32>
    %20 = vector.broadcast %2 : vector<1x64xf32> to vector<64x64xf32>
    %21 = arith.mulf %19, %20 : vector<64x64xf32>
    %22 = arith.mulf %0, %21 : vector<64x64xf32>
    %cst_9 = arith.constant 0.000000e+00 : f32
    %23 = vector.shape_cast %1 : vector<64x1xf32> to vector<64x1xf32>
    %24 = vector.broadcast %23 : vector<64x1xf32> to vector<64x64xf32>
    %25 = vector.broadcast %cst_9 : f32 to vector<64x64xf32>
    %26 = arith.select %18, %24, %25 : vector<64x64xi1>, vector<64x64xf32>
    %27 = arith.addf %22, %26 : vector<64x64xf32>
    %cst_10 = arith.constant dense<0.000000e+00> : vector<64x64xf32>
    %28 = tpu.matmul %27, %27, %cst_10 {dimension_numbers = #tpu.dot_dimension_numbers<[1], [0], [0], [1], [0, 0, 1, 1], [], []>} : vector<64x64xf32>, vector<64x64xf32>, vector<64x64xf32> -> vector<64x64xf32>
    %cst_11 = arith.constant 0.000000e+00 : f32
    %29 = vector.broadcast %cst_11 : f32 to vector<64x64xf32>
    %30 = arith.select %18, %29, %28 : vector<64x64xi1>, vector<64x64xf32>
    %cst_12 = arith.constant 0.000000e+00 : f32
    %31 = vector.broadcast %cst_12 : f32 to vector<64x64xf32>
    %32 = arith.cmpf one, %30, %31 : vector<64x64xf32>
    %cst_13 = arith.constant 0.000000e+00 : f32
    %33 = vector.broadcast %cst_13 : f32 to vector<64x1xf32>
    %34 = arith.cmpf ogt, %1, %33 : vector<64x1xf32>
    %35 = vector.broadcast %34 : vector<64x1xi1> to vector<64x64xi1>
    %36 = arith.andi %18, %35 : vector<64x64xi1>
    %37 = arith.ori %32, %36 : vector<64x64xi1>
    %c0_14 = arith.constant 0 : index
    %c0_15 = arith.constant 0 : index
    %38 = vector.load %arg4[%c0_14, %c0_15] : memref<64x64xf32, #tpu.memory_space<vmem>>, vector<64x64xf32>
    %c0_16 = arith.constant 0 : index
    %c0_17 = arith.constant 0 : index
    %39 = vector.load %arg5[%c0_16, %c0_17] : memref<1x64xf32, #tpu.memory_space<vmem>>, vector<1x64xf32>
    %c0_18 = arith.constant 0 : index
    %c0_19 = arith.constant 0 : index
    %40 = vector.load %arg6[%c0_18, %c0_19] : memref<1x64xf32, #tpu.memory_space<vmem>>, vector<1x64xf32>
    %c0_20 = arith.constant 0 : index
    %c0_21 = arith.constant 0 : index
    %41 = vector.load %arg7[%c0_20, %c0_21] : memref<1x64xf32, #tpu.memory_space<vmem>>, vector<1x64xf32>
    %cst_22 = arith.constant dense<0.000000e+00> : vector<64x64xf32>
    %42 = tpu.matmul %15, %38, %cst_22 {dimension_numbers = #tpu.dot_dimension_numbers<[1], [0], [0], [1], [0, 0, 1, 1], [], []>} : vector<64x64xf32>, vector<64x64xf32>, vector<64x64xf32> -> vector<64x64xf32>
    %43 = vector.broadcast %40 : vector<1x64xf32> to vector<64x64xf32>
    %44 = arith.mulf %42, %43 : vector<64x64xf32>
    %cst_23 = arith.constant dense<0.000000e+00> : vector<64xf32>
    %45 = vector.multi_reduction <add>, %44, %cst_23 [1] : vector<64x64xf32> to vector<64xf32>
    %46 = vector.shape_cast %45 : vector<64xf32> to vector<64x1xf32>
    %cst_24 = arith.constant dense<0.000000e+00> : vector<1x64xf32>
    %47 = tpu.matmul %39, %42, %cst_24 {dimension_numbers = #tpu.dot_dimension_numbers<[1], [1], [0], [0], [0, 0, 1, 0], [], []>} : vector<1x64xf32>, vector<64x64xf32>, vector<1x64xf32> -> vector<1x64xf32>
    %48 = vector.broadcast %46 : vector<64x1xf32> to vector<64x64xf32>
    %49 = vector.broadcast %47 : vector<1x64xf32> to vector<64x64xf32>
    %50 = arith.addf %48, %49 : vector<64x64xf32>
    %cst_25 = arith.constant 0.000000e+00 : f32
    %51 = vector.broadcast %cst_25 : f32 to vector<64x64xf32>
    %52 = arith.cmpf ogt, %50, %51 : vector<64x64xf32>
    %cst_26 = arith.constant 2.000000e-01 : f32
    %53 = vector.broadcast %cst_26 : f32 to vector<64x64xf32>
    %54 = arith.mulf %53, %50 : vector<64x64xf32>
    %55 = arith.select %52, %50, %54 : vector<64x64xi1>, vector<64x64xf32>
    %cst_27 = arith.constant -1.000000e+30 : f32
    %56 = vector.broadcast %cst_27 : f32 to vector<64x64xf32>
    %57 = arith.select %37, %55, %56 : vector<64x64xi1>, vector<64x64xf32>
    %cst_28 = arith.constant dense<0xFF800000> : vector<64xf32>
    %58 = vector.multi_reduction <maximumf>, %57, %cst_28 [1] : vector<64x64xf32> to vector<64xf32>
    %59 = vector.shape_cast %58 : vector<64xf32> to vector<64x1xf32>
    %60 = vector.broadcast %59 : vector<64x1xf32> to vector<64x64xf32>
    %61 = arith.subf %57, %60 : vector<64x64xf32>
    %62 = math.exp %61 : vector<64x64xf32>
    %cst_29 = arith.constant 0.000000e+00 : f32
    %63 = vector.broadcast %cst_29 : f32 to vector<64x64xf32>
    %64 = arith.select %37, %62, %63 : vector<64x64xi1>, vector<64x64xf32>
    %cst_30 = arith.constant dense<0.000000e+00> : vector<64xf32>
    %65 = vector.multi_reduction <add>, %64, %cst_30 [1] : vector<64x64xf32> to vector<64xf32>
    %66 = vector.shape_cast %65 : vector<64xf32> to vector<64x1xf32>
    %cst_31 = arith.constant 1.000000e-16 : f32
    %67 = vector.broadcast %cst_31 : f32 to vector<64x1xf32>
    %68 = arith.maximumf %66, %67 : vector<64x1xf32>
    %69 = vector.broadcast %68 : vector<64x1xf32> to vector<64x64xf32>
    %70 = arith.divf %64, %69 : vector<64x64xf32>
    %cst_32 = arith.constant dense<0.000000e+00> : vector<64x64xf32>
    %71 = tpu.matmul %70, %42, %cst_32 {dimension_numbers = #tpu.dot_dimension_numbers<[1], [0], [0], [1], [0, 0, 1, 1], [], []>} : vector<64x64xf32>, vector<64x64xf32>, vector<64x64xf32> -> vector<64x64xf32>
    %72 = vector.broadcast %41 : vector<1x64xf32> to vector<64x64xf32>
    %73 = arith.addf %71, %72 : vector<64x64xf32>
    %c0_33 = arith.constant 0 : index
    %c0_34 = arith.constant 0 : index
    %74 = vector.load %arg8[%c0_33, %c0_34] : memref<1x64xf32, #tpu.memory_space<vmem>>, vector<1x64xf32>
    %c0_35 = arith.constant 0 : index
    %75 = memref.load %arg9[%c0_35] : memref<3xf32, #tpu.memory_space<smem>>
    %c1 = arith.constant 1 : index
    %76 = memref.load %arg9[%c1] : memref<3xf32, #tpu.memory_space<smem>>
    %c2 = arith.constant 2 : index
    %77 = memref.load %arg9[%c2] : memref<3xf32, #tpu.memory_space<smem>>
    %78 = vector.broadcast %74 : vector<1x64xf32> to vector<64x64xf32>
    %79 = arith.mulf %73, %78 : vector<64x64xf32>
    %cst_36 = arith.constant dense<0.000000e+00> : vector<64xf32>
    %80 = vector.multi_reduction <add>, %79, %cst_36 [1] : vector<64x64xf32> to vector<64xf32>
    %81 = vector.shape_cast %80 : vector<64xf32> to vector<64x1xf32>
    %cst_37 = arith.constant dense<0.000000e+00> : vector<1x64xf32>
    %82 = tpu.matmul %74, %73, %cst_37 {dimension_numbers = #tpu.dot_dimension_numbers<[1], [1], [0], [0], [0, 0, 1, 0], [], []>} : vector<1x64xf32>, vector<64x64xf32>, vector<1x64xf32> -> vector<1x64xf32>
    %83 = vector.broadcast %76 : f32 to vector<64x1xf32>
    %84 = arith.mulf %83, %81 : vector<64x1xf32>
    %85 = vector.broadcast %75 : f32 to vector<1x64xf32>
    %86 = arith.mulf %85, %82 : vector<1x64xf32>
    %87 = vector.broadcast %84 : vector<64x1xf32> to vector<64x64xf32>
    %88 = vector.broadcast %86 : vector<1x64xf32> to vector<64x64xf32>
    %89 = arith.addf %87, %88 : vector<64x64xf32>
    %cst_38 = arith.constant 0.000000e+00 : f32
    %90 = vector.broadcast %cst_38 : f32 to vector<64x64xf32>
    %91 = arith.cmpf ogt, %89, %90 : vector<64x64xf32>
    %cst_39 = arith.constant 2.000000e-01 : f32
    %92 = vector.broadcast %cst_39 : f32 to vector<64x64xf32>
    %93 = arith.mulf %92, %89 : vector<64x64xf32>
    %94 = arith.select %91, %89, %93 : vector<64x64xi1>, vector<64x64xf32>
    %cst_40 = arith.constant -1.000000e+30 : f32
    %95 = vector.broadcast %cst_40 : f32 to vector<64x64xf32>
    %96 = arith.select %37, %94, %95 : vector<64x64xi1>, vector<64x64xf32>
    %cst_41 = arith.constant dense<0xFF800000> : vector<64xf32>
    %97 = vector.multi_reduction <maximumf>, %96, %cst_41 [1] : vector<64x64xf32> to vector<64xf32>
    %98 = vector.shape_cast %97 : vector<64xf32> to vector<64x1xf32>
    %99 = vector.broadcast %98 : vector<64x1xf32> to vector<64x64xf32>
    %100 = arith.subf %96, %99 : vector<64x64xf32>
    %101 = math.exp %100 : vector<64x64xf32>
    %cst_42 = arith.constant 0.000000e+00 : f32
    %102 = vector.broadcast %cst_42 : f32 to vector<64x64xf32>
    %103 = arith.select %37, %101, %102 : vector<64x64xi1>, vector<64x64xf32>
    %cst_43 = arith.constant dense<0.000000e+00> : vector<64xf32>
    %104 = vector.multi_reduction <add>, %103, %cst_43 [1] : vector<64x64xf32> to vector<64xf32>
    %105 = vector.shape_cast %104 : vector<64xf32> to vector<64x1xf32>
    %cst_44 = arith.constant 1.000000e-16 : f32
    %106 = vector.broadcast %cst_44 : f32 to vector<64x1xf32>
    %107 = arith.maximumf %105, %106 : vector<64x1xf32>
    %108 = vector.broadcast %107 : vector<64x1xf32> to vector<64x64xf32>
    %109 = arith.divf %103, %108 : vector<64x64xf32>
    %110 = vector.broadcast %82 : vector<1x64xf32> to vector<64x64xf32>
    %111 = arith.mulf %109, %110 : vector<64x64xf32>
    %cst_45 = arith.constant dense<0.000000e+00> : vector<64xf32>
    %112 = vector.multi_reduction <add>, %111, %cst_45 [1] : vector<64x64xf32> to vector<64xf32>
    %113 = vector.shape_cast %112 : vector<64xf32> to vector<64x1xf32>
    %114 = vector.broadcast %77 : f32 to vector<64x1xf32>
    %115 = arith.addf %113, %114 : vector<64x1xf32>
    %116 = vector.shape_cast %115 : vector<64x1xf32> to vector<64x1xf32>
    %117 = vector.broadcast %116 : vector<64x1xf32> to vector<64x64xf32>
    %118 = tpu.concatenate %73, %117 in 1 : vector<64x64xf32>, vector<64x64xf32> -> vector<64x128xf32>
    %c0_46 = arith.constant 0 : index
    %c0_47 = arith.constant 0 : index
    %119 = vector.load %arg10[%c0_46, %c0_47] : memref<64x128xf32, #tpu.memory_space<vmem>>, vector<64x128xf32>
    tpu.vector_store %arg10[%c0_46, %c0_47], %118 {strides = array<i32>} : memref<64x128xf32, #tpu.memory_space<vmem>>, vector<64x128xf32>,
    return
  }
}

module attributes {stable_mosaic.version = 11 : i64} {
  func.func @_head_kernel(%arg0: memref<64x128xf32, #tpu.memory_space<vmem>>, %arg1: memref<64x1xf32, #tpu.memory_space<vmem>>, %arg2: memref<4x64x1xf32, #tpu.memory_space<vmem>>, %arg3: memref<64x128xf32, #tpu.memory_space<vmem>>, %arg4: memref<64x1xf32, #tpu.memory_space<vmem>>, %arg5: memref<4x64x1xf32, #tpu.memory_space<vmem>>, %arg6: memref<4x12xf32, #tpu.memory_space<vmem>>, %arg7: memref<128x64xf32, #tpu.memory_space<vmem>>, %arg8: memref<128x64xf32, #tpu.memory_space<vmem>>, %arg9: memref<12x64xf32, #tpu.memory_space<vmem>>, %arg10: memref<1x64xf32, #tpu.memory_space<vmem>>, %arg11: memref<1x64xf32, #tpu.memory_space<vmem>>, %arg12: memref<1x64xf32, #tpu.memory_space<vmem>>, %arg13: memref<64x32xf32, #tpu.memory_space<vmem>>, %arg14: memref<1x32xf32, #tpu.memory_space<vmem>>, %arg15: memref<1x32xf32, #tpu.memory_space<vmem>>, %arg16: memref<1x32xf32, #tpu.memory_space<vmem>>, %arg17: memref<32x2xf32, #tpu.memory_space<vmem>>, %arg18: memref<1x2xf32, #tpu.memory_space<vmem>>, %arg19: memref<4x2xf32, #tpu.memory_space<vmem>>) attributes {dimension_semantics = [], scalar_prefetch = 0 : i64, scratch_operands = 0 : i64, tpu.core_type = #tpu.core_type<tc>} {
    %c0 = arith.constant 0 : index
    %c0_0 = arith.constant 0 : index
    %0 = vector.load %arg1[%c0, %c0_0] : memref<64x1xf32, #tpu.memory_space<vmem>>, vector<64x1xf32>
    %c0_1 = arith.constant 0 : index
    %c0_2 = arith.constant 0 : index
    %1 = vector.load %arg0[%c0_1, %c0_2] : memref<64x128xf32, #tpu.memory_space<vmem>>, vector<64x128xf32>
    %2 = vector.extract_strided_slice %1 {offsets = [0, 0], sizes = [64, 64], strides = [1, 1]} : vector<64x128xf32> to vector<64x64xf32>
    %3 = vector.extract_strided_slice %1 {offsets = [0, 64], sizes = [64, 64], strides = [1, 1]} : vector<64x128xf32> to vector<64x64xf32>
    %cst = arith.constant 0.000000e+00 : f32
    %4 = vector.broadcast %cst : f32 to vector<64x64xf32>
    %5 = arith.subf %4, %3 : vector<64x64xf32>
    %6 = math.exp %5 : vector<64x64xf32>
    %cst_3 = arith.constant 1.000000e+00 : f32
    %7 = vector.broadcast %cst_3 : f32 to vector<64x64xf32>
    %8 = arith.addf %7, %6 : vector<64x64xf32>
    %cst_4 = arith.constant 1.000000e+00 : f32
    %9 = vector.broadcast %cst_4 : f32 to vector<64x64xf32>
    %10 = arith.divf %9, %8 : vector<64x64xf32>
    %11 = arith.mulf %2, %10 : vector<64x64xf32>
    %12 = vector.broadcast %0 : vector<64x1xf32> to vector<64x64xf32>
    %13 = arith.mulf %11, %12 : vector<64x64xf32>
    %c0_5 = arith.constant 0 : index
    %c0_6 = arith.constant 0 : index
    %c0_7 = arith.constant 0 : index
    %14 = vector.load %arg2[%c0_5, %c0_6, %c0_7] : memref<4x64x1xf32, #tpu.memory_space<vmem>>, vector<4x64x1xf32>
    %cst_8 = arith.constant 0.000000e+00 : f32
    %15 = vector.broadcast %cst_8 : f32 to vector<4x64x1xf32>
    %16 = arith.cmpf ogt, %14, %15 : vector<4x64x1xf32>
    %17 = vector.shape_cast %13 : vector<64x64xf32> to vector<1x64x64xf32>
    %cst_9 = arith.constant -1.000000e+30 : f32
    %18 = vector.shape_cast %16 : vector<4x64x1xi1> to vector<4x64x1xi1>
    %19 = vector.broadcast %18 : vector<4x64x1xi1> to vector<4x64x64xi1>
    %20 = vector.shape_cast %17 : vector<1x64x64xf32> to vector<1x64x64xf32>
    %21 = vector.broadcast %20 : vector<1x64x64xf32> to vector<4x64x64xf32>
    %22 = vector.broadcast %cst_9 : f32 to vector<4x64x64xf32>
    %23 = arith.select %19, %21, %22 : vector<4x64x64xi1>, vector<4x64x64xf32>
    %cst_10 = arith.constant dense<0xFF800000> : vector<4x64xf32>
    %24 = vector.multi_reduction <maximumf>, %23, %cst_10 [1] : vector<4x64x64xf32> to vector<4x64xf32>
    %cst_11 = arith.constant dense<0.000000e+00> : vector<4x1xf32>
    %25 = vector.multi_reduction <add>, %14, %cst_11 [1] : vector<4x64x1xf32> to vector<4x1xf32>
    %cst_12 = arith.constant 1.000000e+00 : f32
    %26 = vector.broadcast %cst_12 : f32 to vector<4x1xf32>
    %27 = arith.maximumf %25, %26 : vector<4x1xf32>
    %28 = vector.shape_cast %13 : vector<64x64xf32> to vector<1x64x64xf32>
    %29 = vector.broadcast %28 : vector<1x64x64xf32> to vector<4x64x64xf32>
    %30 = vector.broadcast %14 : vector<4x64x1xf32> to vector<4x64x64xf32>
    %31 = arith.mulf %29, %30 : vector<4x64x64xf32>
    %cst_13 = arith.constant dense<0.000000e+00> : vector<4x64xf32>
    %32 = vector.multi_reduction <add>, %31, %cst_13 [1] : vector<4x64x64xf32> to vector<4x64xf32>
    %33 = vector.broadcast %27 : vector<4x1xf32> to vector<4x64xf32>
    %34 = arith.divf %32, %33 : vector<4x64xf32>
    %35 = tpu.concatenate %24, %34 in 1 : vector<4x64xf32>, vector<4x64xf32> -> vector<4x128xf32>
    %c0_14 = arith.constant 0 : index
    %c0_15 = arith.constant 0 : index
    %36 = vector.load %arg4[%c0_14, %c0_15] : memref<64x1xf32, #tpu.memory_space<vmem>>, vector<64x1xf32>
    %c0_16 = arith.constant 0 : index
    %c0_17 = arith.constant 0 : index
    %37 = vector.load %arg3[%c0_16, %c0_17] : memref<64x128xf32, #tpu.memory_space<vmem>>, vector<64x128xf32>
    %38 = vector.extract_strided_slice %37 {offsets = [0, 0], sizes = [64, 64], strides = [1, 1]} : vector<64x128xf32> to vector<64x64xf32>
    %39 = vector.extract_strided_slice %37 {offsets = [0, 64], sizes = [64, 64], strides = [1, 1]} : vector<64x128xf32> to vector<64x64xf32>
    %cst_18 = arith.constant 0.000000e+00 : f32
    %40 = vector.broadcast %cst_18 : f32 to vector<64x64xf32>
    %41 = arith.subf %40, %39 : vector<64x64xf32>
    %42 = math.exp %41 : vector<64x64xf32>
    %cst_19 = arith.constant 1.000000e+00 : f32
    %43 = vector.broadcast %cst_19 : f32 to vector<64x64xf32>
    %44 = arith.addf %43, %42 : vector<64x64xf32>
    %cst_20 = arith.constant 1.000000e+00 : f32
    %45 = vector.broadcast %cst_20 : f32 to vector<64x64xf32>
    %46 = arith.divf %45, %44 : vector<64x64xf32>
    %47 = arith.mulf %38, %46 : vector<64x64xf32>
    %48 = vector.broadcast %36 : vector<64x1xf32> to vector<64x64xf32>
    %49 = arith.mulf %47, %48 : vector<64x64xf32>
    %c0_21 = arith.constant 0 : index
    %c0_22 = arith.constant 0 : index
    %c0_23 = arith.constant 0 : index
    %50 = vector.load %arg5[%c0_21, %c0_22, %c0_23] : memref<4x64x1xf32, #tpu.memory_space<vmem>>, vector<4x64x1xf32>
    %cst_24 = arith.constant 0.000000e+00 : f32
    %51 = vector.broadcast %cst_24 : f32 to vector<4x64x1xf32>
    %52 = arith.cmpf ogt, %50, %51 : vector<4x64x1xf32>
    %53 = vector.shape_cast %49 : vector<64x64xf32> to vector<1x64x64xf32>
    %cst_25 = arith.constant -1.000000e+30 : f32
    %54 = vector.shape_cast %52 : vector<4x64x1xi1> to vector<4x64x1xi1>
    %55 = vector.broadcast %54 : vector<4x64x1xi1> to vector<4x64x64xi1>
    %56 = vector.shape_cast %53 : vector<1x64x64xf32> to vector<1x64x64xf32>
    %57 = vector.broadcast %56 : vector<1x64x64xf32> to vector<4x64x64xf32>
    %58 = vector.broadcast %cst_25 : f32 to vector<4x64x64xf32>
    %59 = arith.select %55, %57, %58 : vector<4x64x64xi1>, vector<4x64x64xf32>
    %cst_26 = arith.constant dense<0xFF800000> : vector<4x64xf32>
    %60 = vector.multi_reduction <maximumf>, %59, %cst_26 [1] : vector<4x64x64xf32> to vector<4x64xf32>
    %cst_27 = arith.constant dense<0.000000e+00> : vector<4x1xf32>
    %61 = vector.multi_reduction <add>, %50, %cst_27 [1] : vector<4x64x1xf32> to vector<4x1xf32>
    %cst_28 = arith.constant 1.000000e+00 : f32
    %62 = vector.broadcast %cst_28 : f32 to vector<4x1xf32>
    %63 = arith.maximumf %61, %62 : vector<4x1xf32>
    %64 = vector.shape_cast %49 : vector<64x64xf32> to vector<1x64x64xf32>
    %65 = vector.broadcast %64 : vector<1x64x64xf32> to vector<4x64x64xf32>
    %66 = vector.broadcast %50 : vector<4x64x1xf32> to vector<4x64x64xf32>
    %67 = arith.mulf %65, %66 : vector<4x64x64xf32>
    %cst_29 = arith.constant dense<0.000000e+00> : vector<4x64xf32>
    %68 = vector.multi_reduction <add>, %67, %cst_29 [1] : vector<4x64x64xf32> to vector<4x64xf32>
    %69 = vector.broadcast %63 : vector<4x1xf32> to vector<4x64xf32>
    %70 = arith.divf %68, %69 : vector<4x64xf32>
    %71 = tpu.concatenate %60, %70 in 1 : vector<4x64xf32>, vector<4x64xf32> -> vector<4x128xf32>
    %c0_30 = arith.constant 0 : index
    %c0_31 = arith.constant 0 : index
    %72 = vector.load %arg7[%c0_30, %c0_31] : memref<128x64xf32, #tpu.memory_space<vmem>>, vector<128x64xf32>
    %cst_32 = arith.constant dense<0.000000e+00> : vector<4x64xf32>
    %73 = tpu.matmul %35, %72, %cst_32 {dimension_numbers = #tpu.dot_dimension_numbers<[1], [0], [0], [1], [0, 0, 1, 1], [], []>} : vector<4x128xf32>, vector<128x64xf32>, vector<4x64xf32> -> vector<4x64xf32>
    %c0_33 = arith.constant 0 : index
    %c0_34 = arith.constant 0 : index
    %74 = vector.load %arg8[%c0_33, %c0_34] : memref<128x64xf32, #tpu.memory_space<vmem>>, vector<128x64xf32>
    %cst_35 = arith.constant dense<0.000000e+00> : vector<4x64xf32>
    %75 = tpu.matmul %71, %74, %cst_35 {dimension_numbers = #tpu.dot_dimension_numbers<[1], [0], [0], [1], [0, 0, 1, 1], [], []>} : vector<4x128xf32>, vector<128x64xf32>, vector<4x64xf32> -> vector<4x64xf32>
    %76 = arith.addf %73, %75 : vector<4x64xf32>
    %c0_36 = arith.constant 0 : index
    %c0_37 = arith.constant 0 : index
    %77 = vector.load %arg6[%c0_36, %c0_37] : memref<4x12xf32, #tpu.memory_space<vmem>>, vector<4x12xf32>
    %c0_38 = arith.constant 0 : index
    %c0_39 = arith.constant 0 : index
    %78 = vector.load %arg9[%c0_38, %c0_39] : memref<12x64xf32, #tpu.memory_space<vmem>>, vector<12x64xf32>
    %cst_40 = arith.constant dense<0.000000e+00> : vector<4x64xf32>
    %79 = tpu.matmul %77, %78, %cst_40 {dimension_numbers = #tpu.dot_dimension_numbers<[1], [0], [0], [1], [0, 0, 1, 1], [], []>} : vector<4x12xf32>, vector<12x64xf32>, vector<4x64xf32> -> vector<4x64xf32>
    %80 = arith.addf %76, %79 : vector<4x64xf32>
    %c0_41 = arith.constant 0 : index
    %c0_42 = arith.constant 0 : index
    %81 = vector.load %arg10[%c0_41, %c0_42] : memref<1x64xf32, #tpu.memory_space<vmem>>, vector<1x64xf32>
    %82 = vector.broadcast %81 : vector<1x64xf32> to vector<4x64xf32>
    %83 = arith.addf %80, %82 : vector<4x64xf32>
    %cst_43 = arith.constant 0.000000e+00 : f32
    %84 = vector.broadcast %cst_43 : f32 to vector<4x64xf32>
    %85 = arith.maximumf %83, %84 : vector<4x64xf32>
    %c0_44 = arith.constant 0 : index
    %c0_45 = arith.constant 0 : index
    %86 = vector.load %arg11[%c0_44, %c0_45] : memref<1x64xf32, #tpu.memory_space<vmem>>, vector<1x64xf32>
    %87 = vector.broadcast %86 : vector<1x64xf32> to vector<4x64xf32>
    %88 = arith.mulf %85, %87 : vector<4x64xf32>
    %c0_46 = arith.constant 0 : index
    %c0_47 = arith.constant 0 : index
    %89 = vector.load %arg12[%c0_46, %c0_47] : memref<1x64xf32, #tpu.memory_space<vmem>>, vector<1x64xf32>
    %90 = vector.broadcast %89 : vector<1x64xf32> to vector<4x64xf32>
    %91 = arith.addf %88, %90 : vector<4x64xf32>
    %c0_48 = arith.constant 0 : index
    %c0_49 = arith.constant 0 : index
    %92 = vector.load %arg13[%c0_48, %c0_49] : memref<64x32xf32, #tpu.memory_space<vmem>>, vector<64x32xf32>
    %cst_50 = arith.constant dense<0.000000e+00> : vector<4x32xf32>
    %93 = tpu.matmul %91, %92, %cst_50 {dimension_numbers = #tpu.dot_dimension_numbers<[1], [0], [0], [1], [0, 0, 1, 1], [], []>} : vector<4x64xf32>, vector<64x32xf32>, vector<4x32xf32> -> vector<4x32xf32>
    %c0_51 = arith.constant 0 : index
    %c0_52 = arith.constant 0 : index
    %94 = vector.load %arg14[%c0_51, %c0_52] : memref<1x32xf32, #tpu.memory_space<vmem>>, vector<1x32xf32>
    %95 = vector.broadcast %94 : vector<1x32xf32> to vector<4x32xf32>
    %96 = arith.addf %93, %95 : vector<4x32xf32>
    %cst_53 = arith.constant 0.000000e+00 : f32
    %97 = vector.broadcast %cst_53 : f32 to vector<4x32xf32>
    %98 = arith.maximumf %96, %97 : vector<4x32xf32>
    %c0_54 = arith.constant 0 : index
    %c0_55 = arith.constant 0 : index
    %99 = vector.load %arg15[%c0_54, %c0_55] : memref<1x32xf32, #tpu.memory_space<vmem>>, vector<1x32xf32>
    %100 = vector.broadcast %99 : vector<1x32xf32> to vector<4x32xf32>
    %101 = arith.mulf %98, %100 : vector<4x32xf32>
    %c0_56 = arith.constant 0 : index
    %c0_57 = arith.constant 0 : index
    %102 = vector.load %arg16[%c0_56, %c0_57] : memref<1x32xf32, #tpu.memory_space<vmem>>, vector<1x32xf32>
    %103 = vector.broadcast %102 : vector<1x32xf32> to vector<4x32xf32>
    %104 = arith.addf %101, %103 : vector<4x32xf32>
    %c0_58 = arith.constant 0 : index
    %c0_59 = arith.constant 0 : index
    %105 = vector.load %arg17[%c0_58, %c0_59] : memref<32x2xf32, #tpu.memory_space<vmem>>, vector<32x2xf32>
    %cst_60 = arith.constant dense<0.000000e+00> : vector<4x2xf32>
    %106 = tpu.matmul %104, %105, %cst_60 {dimension_numbers = #tpu.dot_dimension_numbers<[1], [0], [0], [1], [0, 0, 1, 1], [], []>} : vector<4x32xf32>, vector<32x2xf32>, vector<4x2xf32> -> vector<4x2xf32>
    %c0_61 = arith.constant 0 : index
    %c0_62 = arith.constant 0 : index
    %107 = vector.load %arg18[%c0_61, %c0_62] : memref<1x2xf32, #tpu.memory_space<vmem>>, vector<1x2xf32>
    %108 = vector.broadcast %107 : vector<1x2xf32> to vector<4x2xf32>
    %109 = arith.addf %106, %108 : vector<4x2xf32>
    %cst_63 = arith.constant dense<0xFF800000> : vector<4xf32>
    %110 = vector.multi_reduction <maximumf>, %109, %cst_63 [1] : vector<4x2xf32> to vector<4xf32>
    %111 = vector.shape_cast %110 : vector<4xf32> to vector<4x1xf32>
    %112 = vector.broadcast %111 : vector<4x1xf32> to vector<4x2xf32>
    %113 = arith.subf %109, %112 : vector<4x2xf32>
    %114 = math.exp %113 : vector<4x2xf32>
    %cst_64 = arith.constant dense<0.000000e+00> : vector<4xf32>
    %115 = vector.multi_reduction <add>, %114, %cst_64 [1] : vector<4x2xf32> to vector<4xf32>
    %116 = vector.shape_cast %115 : vector<4xf32> to vector<4x1xf32>
    %117 = math.log %116 : vector<4x1xf32>
    %118 = arith.addf %111, %117 : vector<4x1xf32>
    %119 = vector.broadcast %118 : vector<4x1xf32> to vector<4x2xf32>
    %120 = arith.subf %109, %119 : vector<4x2xf32>
    %c0_65 = arith.constant 0 : index
    %c0_66 = arith.constant 0 : index
    %121 = vector.load %arg19[%c0_65, %c0_66] : memref<4x2xf32, #tpu.memory_space<vmem>>, vector<4x2xf32>
    tpu.vector_store %arg19[%c0_65, %c0_66], %120 {strides = array<i32>} : memref<4x2xf32, #tpu.memory_space<vmem>>, vector<4x2xf32>,
    return
  }
}

</mosaic_0001>

<llo_original>
// kernel: squeeze.2
$region0: #{squeeze.2}
  %s0 = inlined_call_operand.vmem [shape: f32[64], index: 0, kind: input, shape index: {}]
  %s1 = inlined_call_operand.vmem [shape: f32[4,16], index: 1, kind: output, shape index: {}]
  $region1: #{squeeze.2} parent=0
    #allocation0 [shape = 'u8[4096]{0}', space=vmem, size = 0x1000, scoped, tag = 'scoped mem for output reshape']
    #allocation1 [shape = 'u8[4096]{0}', space=vmem, size = 0x1000, scoped, tag = 'scoped mem for input reshape']
    %s3 = sshll.u32 1, 1
    %s4 = ssub.s32 %s3, 1
    %v5 = vld [vmem:[%s0] sm:%s4]
    %6 = vst [vmem:[#allocation1] sm:%s4] %v5
    %v7 = vld [vmem:[#allocation1] sm:$0x1]
    %vm8 = vcmask 130048
    %9 = vst.msk [vmem:[#allocation0] sm:$0x1] %vm8, %v7
    %v10 = vld [vmem:[#allocation1] sm:$0x1]
    %11 = vrot.lane.b32.xlu0 %v10, 112
    %v12 = vpop.permute.xlu0 %11
    %vm13 = vcmask 130048
    %s14 = scalar_lea.vmem [#allocation0], 1
    %15 = vst.msk [vmem:[%s14] sm:$0x1] %vm13, %v12
    %v16 = vld [vmem:[#allocation1] sm:$0x1]
    %17 = vrot.lane.b32.xlu0 %v16, 96
    %v18 = vpop.permute.xlu0 %17
    %vm19 = vcmask 130048
    %s20 = scalar_lea.vmem [#allocation0], 2
    %21 = vst.msk [vmem:[%s20] sm:$0x1] %vm19, %v18
    %v22 = vld [vmem:[#allocation1] sm:$0x1]
    %23 = vrot.lane.b32.xlu0 %v22, 80
    %v24 = vpop.permute.xlu0 %23
    %vm25 = vcmask 130048
    %s26 = scalar_lea.vmem [#allocation0], 3
    %27 = vst.msk [vmem:[%s26] sm:$0x1] %vm25, %v24
    %s29 = sshll.u32 1, 4
    %s30 = ssub.s32 %s29, 1
    %v32 = vld [vmem:[#allocation0] sm:%s30]
    %s33 = sshll.u32 1, 4
    %s34 = ssub.s32 %s33, 1
    %35 = vst [vmem:[%s1] sm:%s34] %v32

// kernel: network_forward.3
$region0: #{network_forward.3}
  #allocation0 [shape = 'u32[]', space=smem, size = 0x4, offset = 0x4, fixed_abs, tag = 'smem constant byte address 0x4 - core index']
  #allocation1 [shape = 'u32[144,128]{1,0:T(1,128)}', space=vmem, size = 0x12000, scoped, tag = 'internal scratch']
  %s0 = inlined_call_operand.vmem [shape: f32[64,16], index: 0, kind: input, shape index: {}]
  %s1 = inlined_call_operand.vmem [shape: f32[64,64], index: 1, kind: input, shape index: {}]
  %s2 = inlined_call_operand.vmem [shape: f32[16,64], index: 2, kind: input, shape index: {}]
  %s3 = inlined_call_operand.vmem [shape: f32[1,64], index: 3, kind: input, shape index: {}]
  %s4 = inlined_call_operand.vmem [shape: f32[1,64], index: 4, kind: input, shape index: {}]
  %s5 = inlined_call_operand.vmem [shape: f32[1,64], index: 5, kind: input, shape index: {}]
  %s6 = inlined_call_operand.vmem [shape: f32[1,64], index: 6, kind: input, shape index: {}]
  %s7 = inlined_call_operand.vmem [shape: f32[3], index: 7, kind: input, shape index: {}]
  %s8 = inlined_call_operand.vmem [shape: f32[64,128], index: 8, kind: output, shape index: {}]
  %s9 = sld [smem:[#allocation0]]
  $region46: #{network_forward.3} parent=0
    _
  %s11 = ssub.s32 1, %s9
  %s12 = scalar_select 0, %s11, %s9
  $region1: #{network_forward.3} parent=0
    #allocation2 [shape = 'u8[512]{0}', space=smem, size = 0x200, scoped, tag = 'input window, operand 7, single buffered']
    #allocation3 [shape = 's32[1]{0}', space=sflag, size = 0x4, scoped, tag = 'scoped memory for network_forward.3']
    %13 = vsyncpa [#allocation3], 0
    // Predicated region
    $region2: #{network_forward.3} parent=1 // pred_check
      _
    $region3: #{network_forward.3} parent=1 // pred_check_branch
      %15 = sbr.rel (0) target = $region5
    $region4: #{network_forward.3} parent=1 // pred_region
      _
    $region5: #{network_forward.3} parent=1 // pred_fallthru
      _
    // Predicated region
    $region6: #{network_forward.3} parent=1 // pred_check
      _
    $region7: #{network_forward.3} parent=1 // pred_check_branch
      %17 = sbr.rel (0) target = $region9
    $region8: #{network_forward.3} parent=1 // pred_region
      _
    $region9: #{network_forward.3} parent=1 // pred_fallthru
      _
    // Predicated region
    $region10: #{network_forward.3} parent=1 // pred_check
      _
    $region11: #{network_forward.3} parent=1 // pred_check_branch
      %19 = sbr.rel (0) target = $region13
    $region12: #{network_forward.3} parent=1 // pred_region
      _
    $region13: #{network_forward.3} parent=1 // pred_fallthru
      _
    // Predicated region
    $region14: #{network_forward.3} parent=1 // pred_check
      _
    $region15: #{network_forward.3} parent=1 // pred_check_branch
      %21 = sbr.rel (0) target = $region17
    $region16: #{network_forward.3} parent=1 // pred_region
      _
    $region17: #{network_forward.3} parent=1 // pred_fallthru
      _
    // Predicated region
    $region18: #{network_forward.3} parent=1 // pred_check
      _
    $region19: #{network_forward.3} parent=1 // pred_check_branch
      %23 = sbr.rel (0) target = $region21
    $region20: #{network_forward.3} parent=1 // pred_region
      _
    $region21: #{network_forward.3} parent=1 // pred_fallthru
      _
    // Predicated region
    $region22: #{network_forward.3} parent=1 // pred_check
      _
    $region23: #{network_forward.3} parent=1 // pred_check_branch
      %25 = sbr.rel (0) target = $region25
    $region24: #{network_forward.3} parent=1 // pred_region
      _
    $region25: #{network_forward.3} parent=1 // pred_fallthru
      _
    // Predicated region
    $region26: #{network_forward.3} parent=1 // pred_check
      _
    $region27: #{network_forward.3} parent=1 // pred_check_branch
      %27 = sbr.rel (0) target = $region29
    $region28: #{network_forward.3} parent=1 // pred_region
      _
    $region29: #{network_forward.3} parent=1 // pred_fallthru
      _
    // Predicated region
    $region30: #{network_forward.3} parent=1 // pred_check
      _
    $region31: #{network_forward.3} parent=1 // pred_check_branch
      %29 = sbr.rel (0) target = $region33
    $region32: #{network_forward.3} parent=1 // pred_region
      %s31 = ssub.s32 16, 16
      %32 = vsyncadd [#allocation3], %s31
      %s34 = sshll.u32 %s7, 4
      %s35 = int_to_ptr.vmem [resolvable:$true] %s34
      %37 = dma.vmem_to_smem %s35, 16, [#allocation2], [#allocation3]
    $region33: #{network_forward.3} parent=1 // pred_fallthru
      _
    // Predicated region
    $region34: #{network_forward.3} parent=1 // pred_check
      _
    $region35: #{network_forward.3} parent=1 // pred_check_branch
      %39 = sbr.rel (0) target = $region37
    $region36: #{network_forward.3} parent=1 // pred_region
      %40 = dma.done [#allocation3], 16
    $region37: #{network_forward.3} parent=1 // pred_fallthru
      _
    %41 = sfence
    %v42 = vld [vmem:[%s0] sm:$0xff]
    %v43 = vld [vmem:[%s0 + $0x8] sm:$0xff]
    %v44 = vld [vmem:[%s0 + $0x10] sm:$0xff]
    %v45 = vld [vmem:[%s0 + $0x18] sm:$0xff]
    %v46 = vld [vmem:[%s0 + $0x20] sm:$0xff]
    %v47 = vld [vmem:[%s0 + $0x28] sm:$0xff]
    %v48 = vld [vmem:[%s0 + $0x30] sm:$0xff]
    %v49 = vld [vmem:[%s0 + $0x38] sm:$0xff]
    %v50 = vld [vmem:[%s1] sm:$0xff]
    %v51 = vld [vmem:[%s1 + $0x8] sm:$0xff]
    %v52 = vld [vmem:[%s1 + $0x10] sm:$0xff]
    %v53 = vld [vmem:[%s1 + $0x18] sm:$0xff]
    %v54 = vld [vmem:[%s1 + $0x20] sm:$0xff]
    %v55 = vld [vmem:[%s1 + $0x28] sm:$0xff]
    %v56 = vld [vmem:[%s1 + $0x30] sm:$0xff]
    %v57 = vld [vmem:[%s1 + $0x38] sm:$0xff]
    %v58 = vlaneseq
    %v59 = vshrl.u32 %v58, 7
    %v60 = vadd.s32 %v59, 8
    %v61 = vadd.s32 %v59, 16
    %v62 = vadd.s32 %v59, 24
    %v63 = vadd.s32 %v59, 32
    %v64 = vadd.s32 %v59, 40
    %v65 = vadd.s32 %v59, 48
    %v66 = vadd.s32 %v59, 56
    %v67 = vlaneseq
    %v68 = vand.u32 %v67, 127
    %vm69 = vcmp.ne.f32.partialorder %v50, 0.0
    %vm70 = vcmp.ne.f32.partialorder %v51, 0.0
    %vm71 = vcmp.ne.f32.partialorder %v52, 0.0
    %vm72 = vcmp.ne.f32.partialorder %v53, 0.0
    %vm73 = vcmp.ne.f32.partialorder %v54, 0.0
    %vm74 = vcmp.ne.f32.partialorder %v55, 0.0
    %vm75 = vcmp.ne.f32.partialorder %v56, 0.0
    %vm76 = vcmp.ne.f32.partialorder %v57, 0.0
    %vm77 = vcmp.eq.s32.totalorder %v59, %v68
    %vm78 = vcmp.eq.s32.totalorder %v60, %v68
    %vm79 = vcmp.eq.s32.totalorder %v61, %v68
    %vm80 = vcmp.eq.s32.totalorder %v62, %v68
    %vm81 = vcmp.eq.s32.totalorder %v63, %v68
    %vm82 = vcmp.eq.s32.totalorder %v64, %v68
    %vm83 = vcmp.eq.s32.totalorder %v65, %v68
    %vm84 = vcmp.eq.s32.totalorder %v66, %v68
    %vm85 = vmor %vm69, %vm77
    %vm86 = vmor %vm70, %vm78
    %vm87 = vmor %vm71, %vm79
    %vm88 = vmor %vm72, %vm80
    %vm89 = vmor %vm73, %vm81
    %vm90 = vmor %vm74, %vm82
    %vm91 = vmor %vm75, %vm83
    %vm92 = vmor %vm76, %vm84
    %v93 = vld [vmem:[%s2] sm:$0xff]
    %v94 = vld [vmem:[%s2 + $0x8] sm:$0xff]
    %v95 = vld [vmem:[%s3] sm:$0x1]
    %v96 = vld [vmem:[%s4] sm:$0x1]
    %v97 = vld [vmem:[%s5] sm:$0x1]
    %vm98 = vcmask 130048
    %v100 = vsel %vm98, %v42, 0
    %v103 = vsel %vm98, %v43, 0
    %v106 = vsel %vm98, %v44, 0
    %v109 = vsel %vm98, %v45, 0
    %v112 = vsel %vm98, %v46, 0
    %v115 = vsel %vm98, %v47, 0
    %v118 = vsel %vm98, %v48, 0
    %v121 = vsel %vm98, %v49, 0
    %123 = vmatprep.subr.mxu0 0.0
    %124 = vmatpush1.msra.mxu0 0.0
    %125 = vmatprep.subr.mxu0 0.0
    %126 = vmatpush1.msra.mxu0 0.0
    %127 = vmatprep.subr.mxu0 0.0
    %128 = vmatpush1.msra.mxu0 0.0
    %129 = vmatprep.subr.mxu0 0.0
    %130 = vmatpush1.msra.mxu0 0.0
    %131 = vmatprep.subr.mxu0 0.0
    %132 = vmatpush1.msra.mxu0 0.0
    %133 = vmatprep.subr.mxu0 0.0
    %134 = vmatpush1.msra.mxu0 0.0
    %135 = vmatprep.subr.mxu0 0.0
    %136 = vmatpush1.msra.mxu0 0.0
    %137 = vmatprep.subr.mxu0 0.0
    %138 = vmatpush1.msra.mxu0 0.0
    %139 = vmatprep.subr.mxu0 0.0
    %140 = vmatpush1.msra.mxu0 0.0
    %141 = vmatprep.subr.mxu0 0.0
    %142 = vmatpush1.msra.mxu0 0.0
    %143 = vmatprep.subr.mxu0 0.0
    %144 = vmatpush1.msra.mxu0 0.0
    %145 = vmatprep.subr.mxu0 0.0
    %146 = vmatpush1.msra.mxu0 0.0
    %147 = vmatprep.subr.mxu0 0.0
    %148 = vmatpush1.msra.mxu0 0.0
    %149 = vmatprep.subr.mxu0 0.0
    %150 = vmatpush1.msra.mxu0 0.0
    %151 = vmatprep.subr.mxu0 0.0
    %152 = vmatpush1.msra.mxu0 %v94
    %153 = vmatprep.subr.mxu0 0.0
    %154 = vmatpush1.msra.mxu0 %v93
    %155 = vmatprep.subr.mxu0 0.0
    %156 = vmatpush2.msra.mxu0 0.0
    %157 = vmatprep.subr.mxu0 0.0
    %158 = vmatpush2.msra.mxu0 0.0
    %159 = vmatprep.subr.mxu0 0.0
    %160 = vmatpush2.msra.mxu0 0.0
    %161 = vmatprep.subr.mxu0 0.0
    %162 = vmatpush2.msra.mxu0 0.0
    %163 = vmatprep.subr.mxu0 0.0
    %164 = vmatpush2.msra.mxu0 0.0
    %165 = vmatprep.subr.mxu0 0.0
    %166 = vmatpush2.msra.mxu0 0.0
    %167 = vmatprep.subr.mxu0 0.0
    %168 = vmatpush2.msra.mxu0 0.0
    %169 = vmatprep.subr.mxu0 0.0
    %170 = vmatpush2.msra.mxu0 0.0
    %171 = vmatprep.subr.mxu0 0.0
    %172 = vmatpush2.msra.mxu0 0.0
    %173 = vmatprep.subr.mxu0 0.0
    %174 = vmatpush2.msra.mxu0 0.0
    %175 = vmatprep.subr.mxu0 0.0
    %176 = vmatpush2.msra.mxu0 0.0
    %177 = vmatprep.subr.mxu0 0.0
    %178 = vmatpush2.msra.mxu0 0.0
    %179 = vmatprep.subr.mxu0 0.0
    %180 = vmatpush2.msra.mxu0 0.0
    %181 = vmatprep.subr.mxu0 0.0
    %182 = vmatpush2.msra.mxu0 0.0
    %183 = vmatprep.subr.mxu0 0.0
    %184 = vmatpush2.msra.mxu0 0.0
    %185 = vmatprep.subr.mxu0 0.0
    %186 = vmatpush2.msra.mxu0 0.0
    %187 = vmatprep.mubr.f32.mxu0 0.0
    %188 = vmatmul.mubr.f32.gmra.mxu0 %v100
    %v189 = vpop.f32.mrf.mxu0
    %v190 = vadd.f32 0.0, %v189
    %v191 = vpop.f32.mrf.mxu0
    %192 = vmatprep.mubr.f32.mxu0 0.0
    %193 = vmatmul.mubr.f32.gmra.mxu0 %v103
    %v194 = vpop.f32.mrf.mxu0
    %v195 = vadd.f32 0.0, %v194
    %v196 = vpop.f32.mrf.mxu0
    %197 = vmatprep.mubr.f32.mxu0 0.0
    %198 = vmatmul.mubr.f32.gmra.mxu0 %v106
    %v199 = vpop.f32.mrf.mxu0
    %v200 = vadd.f32 0.0, %v199
    %v201 = vpop.f32.mrf.mxu0
    %202 = vmatprep.mubr.f32.mxu0 0.0
    %203 = vmatmul.mubr.f32.gmra.mxu0 %v109
    %v204 = vpop.f32.mrf.mxu0
    %v205 = vadd.f32 0.0, %v204
    %v206 = vpop.f32.mrf.mxu0
    %207 = vmatprep.mubr.f32.mxu0 0.0
    %208 = vmatmul.mubr.f32.gmra.mxu0 %v112
    %v209 = vpop.f32.mrf.mxu0
    %v210 = vadd.f32 0.0, %v209
    %v211 = vpop.f32.mrf.mxu0
    %212 = vmatprep.mubr.f32.mxu0 0.0
    %213 = vmatmul.mubr.f32.gmra.mxu0 %v115
    %v214 = vpop.f32.mrf.mxu0
    %v215 = vadd.f32 0.0, %v214
    %v216 = vpop.f32.mrf.mxu0
    %217 = vmatprep.mubr.f32.mxu0 0.0
    %218 = vmatmul.mubr.f32.gmra.mxu0 %v118
    %v219 = vpop.f32.mrf.mxu0
    %v220 = vadd.f32 0.0, %v219
    %v221 = vpop.f32.mrf.mxu0
    %222 = vmatprep.mubr.f32.mxu0 0.0
    %223 = vmatmul.mubr.f32.gmra.mxu0 %v121
    %v224 = vpop.f32.mrf.mxu0
    %v225 = vadd.f32 0.0, %v224
    %v226 = vpop.f32.mrf.mxu0
    %227 = vdwg.mxu0
    %v229 = vlaneseq
    %v230 = vshrl.u32 %v229, 7
    %v231 = vsub.s32 0, %v230
    %v232 = vrot.slane %v96, %v231
    %v234 = vmul.f32 %v190, %v232
    %v235 = vmul.f32 %v195, %v232
    %v236 = vmul.f32 %v200, %v232
    %v237 = vmul.f32 %v205, %v232
    %v238 = vmul.f32 %v210, %v232
    %v239 = vmul.f32 %v215, %v232
    %v240 = vmul.f32 %v220, %v232
    %v241 = vmul.f32 %v225, %v232
    %vm242 = vcmask 523264
    %v243 = vsel %vm242, %v234, 0.0
    %244 = vadd.xlane.f32.xlu0 %v243
    %v245 = vpop.xlane.xlu0 %244
    %v246 = vsel %vm242, %v235, 0.0
    %247 = vadd.xlane.f32.xlu0 %v246
    %v248 = vpop.xlane.xlu0 %247
    %v249 = vsel %vm242, %v236, 0.0
    %250 = vadd.xlane.f32.xlu0 %v249
    %v251 = vpop.xlane.xlu0 %250
    %v252 = vsel %vm242, %v237, 0.0
    %253 = vadd.xlane.f32.xlu0 %v252
    %v254 = vpop.xlane.xlu0 %253
    %v255 = vsel %vm242, %v238, 0.0
    %256 = vadd.xlane.f32.xlu0 %v255
    %v257 = vpop.xlane.xlu0 %256
    %v258 = vsel %vm242, %v239, 0.0
    %259 = vadd.xlane.f32.xlu0 %v258
    %v260 = vpop.xlane.xlu0 %259
    %v261 = vsel %vm242, %v240, 0.0
    %262 = vadd.xlane.f32.xlu0 %v261
    %v263 = vpop.xlane.xlu0 %262
    %v264 = vsel %vm242, %v241, 0.0
    %265 = vadd.xlane.f32.xlu0 %v264
    %v266 = vpop.xlane.xlu0 %265
    %v268 = vsel %vm242, %v95, 0
    %v271 = vsel %vm242, %v190, 0
    %v274 = vsel %vm242, %v195, 0
    %v277 = vsel %vm242, %v200, 0
    %v280 = vsel %vm242, %v205, 0
    %v283 = vsel %vm242, %v210, 0
    %v286 = vsel %vm242, %v215, 0
    %v289 = vsel %vm242, %v220, 0
    %v292 = vsel %vm242, %v225, 0
    %294 = vmatprep.subr.mxu0 0.0
    %295 = vmatpush1.xpose.msra.mxu0 0.0
    %296 = vmatprep.subr.mxu0 0.0
    %297 = vmatpush1.xpose.msra.mxu0 0.0
    %298 = vmatprep.subr.mxu0 0.0
    %299 = vmatpush1.xpose.msra.mxu0 0.0
    %300 = vmatprep.subr.mxu0 0.0
    %301 = vmatpush1.xpose.msra.mxu0 0.0
    %302 = vmatprep.subr.mxu0 0.0
    %303 = vmatpush1.xpose.msra.mxu0 0.0
    %304 = vmatprep.subr.mxu0 0.0
    %305 = vmatpush1.xpose.msra.mxu0 0.0
    %306 = vmatprep.subr.mxu0 0.0
    %307 = vmatpush1.xpose.msra.mxu0 0.0
    %308 = vmatprep.subr.mxu0 0.0
    %309 = vmatpush1.xpose.msra.mxu0 0.0
    %310 = vmatprep.subr.mxu0 0.0
    %311 = vmatpush1.xpose.msra.mxu0 %v292
    %312 = vmatprep.subr.mxu0 0.0
    %313 = vmatpush1.xpose.msra.mxu0 %v289
    %314 = vmatprep.subr.mxu0 0.0
    %315 = vmatpush1.xpose.msra.mxu0 %v286
    %316 = vmatprep.subr.mxu0 0.0
    %317 = vmatpush1.xpose.msra.mxu0 %v283
    %318 = vmatprep.subr.mxu0 0.0
    %319 = vmatpush1.xpose.msra.mxu0 %v280
    %320 = vmatprep.subr.mxu0 0.0
    %321 = vmatpush1.xpose.msra.mxu0 %v277
    %322 = vmatprep.subr.mxu0 0.0
    %323 = vmatpush1.xpose.msra.mxu0 %v274
    %324 = vmatprep.subr.mxu0 0.0
    %325 = vmatpush1.xpose.msra.mxu0 %v271
    %326 = vmatprep.subr.mxu0 0.0
    %327 = vmatpush2.xpose.msra.mxu0 0.0
    %328 = vmatprep.subr.mxu0 0.0
    %329 = vmatpush2.xpose.msra.mxu0 0.0
    %330 = vmatprep.subr.mxu0 0.0
    %331 = vmatpush2.xpose.msra.mxu0 0.0
    %332 = vmatprep.subr.mxu0 0.0
    %333 = vmatpush2.xpose.msra.mxu0 0.0
    %334 = vmatprep.subr.mxu0 0.0
    %335 = vmatpush2.xpose.msra.mxu0 0.0
    %336 = vmatprep.subr.mxu0 0.0
    %337 = vmatpush2.xpose.msra.mxu0 0.0
    %338 = vmatprep.subr.mxu0 0.0
    %339 = vmatpush2.xpose.msra.mxu0 0.0
    %340 = vmatprep.subr.mxu0 0.0
    %341 = vmatpush2.xpose.msra.mxu0 0.0
    %342 = vmatprep.subr.mxu0 0.0
    %343 = vmatpush2.xpose.msra.mxu0 0.0
    %344 = vmatprep.subr.mxu0 0.0
    %345 = vmatpush2.xpose.msra.mxu0 0.0
    %346 = vmatprep.subr.mxu0 0.0
    %347 = vmatpush2.xpose.msra.mxu0 0.0
    %348 = vmatprep.subr.mxu0 0.0
    %349 = vmatpush2.xpose.msra.mxu0 0.0
    %350 = vmatprep.subr.mxu0 0.0
    %351 = vmatpush2.xpose.msra.mxu0 0.0
    %352 = vmatprep.subr.mxu0 0.0
    %353 = vmatpush2.xpose.msra.mxu0 0.0
    %354 = vmatprep.subr.mxu0 0.0
    %355 = vmatpush2.xpose.msra.mxu0 0.0
    %356 = vmatprep.subr.mxu0 0.0
    %357 = vmatpush2.xpose.msra.mxu0 0.0
    %358 = vmatprep.mubr.f32.mxu0 0.0
    %359 = vmatmul.mubr.f32.gmra.mxu0 %v268
    %v360 = vpop.f32.mrf.mxu0
    %v361 = vadd.f32 0.0, %v360
    %v362 = vpop.f32.mrf.mxu0
    %363 = vdwg.mxu0
    %v364 = vlaneseq
    %v365 = vshrl.u32 %v364, 7
    %v366 = vsub.s32 0, %v365
    %v367 = vrot.slane %v361, %v366
    %v368 = vadd.f32 %v245, %v367
    %v369 = vadd.f32 %v248, %v367
    %v370 = vadd.f32 %v251, %v367
    %v371 = vadd.f32 %v254, %v367
    %v372 = vadd.f32 %v257, %v367
    %v373 = vadd.f32 %v260, %v367
    %v374 = vadd.f32 %v263, %v367
    %v375 = vadd.f32 %v266, %v367
    %vm376 = vcmp.gt.f32.partialorder %v368, 0.0
    %vm377 = vcmp.gt.f32.partialorder %v369, 0.0
    %vm378 = vcmp.gt.f32.partialorder %v370, 0.0
    %vm379 = vcmp.gt.f32.partialorder %v371, 0.0
    %vm380 = vcmp.gt.f32.partialorder %v372, 0.0
    %vm381 = vcmp.gt.f32.partialorder %v373, 0.0
    %vm382 = vcmp.gt.f32.partialorder %v374, 0.0
    %vm383 = vcmp.gt.f32.partialorder %v375, 0.0
    %v384 = vmul.f32 %v368, 0.2
    %v385 = vmul.f32 %v369, 0.2
    %v386 = vmul.f32 %v370, 0.2
    %v387 = vmul.f32 %v371, 0.2
    %v388 = vmul.f32 %v372, 0.2
    %v389 = vmul.f32 %v373, 0.2
    %v390 = vmul.f32 %v374, 0.2
    %v391 = vmul.f32 %v375, 0.2
    %v392 = vsel %vm376, %v368, %v384
    %v393 = vsel %vm377, %v369, %v385
    %v394 = vsel %vm378, %v370, %v386
    %v395 = vsel %vm379, %v371, %v387
    %v396 = vsel %vm380, %v372, %v388
    %v397 = vsel %vm381, %v373, %v389
    %v398 = vsel %vm382, %v374, %v390
    %v399 = vsel %vm383, %v375, %v391
    %v400 = vsel %vm85, %v392, -1e+30
    %v401 = vsel %vm86, %v393, -1e+30
    %v402 = vsel %vm87, %v394, -1e+30
    %v403 = vsel %vm88, %v395, -1e+30
    %v404 = vsel %vm89, %v396, -1e+30
    %v405 = vsel %vm90, %v397, -1e+30
    %v406 = vsel %vm91, %v398, -1e+30
    %v407 = vsel %vm92, %v399, -1e+30
    %v408 = vsel %vm242, %v400, -inf
    %409 = vmax.xlane.f32.xlu0 %v408
    %v410 = vpop.xlane.xlu0 %409
    %v411 = vsel %vm242, %v401, -inf
    %412 = vmax.xlane.f32.xlu0 %v411
    %v413 = vpop.xlane.xlu0 %412
    %v414 = vsel %vm242, %v402, -inf
    %415 = vmax.xlane.f32.xlu0 %v414
    %v416 = vpop.xlane.xlu0 %415
    %v417 = vsel %vm242, %v403, -inf
    %418 = vmax.xlane.f32.xlu0 %v417
    %v419 = vpop.xlane.xlu0 %418
    %v420 = vsel %vm242, %v404, -inf
    %421 = vmax.xlane.f32.xlu0 %v420
    %v422 = vpop.xlane.xlu0 %421
    %v423 = vsel %vm242, %v405, -inf
    %424 = vmax.xlane.f32.xlu0 %v423
    %v425 = vpop.xlane.xlu0 %424
    %v426 = vsel %vm242, %v406, -inf
    %427 = vmax.xlane.f32.xlu0 %v426
    %v428 = vpop.xlane.xlu0 %427
    %v429 = vsel %vm242, %v407, -inf
    %430 = vmax.xlane.f32.xlu0 %v429
    %v431 = vpop.xlane.xlu0 %430
    %v432 = vsub.f32 %v400, %v410
    %v433 = vsub.f32 %v401, %v413
    %v434 = vsub.f32 %v402, %v416
    %v435 = vsub.f32 %v403, %v419
    %v436 = vsub.f32 %v404, %v422
    %v437 = vsub.f32 %v405, %v425
    %v438 = vsub.f32 %v406, %v428
    %v439 = vsub.f32 %v407, %v431
    %v440 = vmul.f32 %v432, 1.442695
    %v441 = vpow.pop %v440
    %v442 = vmul.f32 %v433, 1.442695
    %v443 = vpow.pop %v442
    %v444 = vmul.f32 %v434, 1.442695
    %v445 = vpow.pop %v444
    %v446 = vmul.f32 %v435, 1.442695
    %v447 = vpow.pop %v446
    %v448 = vmul.f32 %v436, 1.442695
    %v449 = vpow.pop %v448
    %v450 = vmul.f32 %v437, 1.442695
    %v451 = vpow.pop %v450
    %v452 = vmul.f32 %v438, 1.442695
    %v453 = vpow.pop %v452
    %v454 = vmul.f32 %v439, 1.442695
    %v455 = vpow.pop %v454
    %v456 = vsel %vm85, %v441, 0.0
    %v457 = vsel %vm86, %v443, 0.0
    %v458 = vsel %vm87, %v445, 0.0
    %v459 = vsel %vm88, %v447, 0.0
    %v460 = vsel %vm89, %v449, 0.0
    %v461 = vsel %vm90, %v451, 0.0
    %v462 = vsel %vm91, %v453, 0.0
    %v463 = vsel %vm92, %v455, 0.0
    %v464 = vsel %vm242, %v456, 0.0
    %465 = vadd.xlane.f32.xlu0 %v464
    %v466 = vpop.xlane.xlu0 %465
    %v467 = vsel %vm242, %v457, 0.0
    %468 = vadd.xlane.f32.xlu0 %v467
    %v469 = vpop.xlane.xlu0 %468
    %v470 = vsel %vm242, %v458, 0.0
    %471 = vadd.xlane.f32.xlu0 %v470
    %v472 = vpop.xlane.xlu0 %471
    %v473 = vsel %vm242, %v459, 0.0
    %474 = vadd.xlane.f32.xlu0 %v473
    %v475 = vpop.xlane.xlu0 %474
    %v476 = vsel %vm242, %v460, 0.0
    %477 = vadd.xlane.f32.xlu0 %v476
    %v478 = vpop.xlane.xlu0 %477
    %v479 = vsel %vm242, %v461, 0.0
    %480 = vadd.xlane.f32.xlu0 %v479
    %v481 = vpop.xlane.xlu0 %480
    %v482 = vsel %vm242, %v462, 0.0
    %483 = vadd.xlane.f32.xlu0 %v482
    %v484 = vpop.xlane.xlu0 %483
    %v485 = vsel %vm242, %v463, 0.0
    %486 = vadd.xlane.f32.xlu0 %v485
    %v487 = vpop.xlane.xlu0 %486
    %v488 = vmax.f32 %v466, 1e-16
    %v489 = vmax.f32 %v469, 1e-16
    %v490 = vmax.f32 %v472, 1e-16
    %v491 = vmax.f32 %v475, 1e-16
    %v492 = vmax.f32 %v478, 1e-16
    %v493 = vmax.f32 %v481, 1e-16
    %v494 = vmax.f32 %v484, 1e-16
    %v495 = vmax.f32 %v487, 1e-16
    %v496 = vrcp.pop %v488
    %v497 = vmul.f32 %v456, %v496
    %v498 = vrcp.pop %v489
    %v499 = vmul.f32 %v457, %v498
    %v500 = vrcp.pop %v490
    %v501 = vmul.f32 %v458, %v500
    %v502 = vrcp.pop %v491
    %v503 = vmul.f32 %v459, %v502
    %v504 = vrcp.pop %v492
    %v505 = vmul.f32 %v460, %v504
    %v506 = vrcp.pop %v493
    %v507 = vmul.f32 %v461, %v506
    %v508 = vrcp.pop %v494
    %v509 = vmul.f32 %v462, %v508
    %v510 = vrcp.pop %v495
    %v511 = vmul.f32 %v463, %v510
    %v513 = vlaneseq
    %v514 = vshrl.u32 %v513, 7
    %v515 = vsub.s32 0, %v514
    %v516 = vrot.slane %v97, %v515
    %v519 = vsel %vm242, %v497, 0
    %v522 = vsel %vm242, %v499, 0
    %v525 = vsel %vm242, %v501, 0
    %v528 = vsel %vm242, %v503, 0
    %v531 = vsel %vm242, %v505, 0
    %v534 = vsel %vm242, %v507, 0
    %v537 = vsel %vm242, %v509, 0
    %v540 = vsel %vm242, %v511, 0
    %542 = vmatprep.subr.mxu0 0.0
    %543 = vmatpush1.msra.mxu0 0.0
    %544 = vmatprep.subr.mxu0 0.0
    %545 = vmatpush1.msra.mxu0 0.0
    %546 = vmatprep.subr.mxu0 0.0
    %547 = vmatpush1.msra.mxu0 0.0
    %548 = vmatprep.subr.mxu0 0.0
    %549 = vmatpush1.msra.mxu0 0.0
    %550 = vmatprep.subr.mxu0 0.0
    %551 = vmatpush1.msra.mxu0 0.0
    %552 = vmatprep.subr.mxu0 0.0
    %553 = vmatpush1.msra.mxu0 0.0
    %554 = vmatprep.subr.mxu0 0.0
    %555 = vmatpush1.msra.mxu0 0.0
    %556 = vmatprep.subr.mxu0 0.0
    %557 = vmatpush1.msra.mxu0 0.0
    %558 = vmatprep.subr.mxu0 0.0
    %559 = vmatpush1.msra.mxu0 %v225
    %560 = vmatprep.subr.mxu0 0.0
    %561 = vmatpush1.msra.mxu0 %v220
    %562 = vmatprep.subr.mxu0 0.0
    %563 = vmatpush1.msra.mxu0 %v215
    %564 = vmatprep.subr.mxu0 0.0
    %565 = vmatpush1.msra.mxu0 %v210
    %566 = vmatprep.subr.mxu0 0.0
    %567 = vmatpush1.msra.mxu0 %v205
    %568 = vmatprep.subr.mxu0 0.0
    %569 = vmatpush1.msra.mxu0 %v200
    %570 = vmatprep.subr.mxu0 0.0
    %571 = vmatpush1.msra.mxu0 %v195
    %572 = vmatprep.subr.mxu0 0.0
    %573 = vmatpush1.msra.mxu0 %v190
    %574 = vmatprep.subr.mxu0 0.0
    %575 = vmatpush2.msra.mxu0 0.0
    %576 = vmatprep.subr.mxu0 0.0
    %577 = vmatpush2.msra.mxu0 0.0
    %578 = vmatprep.subr.mxu0 0.0
    %579 = vmatpush2.msra.mxu0 0.0
    %580 = vmatprep.subr.mxu0 0.0
    %581 = vmatpush2.msra.mxu0 0.0
    %582 = vmatprep.subr.mxu0 0.0
    %583 = vmatpush2.msra.mxu0 0.0
    %584 = vmatprep.subr.mxu0 0.0
    %585 = vmatpush2.msra.mxu0 0.0
    %586 = vmatprep.subr.mxu0 0.0
    %587 = vmatpush2.msra.mxu0 0.0
    %588 = vmatprep.subr.mxu0 0.0
    %589 = vmatpush2.msra.mxu0 0.0
    %590 = vmatprep.subr.mxu0 0.0
    %591 = vmatpush2.msra.mxu0 0.0
    %592 = vmatprep.subr.mxu0 0.0
    %593 = vmatpush2.msra.mxu0 0.0
    %594 = vmatprep.subr.mxu0 0.0
    %595 = vmatpush2.msra.mxu0 0.0
    %596 = vmatprep.subr.mxu0 0.0
    %597 = vmatpush2.msra.mxu0 0.0
    %598 = vmatprep.subr.mxu0 0.0
    %599 = vmatpush2.msra.mxu0 0.0
    %600 = vmatprep.subr.mxu0 0.0
    %601 = vmatpush2.msra.mxu0 0.0
    %602 = vmatprep.subr.mxu0 0.0
    %603 = vmatpush2.msra.mxu0 0.0
    %604 = vmatprep.subr.mxu0 0.0
    %605 = vmatpush2.msra.mxu0 0.0
    %606 = vmatprep.mubr.f32.mxu0 0.0
    %607 = vmatmul.mubr.f32.gmra.mxu0 %v519
    %v608 = vpop.f32.mrf.mxu0
    %v609 = vadd.f32 %v516, %v608
    %v610 = vpop.f32.mrf.mxu0
    %611 = vmatprep.mubr.f32.mxu0 0.0
    %612 = vmatmul.mubr.f32.gmra.mxu0 %v522
    %v613 = vpop.f32.mrf.mxu0
    %v614 = vadd.f32 %v516, %v613
    %v615 = vpop.f32.mrf.mxu0
    %616 = vmatprep.mubr.f32.mxu0 0.0
    %617 = vmatmul.mubr.f32.gmra.mxu0 %v525
    %v618 = vpop.f32.mrf.mxu0
    %v619 = vadd.f32 %v516, %v618
    %v620 = vpop.f32.mrf.mxu0
    %621 = vmatprep.mubr.f32.mxu0 0.0
    %622 = vmatmul.mubr.f32.gmra.mxu0 %v528
    %v623 = vpop.f32.mrf.mxu0
    %v624 = vadd.f32 %v516, %v623
    %v625 = vpop.f32.mrf.mxu0
    %626 = vmatprep.mubr.f32.mxu0 0.0
    %627 = vmatmul.mubr.f32.gmra.mxu0 %v531
    %v628 = vpop.f32.mrf.mxu0
    %v629 = vadd.f32 %v516, %v628
    %v630 = vpop.f32.mrf.mxu0
    %631 = vmatprep.mubr.f32.mxu0 0.0
    %632 = vmatmul.mubr.f32.gmra.mxu0 %v534
    %v633 = vpop.f32.mrf.mxu0
    %v634 = vadd.f32 %v516, %v633
    %v635 = vpop.f32.mrf.mxu0
    %636 = vmatprep.mubr.f32.mxu0 0.0
    %637 = vmatmul.mubr.f32.gmra.mxu0 %v537
    %v638 = vpop.f32.mrf.mxu0
    %v639 = vadd.f32 %v516, %v638
    %v640 = vpop.f32.mrf.mxu0
    %641 = vmatprep.mubr.f32.mxu0 0.0
    %642 = vmatmul.mubr.f32.gmra.mxu0 %v540
    %v643 = vpop.f32.mrf.mxu0
    %v644 = vadd.f32 %v516, %v643
    %v645 = vpop.f32.mrf.mxu0
    %646 = vdwg.mxu0
    %v647 = vld [vmem:[%s6] sm:$0x1]
    %s648 = sld [smem:[#allocation2]]
    %s649 = sld [smem:[#allocation2 + $0x1]]
    %s650 = sld [smem:[#allocation2 + $0x2]]
    %v652 = vlaneseq
    %v653 = vshrl.u32 %v652, 7
    %v654 = vsub.s32 0, %v653
    %v655 = vrot.slane %v647, %v654
    %v657 = vmul.f32 %v609, %v655
    %v658 = vmul.f32 %v614, %v655
    %v659 = vmul.f32 %v619, %v655
    %v660 = vmul.f32 %v624, %v655
    %v661 = vmul.f32 %v629, %v655
    %v662 = vmul.f32 %v634, %v655
    %v663 = vmul.f32 %v639, %v655
    %v664 = vmul.f32 %v644, %v655
    %v665 = vsel %vm242, %v657, 0.0
    %666 = vadd.xlane.f32.xlu0 %v665
    %v667 = vpop.xlane.xlu0 %666
    %v668 = vsel %vm242, %v658, 0.0
    %669 = vadd.xlane.f32.xlu0 %v668
    %v670 = vpop.xlane.xlu0 %669
    %v671 = vsel %vm242, %v659, 0.0
    %672 = vadd.xlane.f32.xlu0 %v671
    %v673 = vpop.xlane.xlu0 %672
    %v674 = vsel %vm242, %v660, 0.0
    %675 = vadd.xlane.f32.xlu0 %v674
    %v676 = vpop.xlane.xlu0 %675
    %v677 = vsel %vm242, %v661, 0.0
    %678 = vadd.xlane.f32.xlu0 %v677
    %v679 = vpop.xlane.xlu0 %678
    %v680 = vsel %vm242, %v662, 0.0
    %681 = vadd.xlane.f32.xlu0 %v680
    %v682 = vpop.xlane.xlu0 %681
    %v683 = vsel %vm242, %v663, 0.0
    %684 = vadd.xlane.f32.xlu0 %v683
    %v685 = vpop.xlane.xlu0 %684
    %v686 = vsel %vm242, %v664, 0.0
    %687 = vadd.xlane.f32.xlu0 %v686
    %v688 = vpop.xlane.xlu0 %687
    %v689 = vsel %vm242, %v647, 0
    %v692 = vsel %vm242, %v609, 0
    %v695 = vsel %vm242, %v614, 0
    %v698 = vsel %vm242, %v619, 0
    %v701 = vsel %vm242, %v624, 0
    %v704 = vsel %vm242, %v629, 0
    %v707 = vsel %vm242, %v634, 0
    %v710 = vsel %vm242, %v639, 0
    %v713 = vsel %vm242, %v644, 0
    %715 = vmatprep.subr.mxu0 0.0
    %716 = vmatpush1.xpose.msra.mxu0 0.0
    %717 = vmatprep.subr.mxu0 0.0
    %718 = vmatpush1.xpose.msra.mxu0 0.0
    %719 = vmatprep.subr.mxu0 0.0
    %720 = vmatpush1.xpose.msra.mxu0 0.0
    %721 = vmatprep.subr.mxu0 0.0
    %722 = vmatpush1.xpose.msra.mxu0 0.0
    %723 = vmatprep.subr.mxu0 0.0
    %724 = vmatpush1.xpose.msra.mxu0 0.0
    %725 = vmatprep.subr.mxu0 0.0
    %726 = vmatpush1.xpose.msra.mxu0 0.0
    %727 = vmatprep.subr.mxu0 0.0
    %728 = vmatpush1.xpose.msra.mxu0 0.0
    %729 = vmatprep.subr.mxu0 0.0
    %730 = vmatpush1.xpose.msra.mxu0 0.0
    %731 = vmatprep.subr.mxu0 0.0
    %732 = vmatpush1.xpose.msra.mxu0 %v713
    %733 = vmatprep.subr.mxu0 0.0
    %734 = vmatpush1.xpose.msra.mxu0 %v710
    %735 = vmatprep.subr.mxu0 0.0
    %736 = vmatpush1.xpose.msra.mxu0 %v707
    %737 = vmatprep.subr.mxu0 0.0
    %738 = vmatpush1.xpose.msra.mxu0 %v704
    %739 = vmatprep.subr.mxu0 0.0
    %740 = vmatpush1.xpose.msra.mxu0 %v701
    %741 = vmatprep.subr.mxu0 0.0
    %742 = vmatpush1.xpose.msra.mxu0 %v698
    %743 = vmatprep.subr.mxu0 0.0
    %744 = vmatpush1.xpose.msra.mxu0 %v695
    %745 = vmatprep.subr.mxu0 0.0
    %746 = vmatpush1.xpose.msra.mxu0 %v692
    %747 = vmatprep.subr.mxu0 0.0
    %748 = vmatpush2.xpose.msra.mxu0 0.0
    %749 = vmatprep.subr.mxu0 0.0
    %750 = vmatpush2.xpose.msra.mxu0 0.0
    %751 = vmatprep.subr.mxu0 0.0
    %752 = vmatpush2.xpose.msra.mxu0 0.0
    %753 = vmatprep.subr.mxu0 0.0
    %754 = vmatpush2.xpose.msra.mxu0 0.0
    %755 = vmatprep.subr.mxu0 0.0
    %756 = vmatpush2.xpose.msra.mxu0 0.0
    %757 = vmatprep.subr.mxu0 0.0
    %758 = vmatpush2.xpose.msra.mxu0 0.0
    %759 = vmatprep.subr.mxu0 0.0
    %760 = vmatpush2.xpose.msra.mxu0 0.0
    %761 = vmatprep.subr.mxu0 0.0
    %762 = vmatpush2.xpose.msra.mxu0 0.0
    %763 = vmatprep.subr.mxu0 0.0
    %764 = vmatpush2.xpose.msra.mxu0 0.0
    %765 = vmatprep.subr.mxu0 0.0
    %766 = vmatpush2.xpose.msra.mxu0 0.0
    %767 = vmatprep.subr.mxu0 0.0
    %768 = vmatpush2.xpose.msra.mxu0 0.0
    %769 = vmatprep.subr.mxu0 0.0
    %770 = vmatpush2.xpose.msra.mxu0 0.0
    %771 = vmatprep.subr.mxu0 0.0
    %772 = vmatpush2.xpose.msra.mxu0 0.0
    %773 = vmatprep.subr.mxu0 0.0
    %774 = vmatpush2.xpose.msra.mxu0 0.0
    %775 = vmatprep.subr.mxu0 0.0
    %776 = vmatpush2.xpose.msra.mxu0 0.0
    %777 = vmatprep.subr.mxu0 0.0
    %778 = vmatpush2.xpose.msra.mxu0 0.0
    %779 = vmatprep.mubr.f32.mxu0 0.0
    %780 = vmatmul.mubr.f32.gmra.mxu0 %v689
    %v781 = vpop.f32.mrf.mxu0
    %v782 = vadd.f32 0.0, %v781
    %v783 = vpop.f32.mrf.mxu0
    %784 = vdwg.mxu0
    %v785 = vstv %s649
    %v786 = vmul.f32 %v785, %v667
    %v787 = vmul.f32 %v785, %v670
    %v788 = vmul.f32 %v785, %v673
    %v789 = vmul.f32 %v785, %v676
    %v790 = vmul.f32 %v785, %v679
    %v791 = vmul.f32 %v785, %v682
    %v792 = vmul.f32 %v785, %v685
    %v793 = vmul.f32 %v785, %v688
    %v794 = vstv %s648
    %v795 = vmul.f32 %v794, %v782
    %v796 = vlaneseq
    %v797 = vshrl.u32 %v796, 7
    %v798 = vsub.s32 0, %v797
    %v799 = vrot.slane %v795, %v798
    %v800 = vadd.f32 %v786, %v799
    %v801 = vadd.f32 %v787, %v799
    %v802 = vadd.f32 %v788, %v799
    %v803 = vadd.f32 %v789, %v799
    %v804 = vadd.f32 %v790, %v799
    %v805 = vadd.f32 %v791, %v799
    %v806 = vadd.f32 %v792, %v799
    %v807 = vadd.f32 %v793, %v799
    %vm808 = vcmp.gt.f32.partialorder %v800, 0.0
    %vm809 = vcmp.gt.f32.partialorder %v801, 0.0
    %vm810 = vcmp.gt.f32.partialorder %v802, 0.0
    %vm811 = vcmp.gt.f32.partialorder %v803, 0.0
    %vm812 = vcmp.gt.f32.partialorder %v804, 0.0
    %vm813 = vcmp.gt.f32.partialorder %v805, 0.0
    %vm814 = vcmp.gt.f32.partialorder %v806, 0.0
    %vm815 = vcmp.gt.f32.partialorder %v807, 0.0
    %v816 = vmul.f32 %v800, 0.2
    %v817 = vmul.f32 %v801, 0.2
    %v818 = vmul.f32 %v802, 0.2
    %v819 = vmul.f32 %v803, 0.2
    %v820 = vmul.f32 %v804, 0.2
    %v821 = vmul.f32 %v805, 0.2
    %v822 = vmul.f32 %v806, 0.2
    %v823 = vmul.f32 %v807, 0.2
    %v824 = vsel %vm808, %v800, %v816
    %v825 = vsel %vm809, %v801, %v817
    %v826 = vsel %vm810, %v802, %v818
    %v827 = vsel %vm811, %v803, %v819
    %v828 = vsel %vm812, %v804, %v820
    %v829 = vsel %vm813, %v805, %v821
    %v830 = vsel %vm814, %v806, %v822
    %v831 = vsel %vm815, %v807, %v823
    %v832 = vsel %vm85, %v824, -1e+30
    %v833 = vsel %vm86, %v825, -1e+30
    %v834 = vsel %vm87, %v826, -1e+30
    %v835 = vsel %vm88, %v827, -1e+30
    %v836 = vsel %vm89, %v828, -1e+30
    %v837 = vsel %vm90, %v829, -1e+30
    %v838 = vsel %vm91, %v830, -1e+30
    %v839 = vsel %vm92, %v831, -1e+30
    %v840 = vsel %vm242, %v832, -inf
    %841 = vmax.xlane.f32.xlu0 %v840
    %v842 = vpop.xlane.xlu0 %841
    %v843 = vsel %vm242, %v833, -inf
    %844 = vmax.xlane.f32.xlu0 %v843
    %v845 = vpop.xlane.xlu0 %844
    %v846 = vsel %vm242, %v834, -inf
    %847 = vmax.xlane.f32.xlu0 %v846
    %v848 = vpop.xlane.xlu0 %847
    %v849 = vsel %vm242, %v835, -inf
    %850 = vmax.xlane.f32.xlu0 %v849
    %v851 = vpop.xlane.xlu0 %850
    %v852 = vsel %vm242, %v836, -inf
    %853 = vmax.xlane.f32.xlu0 %v852
    %v854 = vpop.xlane.xlu0 %853
    %v855 = vsel %vm242, %v837, -inf
    %856 = vmax.xlane.f32.xlu0 %v855
    %v857 = vpop.xlane.xlu0 %856
    %v858 = vsel %vm242, %v838, -inf
    %859 = vmax.xlane.f32.xlu0 %v858
    %v860 = vpop.xlane.xlu0 %859
    %v861 = vsel %vm242, %v839, -inf
    %862 = vmax.xlane.f32.xlu0 %v861
    %v863 = vpop.xlane.xlu0 %862
    %v864 = vsub.f32 %v832, %v842
    %v865 = vsub.f32 %v833, %v845
    %v866 = vsub.f32 %v834, %v848
    %v867 = vsub.f32 %v835, %v851
    %v868 = vsub.f32 %v836, %v854
    %v869 = vsub.f32 %v837, %v857
    %v870 = vsub.f32 %v838, %v860
    %v871 = vsub.f32 %v839, %v863
    %v872 = vmul.f32 %v864, 1.442695
    %v873 = vpow.pop %v872
    %v874 = vmul.f32 %v865, 1.442695
    %v875 = vpow.pop %v874
    %v876 = vmul.f32 %v866, 1.442695
    %v877 = vpow.pop %v876
    %v878 = vmul.f32 %v867, 1.442695
    %v879 = vpow.pop %v878
    %v880 = vmul.f32 %v868, 1.442695
    %v881 = vpow.pop %v880
    %v882 = vmul.f32 %v869, 1.442695
    %v883 = vpow.pop %v882
    %v884 = vmul.f32 %v870, 1.442695
    %v885 = vpow.pop %v884
    %v886 = vmul.f32 %v871, 1.442695
    %v887 = vpow.pop %v886
    %v888 = vsel %vm85, %v873, 0.0
    %v889 = vsel %vm86, %v875, 0.0
    %v890 = vsel %vm87, %v877, 0.0
    %v891 = vsel %vm88, %v879, 0.0
    %v892 = vsel %vm89, %v881, 0.0
    %v893 = vsel %vm90, %v883, 0.0
    %v894 = vsel %vm91, %v885, 0.0
    %v895 = vsel %vm92, %v887, 0.0
    %v896 = vsel %vm242, %v888, 0.0
    %897 = vadd.xlane.f32.xlu0 %v896
    %v898 = vpop.xlane.xlu0 %897
    %v899 = vsel %vm242, %v889, 0.0
    %900 = vadd.xlane.f32.xlu0 %v899
    %v901 = vpop.xlane.xlu0 %900
    %v902 = vsel %vm242, %v890, 0.0
    %903 = vadd.xlane.f32.xlu0 %v902
    %v904 = vpop.xlane.xlu0 %903
    %v905 = vsel %vm242, %v891, 0.0
    %906 = vadd.xlane.f32.xlu0 %v905
    %v907 = vpop.xlane.xlu0 %906
    %v908 = vsel %vm242, %v892, 0.0
    %909 = vadd.xlane.f32.xlu0 %v908
    %v910 = vpop.xlane.xlu0 %909
    %v911 = vsel %vm242, %v893, 0.0
    %912 = vadd.xlane.f32.xlu0 %v911
    %v913 = vpop.xlane.xlu0 %912
    %v914 = vsel %vm242, %v894, 0.0
    %915 = vadd.xlane.f32.xlu0 %v914
    %v916 = vpop.xlane.xlu0 %915
    %v917 = vsel %vm242, %v895, 0.0
    %918 = vadd.xlane.f32.xlu0 %v917
    %v919 = vpop.xlane.xlu0 %918
    %v920 = vmax.f32 %v898, 1e-16
    %v921 = vmax.f32 %v901, 1e-16
    %v922 = vmax.f32 %v904, 1e-16
    %v923 = vmax.f32 %v907, 1e-16
    %v924 = vmax.f32 %v910, 1e-16
    %v925 = vmax.f32 %v913, 1e-16
    %v926 = vmax.f32 %v916, 1e-16
    %v927 = vmax.f32 %v919, 1e-16
    %v928 = vrcp.pop %v920
    %v929 = vmul.f32 %v888, %v928
    %v930 = vrcp.pop %v921
    %v931 = vmul.f32 %v889, %v930
    %v932 = vrcp.pop %v922
    %v933 = vmul.f32 %v890, %v932
    %v934 = vrcp.pop %v923
    %v935 = vmul.f32 %v891, %v934
    %v936 = vrcp.pop %v924
    %v937 = vmul.f32 %v892, %v936
    %v938 = vrcp.pop %v925
    %v939 = vmul.f32 %v893, %v938
    %v940 = vrcp.pop %v926
    %v941 = vmul.f32 %v894, %v940
    %v942 = vrcp.pop %v927
    %v943 = vmul.f32 %v895, %v942
    %v944 = vlaneseq
    %v945 = vshrl.u32 %v944, 7
    %v946 = vsub.s32 0, %v945
    %v947 = vrot.slane %v782, %v946
    %v948 = vmul.f32 %v929, %v947
    %v949 = vmul.f32 %v931, %v947
    %v950 = vmul.f32 %v933, %v947
    %v951 = vmul.f32 %v935, %v947
    %v952 = vmul.f32 %v937, %v947
    %v953 = vmul.f32 %v939, %v947
    %v954 = vmul.f32 %v941, %v947
    %v955 = vmul.f32 %v943, %v947
    %v956 = vsel %vm242, %v948, 0.0
    %957 = vadd.xlane.f32.xlu0 %v956
    %v958 = vpop.xlane.xlu0 %957
    %v959 = vsel %vm242, %v949, 0.0
    %960 = vadd.xlane.f32.xlu0 %v959
    %v961 = vpop.xlane.xlu0 %960
    %v962 = vsel %vm242, %v950, 0.0
    %963 = vadd.xlane.f32.xlu0 %v962
    %v964 = vpop.xlane.xlu0 %963
    %v965 = vsel %vm242, %v951, 0.0
    %966 = vadd.xlane.f32.xlu0 %v965
    %v967 = vpop.xlane.xlu0 %966
    %v968 = vsel %vm242, %v952, 0.0
    %969 = vadd.xlane.f32.xlu0 %v968
    %v970 = vpop.xlane.xlu0 %969
    %v971 = vsel %vm242, %v953, 0.0
    %972 = vadd.xlane.f32.xlu0 %v971
    %v973 = vpop.xlane.xlu0 %972
    %v974 = vsel %vm242, %v954, 0.0
    %975 = vadd.xlane.f32.xlu0 %v974
    %v976 = vpop.xlane.xlu0 %975
    %v977 = vsel %vm242, %v955, 0.0
    %978 = vadd.xlane.f32.xlu0 %v977
    %v979 = vpop.xlane.xlu0 %978
    %v980 = vstv %s650
    %v981 = vadd.f32 %v958, %v980
    %v982 = vadd.f32 %v961, %v980
    %v983 = vadd.f32 %v964, %v980
    %v984 = vadd.f32 %v967, %v980
    %v985 = vadd.f32 %v970, %v980
    %v986 = vadd.f32 %v973, %v980
    %v987 = vadd.f32 %v976, %v980
    %v988 = vadd.f32 %v979, %v980
    %v989 = vsel %vm242, %v609, %v981
    %v990 = vsel %vm242, %v614, %v982
    %v991 = vsel %vm242, %v619, %v983
    %v992 = vsel %vm242, %v624, %v984
    %v993 = vsel %vm242, %v629, %v985
    %v994 = vsel %vm242, %v634, %v986
    %v995 = vsel %vm242, %v639, %v987
    %v996 = vsel %vm242, %v644, %v988
    %997 = vst [vmem:[%s8] sm:$0xff] %v989
    %998 = vst [vmem:[%s8 + $0x8] sm:$0xff] %v990
    %999 = vst [vmem:[%s8 + $0x10] sm:$0xff] %v991
    %1000 = vst [vmem:[%s8 + $0x18] sm:$0xff] %v992
    %1001 = vst [vmem:[%s8 + $0x20] sm:$0xff] %v993
    %1002 = vst [vmem:[%s8 + $0x28] sm:$0xff] %v994
    %1003 = vst [vmem:[%s8 + $0x30] sm:$0xff] %v995
    %1004 = vst [vmem:[%s8 + $0x38] sm:$0xff] %v996
    // Predicated region
    $region38: #{network_forward.3} parent=1 // pred_check
      _
    $region39: #{network_forward.3} parent=1 // pred_check_branch
      %1006 = sbr.rel (0) target = $region41
    $region40: #{network_forward.3} parent=1 // pred_region
      _
    $region41: #{network_forward.3} parent=1 // pred_fallthru
      _
    // Predicated region
    $region42: #{network_forward.3} parent=1 // pred_check
      _
    $region43: #{network_forward.3} parent=1 // pred_check_branch
      %1008 = sbr.rel (0) target = $region45
    $region44: #{network_forward.3} parent=1 // pred_region
      _
    $region45: #{network_forward.3} parent=1 // pred_fallthru
      _
    %1009 = vsyncpa [#allocation3], 1

// kernel: network_forward.4
$region0: #{network_forward.4}
  #allocation0 [shape = 'u32[]', space=smem, size = 0x4, offset = 0x4, fixed_abs, tag = 'smem constant byte address 0x4 - core index']
  #allocation1 [shape = 'u32[144,128]{1,0:T(1,128)}', space=vmem, size = 0x12000, scoped, tag = 'internal scratch']
  %s0 = inlined_call_operand.vmem [shape: f32[64,64], index: 0, kind: input, shape index: {}]
  %s1 = inlined_call_operand.vmem [shape: f32[64,1], index: 1, kind: input, shape index: {}]
  %s2 = inlined_call_operand.vmem [shape: f32[1,64], index: 2, kind: input, shape index: {}]
  %s3 = inlined_call_operand.vmem [shape: f32[64,128], index: 3, kind: input, shape index: {}]
  %s4 = inlined_call_operand.vmem [shape: f32[64,64], index: 4, kind: input, shape index: {}]
  %s5 = inlined_call_operand.vmem [shape: f32[1,64], index: 5, kind: input, shape index: {}]
  %s6 = inlined_call_operand.vmem [shape: f32[1,64], index: 6, kind: input, shape index: {}]
  %s7 = inlined_call_operand.vmem [shape: f32[1,64], index: 7, kind: input, shape index: {}]
  %s8 = inlined_call_operand.vmem [shape: f32[1,64], index: 8, kind: input, shape index: {}]
  %s9 = inlined_call_operand.vmem [shape: f32[3], index: 9, kind: input, shape index: {}]
  %s10 = inlined_call_operand.vmem [shape: f32[64,128], index: 10, kind: output, shape index: {}]
  %s11 = sld [smem:[#allocation0]]
  $region54: #{network_forward.4} parent=0
    _
  %s13 = ssub.s32 1, %s11
  %s14 = scalar_select 0, %s13, %s11
  $region1: #{network_forward.4} parent=0
    #allocation2 [shape = 'u8[512]{0}', space=smem, size = 0x200, scoped, tag = 'input window, operand 9, single buffered']
    #allocation3 [shape = 's32[1]{0}', space=sflag, size = 0x4, scoped, tag = 'scoped memory for network_forward.4']
    %15 = vsyncpa [#allocation3], 0
    // Predicated region
    $region2: #{network_forward.4} parent=1 // pred_check
      _
    $region3: #{network_forward.4} parent=1 // pred_check_branch
      %17 = sbr.rel (0) target = $region5
    $region4: #{network_forward.4} parent=1 // pred_region
      _
    $region5: #{network_forward.4} parent=1 // pred_fallthru
      _
    // Predicated region
    $region6: #{network_forward.4} parent=1 // pred_check
      _
    $region7: #{network_forward.4} parent=1 // pred_check_branch
      %19 = sbr.rel (0) target = $region9
    $region8: #{network_forward.4} parent=1 // pred_region
      _
    $region9: #{network_forward.4} parent=1 // pred_fallthru
      _
    // Predicated region
    $region10: #{network_forward.4} parent=1 // pred_check
      _
    $region11: #{network_forward.4} parent=1 // pred_check_branch
      %21 = sbr.rel (0) target = $region13
    $region12: #{network_forward.4} parent=1 // pred_region
      _
    $region13: #{network_forward.4} parent=1 // pred_fallthru
      _
    // Predicated region
    $region14: #{network_forward.4} parent=1 // pred_check
      _
    $region15: #{network_forward.4} parent=1 // pred_check_branch
      %23 = sbr.rel (0) target = $region17
    $region16: #{network_forward.4} parent=1 // pred_region
      _
    $region17: #{network_forward.4} parent=1 // pred_fallthru
      _
    // Predicated region
    $region18: #{network_forward.4} parent=1 // pred_check
      _
    $region19: #{network_forward.4} parent=1 // pred_check_branch
      %25 = sbr.rel (0) target = $region21
    $region20: #{network_forward.4} parent=1 // pred_region
      _
    $region21: #{network_forward.4} parent=1 // pred_fallthru
      _
    // Predicated region
    $region22: #{network_forward.4} parent=1 // pred_check
      _
    $region23: #{network_forward.4} parent=1 // pred_check_branch
      %27 = sbr.rel (0) target = $region25
    $region24: #{network_forward.4} parent=1 // pred_region
      _
    $region25: #{network_forward.4} parent=1 // pred_fallthru
      _
    // Predicated region
    $region26: #{network_forward.4} parent=1 // pred_check
      _
    $region27: #{network_forward.4} parent=1 // pred_check_branch
      %29 = sbr.rel (0) target = $region29
    $region28: #{network_forward.4} parent=1 // pred_region
      _
    $region29: #{network_forward.4} parent=1 // pred_fallthru
      _
    // Predicated region
    $region30: #{network_forward.4} parent=1 // pred_check
      _
    $region31: #{network_forward.4} parent=1 // pred_check_branch
      %31 = sbr.rel (0) target = $region33
    $region32: #{network_forward.4} parent=1 // pred_region
      _
    $region33: #{network_forward.4} parent=1 // pred_fallthru
      _
    // Predicated region
    $region34: #{network_forward.4} parent=1 // pred_check
      _
    $region35: #{network_forward.4} parent=1 // pred_check_branch
      %33 = sbr.rel (0) target = $region37
    $region36: #{network_forward.4} parent=1 // pred_region
      _
    $region37: #{network_forward.4} parent=1 // pred_fallthru
      _
    // Predicated region
    $region38: #{network_forward.4} parent=1 // pred_check
      _
    $region39: #{network_forward.4} parent=1 // pred_check_branch
      %35 = sbr.rel (0) target = $region41
    $region40: #{network_forward.4} parent=1 // pred_region
      %s37 = ssub.s32 16, 16
      %38 = vsyncadd [#allocation3], %s37
      %s40 = sshll.u32 %s9, 4
      %s41 = int_to_ptr.vmem [resolvable:$true] %s40
      %43 = dma.vmem_to_smem %s41, 16, [#allocation2], [#allocation3]
    $region41: #{network_forward.4} parent=1 // pred_fallthru
      _
    // Predicated region
    $region42: #{network_forward.4} parent=1 // pred_check
      _
    $region43: #{network_forward.4} parent=1 // pred_check_branch
      %45 = sbr.rel (0) target = $region45
    $region44: #{network_forward.4} parent=1 // pred_region
      %46 = dma.done [#allocation3], 16
    $region45: #{network_forward.4} parent=1 // pred_fallthru
      _
    %47 = sfence
    %v48 = vld [vmem:[%s0] sm:$0xff]
    %v49 = vld [vmem:[%s0 + $0x8] sm:$0xff]
    %v50 = vld [vmem:[%s0 + $0x10] sm:$0xff]
    %v51 = vld [vmem:[%s0 + $0x18] sm:$0xff]
    %v52 = vld [vmem:[%s0 + $0x20] sm:$0xff]
    %v53 = vld [vmem:[%s0 + $0x28] sm:$0xff]
    %v54 = vld [vmem:[%s0 + $0x30] sm:$0xff]
    %v55 = vld [vmem:[%s0 + $0x38] sm:$0xff]
    %v56 = vld [vmem:[%s1] sm:$0xff]
    %v57 = vld [vmem:[%s1 + $0x8] sm:$0xff]
    %v58 = vld [vmem:[%s1 + $0x10] sm:$0xff]
    %v59 = vld [vmem:[%s1 + $0x18] sm:$0xff]
    %v60 = vld [vmem:[%s1 + $0x20] sm:$0xff]
    %v61 = vld [vmem:[%s1 + $0x28] sm:$0xff]
    %v62 = vld [vmem:[%s1 + $0x30] sm:$0xff]
    %v63 = vld [vmem:[%s1 + $0x38] sm:$0xff]
    %v64 = vld [vmem:[%s2] sm:$0x1]
    %v65 = vld [vmem:[%s3] sm:$0xff]
    %v66 = vld [vmem:[%s3 + $0x8] sm:$0xff]
    %v67 = vld [vmem:[%s3 + $0x10] sm:$0xff]
    %v68 = vld [vmem:[%s3 + $0x18] sm:$0xff]
    %v69 = vld [vmem:[%s3 + $0x20] sm:$0xff]
    %v70 = vld [vmem:[%s3 + $0x28] sm:$0xff]
    %v71 = vld [vmem:[%s3 + $0x30] sm:$0xff]
    %v72 = vld [vmem:[%s3 + $0x38] sm:$0xff]
    %v73 = vsub.f32 0.0, %v65
    %v74 = vsub.f32 0.0, %v66
    %v75 = vsub.f32 0.0, %v67
    %v76 = vsub.f32 0.0, %v68
    %v77 = vsub.f32 0.0, %v69
    %v78 = vsub.f32 0.0, %v70
    %v79 = vsub.f32 0.0, %v71
    %v80 = vsub.f32 0.0, %v72
    %v81 = vmul.f32 %v73, 1.442695
    %v82 = vpow.pop %v81
    %v83 = vmul.f32 %v74, 1.442695
    %v84 = vpow.pop %v83
    %v85 = vmul.f32 %v75, 1.442695
    %v86 = vpow.pop %v85
    %v87 = vmul.f32 %v76, 1.442695
    %v88 = vpow.pop %v87
    %v89 = vmul.f32 %v77, 1.442695
    %v90 = vpow.pop %v89
    %v91 = vmul.f32 %v78, 1.442695
    %v92 = vpow.pop %v91
    %v93 = vmul.f32 %v79, 1.442695
    %v94 = vpow.pop %v93
    %v95 = vmul.f32 %v80, 1.442695
    %v96 = vpow.pop %v95
    %v97 = vadd.f32 %v82, 1.0
    %v98 = vadd.f32 %v84, 1.0
    %v99 = vadd.f32 %v86, 1.0
    %v100 = vadd.f32 %v88, 1.0
    %v101 = vadd.f32 %v90, 1.0
    %v102 = vadd.f32 %v92, 1.0
    %v103 = vadd.f32 %v94, 1.0
    %v104 = vadd.f32 %v96, 1.0
    %v105 = vrcp.pop %v97
    %v106 = vmul.f32 1.0, %v105
    %v107 = vrcp.pop %v98
    %v108 = vmul.f32 1.0, %v107
    %v109 = vrcp.pop %v99
    %v110 = vmul.f32 1.0, %v109
    %v111 = vrcp.pop %v100
    %v112 = vmul.f32 1.0, %v111
    %v113 = vrcp.pop %v101
    %v114 = vmul.f32 1.0, %v113
    %v115 = vrcp.pop %v102
    %v116 = vmul.f32 1.0, %v115
    %v117 = vrcp.pop %v103
    %v118 = vmul.f32 1.0, %v117
    %v119 = vrcp.pop %v104
    %v120 = vmul.f32 1.0, %v119
    %129 = vrot.lane.b32.xlu0 %v106, 64
    %v130 = vpop.permute.xlu0 %129
    %131 = vrot.lane.b32.xlu0 %v108, 64
    %v132 = vpop.permute.xlu0 %131
    %133 = vrot.lane.b32.xlu0 %v110, 64
    %v134 = vpop.permute.xlu0 %133
    %135 = vrot.lane.b32.xlu0 %v112, 64
    %v136 = vpop.permute.xlu0 %135
    %137 = vrot.lane.b32.xlu0 %v114, 64
    %v138 = vpop.permute.xlu0 %137
    %139 = vrot.lane.b32.xlu0 %v116, 64
    %v140 = vpop.permute.xlu0 %139
    %141 = vrot.lane.b32.xlu0 %v118, 64
    %v142 = vpop.permute.xlu0 %141
    %143 = vrot.lane.b32.xlu0 %v120, 64
    %v144 = vpop.permute.xlu0 %143
    %v153 = vmul.f32 %v65, %v130
    %v154 = vmul.f32 %v66, %v132
    %v155 = vmul.f32 %v67, %v134
    %v156 = vmul.f32 %v68, %v136
    %v157 = vmul.f32 %v69, %v138
    %v158 = vmul.f32 %v70, %v140
    %v159 = vmul.f32 %v71, %v142
    %v160 = vmul.f32 %v72, %v144
    %162 = vset.pattern.permute.xlu0 0
    %163 = vperm.xlu0 %162, %v56
    %v164 = vpop.permute.xlu0 %163
    %167 = vset.pattern.permute.xlu0 0
    %168 = vperm.xlu0 %167, %v57
    %v169 = vpop.permute.xlu0 %168
    %172 = vset.pattern.permute.xlu0 0
    %173 = vperm.xlu0 %172, %v58
    %v174 = vpop.permute.xlu0 %173
    %177 = vset.pattern.permute.xlu0 0
    %178 = vperm.xlu0 %177, %v59
    %v179 = vpop.permute.xlu0 %178
    %182 = vset.pattern.permute.xlu0 0
    %183 = vperm.xlu0 %182, %v60
    %v184 = vpop.permute.xlu0 %183
    %187 = vset.pattern.permute.xlu0 0
    %188 = vperm.xlu0 %187, %v61
    %v189 = vpop.permute.xlu0 %188
    %192 = vset.pattern.permute.xlu0 0
    %193 = vperm.xlu0 %192, %v62
    %v194 = vpop.permute.xlu0 %193
    %197 = vset.pattern.permute.xlu0 0
    %198 = vperm.xlu0 %197, %v63
    %v199 = vpop.permute.xlu0 %198
    %v201 = vmul.f32 %v153, %v164
    %v202 = vmul.f32 %v154, %v169
    %v203 = vmul.f32 %v155, %v174
    %v204 = vmul.f32 %v156, %v179
    %v205 = vmul.f32 %v157, %v184
    %v206 = vmul.f32 %v158, %v189
    %v207 = vmul.f32 %v159, %v194
    %v208 = vmul.f32 %v160, %v199
    %v209 = vlaneseq
    %v210 = vshrl.u32 %v209, 7
    %v211 = vadd.s32 %v210, 8
    %v212 = vadd.s32 %v210, 16
    %v213 = vadd.s32 %v210, 24
    %v214 = vadd.s32 %v210, 32
    %v215 = vadd.s32 %v210, 40
    %v216 = vadd.s32 %v210, 48
    %v217 = vadd.s32 %v210, 56
    %v218 = vlaneseq
    %v219 = vand.u32 %v218, 127
    %vm220 = vcmp.eq.s32.totalorder %v210, %v219
    %vm221 = vcmp.eq.s32.totalorder %v211, %v219
    %vm222 = vcmp.eq.s32.totalorder %v212, %v219
    %vm223 = vcmp.eq.s32.totalorder %v213, %v219
    %vm224 = vcmp.eq.s32.totalorder %v214, %v219
    %vm225 = vcmp.eq.s32.totalorder %v215, %v219
    %vm226 = vcmp.eq.s32.totalorder %v216, %v219
    %vm227 = vcmp.eq.s32.totalorder %v217, %v219
    %v229 = vlaneseq
    %v230 = vshrl.u32 %v229, 7
    %v231 = vsub.s32 0, %v230
    %v232 = vrot.slane %v64, %v231
    %v234 = vmul.f32 %v164, %v232
    %v235 = vmul.f32 %v169, %v232
    %v236 = vmul.f32 %v174, %v232
    %v237 = vmul.f32 %v179, %v232
    %v238 = vmul.f32 %v184, %v232
    %v239 = vmul.f32 %v189, %v232
    %v240 = vmul.f32 %v194, %v232
    %v241 = vmul.f32 %v199, %v232
    %v242 = vmul.f32 %v48, %v234
    %v243 = vmul.f32 %v49, %v235
    %v244 = vmul.f32 %v50, %v236
    %v245 = vmul.f32 %v51, %v237
    %v246 = vmul.f32 %v52, %v238
    %v247 = vmul.f32 %v53, %v239
    %v248 = vmul.f32 %v54, %v240
    %v249 = vmul.f32 %v55, %v241
    %v250 = vsel %vm220, %v164, 0.0
    %v251 = vsel %vm221, %v169, 0.0
    %v252 = vsel %vm222, %v174, 0.0
    %v253 = vsel %vm223, %v179, 0.0
    %v254 = vsel %vm224, %v184, 0.0
    %v255 = vsel %vm225, %v189, 0.0
    %v256 = vsel %vm226, %v194, 0.0
    %v257 = vsel %vm227, %v199, 0.0
    %v258 = vadd.f32 %v242, %v250
    %v259 = vadd.f32 %v243, %v251
    %v260 = vadd.f32 %v244, %v252
    %v261 = vadd.f32 %v245, %v253
    %v262 = vadd.f32 %v246, %v254
    %v263 = vadd.f32 %v247, %v255
    %v264 = vadd.f32 %v248, %v256
    %v265 = vadd.f32 %v249, %v257
    %vm266 = vcmask 523264
    %v268 = vsel %vm266, %v258, 0
    %v271 = vsel %vm266, %v259, 0
    %v274 = vsel %vm266, %v260, 0
    %v277 = vsel %vm266, %v261, 0
    %v280 = vsel %vm266, %v262, 0
    %v283 = vsel %vm266, %v263, 0
    %v286 = vsel %vm266, %v264, 0
    %v289 = vsel %vm266, %v265, 0
    %291 = vmatprep.subr.mxu0 0.0
    %292 = vmatpush1.msra.mxu0 0.0
    %293 = vmatprep.subr.mxu0 0.0
    %294 = vmatpush1.msra.mxu0 0.0
    %295 = vmatprep.subr.mxu0 0.0
    %296 = vmatpush1.msra.mxu0 0.0
    %297 = vmatprep.subr.mxu0 0.0
    %298 = vmatpush1.msra.mxu0 0.0
    %299 = vmatprep.subr.mxu0 0.0
    %300 = vmatpush1.msra.mxu0 0.0
    %301 = vmatprep.subr.mxu0 0.0
    %302 = vmatpush1.msra.mxu0 0.0
    %303 = vmatprep.subr.mxu0 0.0
    %304 = vmatpush1.msra.mxu0 0.0
    %305 = vmatprep.subr.mxu0 0.0
    %306 = vmatpush1.msra.mxu0 0.0
    %307 = vmatprep.subr.mxu0 0.0
    %308 = vmatpush1.msra.mxu0 %v265
    %309 = vmatprep.subr.mxu0 0.0
    %310 = vmatpush1.msra.mxu0 %v264
    %311 = vmatprep.subr.mxu0 0.0
    %312 = vmatpush1.msra.mxu0 %v263
    %313 = vmatprep.subr.mxu0 0.0
    %314 = vmatpush1.msra.mxu0 %v262
    %315 = vmatprep.subr.mxu0 0.0
    %316 = vmatpush1.msra.mxu0 %v261
    %317 = vmatprep.subr.mxu0 0.0
    %318 = vmatpush1.msra.mxu0 %v260
    %319 = vmatprep.subr.mxu0 0.0
    %320 = vmatpush1.msra.mxu0 %v259
    %321 = vmatprep.subr.mxu0 0.0
    %322 = vmatpush1.msra.mxu0 %v258
    %323 = vmatprep.subr.mxu0 0.0
    %324 = vmatpush2.msra.mxu0 0.0
    %325 = vmatprep.subr.mxu0 0.0
    %326 = vmatpush2.msra.mxu0 0.0
    %327 = vmatprep.subr.mxu0 0.0
    %328 = vmatpush2.msra.mxu0 0.0
    %329 = vmatprep.subr.mxu0 0.0
    %330 = vmatpush2.msra.mxu0 0.0
    %331 = vmatprep.subr.mxu0 0.0
    %332 = vmatpush2.msra.mxu0 0.0
    %333 = vmatprep.subr.mxu0 0.0
    %334 = vmatpush2.msra.mxu0 0.0
    %335 = vmatprep.subr.mxu0 0.0
    %336 = vmatpush2.msra.mxu0 0.0
    %337 = vmatprep.subr.mxu0 0.0
    %338 = vmatpush2.msra.mxu0 0.0
    %339 = vmatprep.subr.mxu0 0.0
    %340 = vmatpush2.msra.mxu0 0.0
    %341 = vmatprep.subr.mxu0 0.0
    %342 = vmatpush2.msra.mxu0 0.0
    %343 = vmatprep.subr.mxu0 0.0
    %344 = vmatpush2.msra.mxu0 0.0
    %345 = vmatprep.subr.mxu0 0.0
    %346 = vmatpush2.msra.mxu0 0.0
    %347 = vmatprep.subr.mxu0 0.0
    %348 = vmatpush2.msra.mxu0 0.0
    %349 = vmatprep.subr.mxu0 0.0
    %350 = vmatpush2.msra.mxu0 0.0
    %351 = vmatprep.subr.mxu0 0.0
    %352 = vmatpush2.msra.mxu0 0.0
    %353 = vmatprep.subr.mxu0 0.0
    %354 = vmatpush2.msra.mxu0 0.0
    %355 = vmatprep.mubr.f32.mxu0 0.0
    %356 = vmatmul.mubr.f32.gmra.mxu0 %v268
    %v357 = vpop.f32.mrf.mxu0
    %v358 = vadd.f32 0.0, %v357
    %v359 = vpop.f32.mrf.mxu0
    %360 = vmatprep.mubr.f32.mxu0 0.0
    %361 = vmatmul.mubr.f32.gmra.mxu0 %v271
    %v362 = vpop.f32.mrf.mxu0
    %v363 = vadd.f32 0.0, %v362
    %v364 = vpop.f32.mrf.mxu0
    %365 = vmatprep.mubr.f32.mxu0 0.0
    %366 = vmatmul.mubr.f32.gmra.mxu0 %v274
    %v367 = vpop.f32.mrf.mxu0
    %v368 = vadd.f32 0.0, %v367
    %v369 = vpop.f32.mrf.mxu0
    %370 = vmatprep.mubr.f32.mxu0 0.0
    %371 = vmatmul.mubr.f32.gmra.mxu0 %v277
    %v372 = vpop.f32.mrf.mxu0
    %v373 = vadd.f32 0.0, %v372
    %v374 = vpop.f32.mrf.mxu0
    %375 = vmatprep.mubr.f32.mxu0 0.0
    %376 = vmatmul.mubr.f32.gmra.mxu0 %v280
    %v377 = vpop.f32.mrf.mxu0
    %v378 = vadd.f32 0.0, %v377
    %v379 = vpop.f32.mrf.mxu0
    %380 = vmatprep.mubr.f32.mxu0 0.0
    %381 = vmatmul.mubr.f32.gmra.mxu0 %v283
    %v382 = vpop.f32.mrf.mxu0
    %v383 = vadd.f32 0.0, %v382
    %v384 = vpop.f32.mrf.mxu0
    %385 = vmatprep.mubr.f32.mxu0 0.0
    %386 = vmatmul.mubr.f32.gmra.mxu0 %v286
    %v387 = vpop.f32.mrf.mxu0
    %v388 = vadd.f32 0.0, %v387
    %v389 = vpop.f32.mrf.mxu0
    %390 = vmatprep.mubr.f32.mxu0 0.0
    %391 = vmatmul.mubr.f32.gmra.mxu0 %v289
    %v392 = vpop.f32.mrf.mxu0
    %v393 = vadd.f32 0.0, %v392
    %v394 = vpop.f32.mrf.mxu0
    %395 = vdwg.mxu0
    %v396 = vsel %vm220, 0.0, %v358
    %v397 = vsel %vm221, 0.0, %v363
    %v398 = vsel %vm222, 0.0, %v368
    %v399 = vsel %vm223, 0.0, %v373
    %v400 = vsel %vm224, 0.0, %v378
    %v401 = vsel %vm225, 0.0, %v383
    %v402 = vsel %vm226, 0.0, %v388
    %v403 = vsel %vm227, 0.0, %v393
    %vm404 = vcmp.ne.f32.partialorder %v396, 0.0
    %vm405 = vcmp.ne.f32.partialorder %v397, 0.0
    %vm406 = vcmp.ne.f32.partialorder %v398, 0.0
    %vm407 = vcmp.ne.f32.partialorder %v399, 0.0
    %vm408 = vcmp.ne.f32.partialorder %v400, 0.0
    %vm409 = vcmp.ne.f32.partialorder %v401, 0.0
    %vm410 = vcmp.ne.f32.partialorder %v402, 0.0
    %vm411 = vcmp.ne.f32.partialorder %v403, 0.0
    %vm412 = vcmp.gt.f32.partialorder %v56, 0.0
    %vm413 = vcmp.gt.f32.partialorder %v57, 0.0
    %vm414 = vcmp.gt.f32.partialorder %v58, 0.0
    %vm415 = vcmp.gt.f32.partialorder %v59, 0.0
    %vm416 = vcmp.gt.f32.partialorder %v60, 0.0
    %vm417 = vcmp.gt.f32.partialorder %v61, 0.0
    %vm418 = vcmp.gt.f32.partialorder %v62, 0.0
    %vm419 = vcmp.gt.f32.partialorder %v63, 0.0
    %v420 = vsel %vm412, 1, 0
    %v421 = vsel %vm413, 1, 0
    %v422 = vsel %vm414, 1, 0
    %v423 = vsel %vm415, 1, 0
    %v424 = vsel %vm416, 1, 0
    %v425 = vsel %vm417, 1, 0
    %v426 = vsel %vm418, 1, 0
    %v427 = vsel %vm419, 1, 0
    %428 = vset.pattern.permute.xlu0 0
    %429 = vperm.xlu0 %428, %v420
    %v430 = vpop.permute.xlu0 %429
    %431 = vset.pattern.permute.xlu0 0
    %432 = vperm.xlu0 %431, %v421
    %v433 = vpop.permute.xlu0 %432
    %434 = vset.pattern.permute.xlu0 0
    %435 = vperm.xlu0 %434, %v422
    %v436 = vpop.permute.xlu0 %435
    %437 = vset.pattern.permute.xlu0 0
    %438 = vperm.xlu0 %437, %v423
    %v439 = vpop.permute.xlu0 %438
    %440 = vset.pattern.permute.xlu0 0
    %441 = vperm.xlu0 %440, %v424
    %v442 = vpop.permute.xlu0 %441
    %443 = vset.pattern.permute.xlu0 0
    %444 = vperm.xlu0 %443, %v425
    %v445 = vpop.permute.xlu0 %444
    %446 = vset.pattern.permute.xlu0 0
    %447 = vperm.xlu0 %446, %v426
    %v448 = vpop.permute.xlu0 %447
    %449 = vset.pattern.permute.xlu0 0
    %450 = vperm.xlu0 %449, %v427
    %v451 = vpop.permute.xlu0 %450
    %vm452 = vcmp.eq.s32.totalorder %v430, 1
    %vm453 = vcmp.eq.s32.totalorder %v433, 1
    %vm454 = vcmp.eq.s32.totalorder %v436, 1
    %vm455 = vcmp.eq.s32.totalorder %v439, 1
    %vm456 = vcmp.eq.s32.totalorder %v442, 1
    %vm457 = vcmp.eq.s32.totalorder %v445, 1
    %vm458 = vcmp.eq.s32.totalorder %v448, 1
    %vm459 = vcmp.eq.s32.totalorder %v451, 1
    %vm460 = vmand %vm220, %vm452
    %vm461 = vmand %vm221, %vm453
    %vm462 = vmand %vm222, %vm454
    %vm463 = vmand %vm223, %vm455
    %vm464 = vmand %vm224, %vm456
    %vm465 = vmand %vm225, %vm457
    %vm466 = vmand %vm226, %vm458
    %vm467 = vmand %vm227, %vm459
    %vm468 = vmor %vm404, %vm460
    %vm469 = vmor %vm405, %vm461
    %vm470 = vmor %vm406, %vm462
    %vm471 = vmor %vm407, %vm463
    %vm472 = vmor %vm408, %vm464
    %vm473 = vmor %vm409, %vm465
    %vm474 = vmor %vm410, %vm466
    %vm475 = vmor %vm411, %vm467
    %v476 = vld [vmem:[%s4] sm:$0xff]
    %v477 = vld [vmem:[%s4 + $0x8] sm:$0xff]
    %v478 = vld [vmem:[%s4 + $0x10] sm:$0xff]
    %v479 = vld [vmem:[%s4 + $0x18] sm:$0xff]
    %v480 = vld [vmem:[%s4 + $0x20] sm:$0xff]
    %v481 = vld [vmem:[%s4 + $0x28] sm:$0xff]
    %v482 = vld [vmem:[%s4 + $0x30] sm:$0xff]
    %v483 = vld [vmem:[%s4 + $0x38] sm:$0xff]
    %v484 = vld [vmem:[%s5] sm:$0x1]
    %v485 = vld [vmem:[%s6] sm:$0x1]
    %v486 = vld [vmem:[%s7] sm:$0x1]
    %v488 = vsel %vm266, %v201, 0
    %v491 = vsel %vm266, %v202, 0
    %v494 = vsel %vm266, %v203, 0
    %v497 = vsel %vm266, %v204, 0
    %v500 = vsel %vm266, %v205, 0
    %v503 = vsel %vm266, %v206, 0
    %v506 = vsel %vm266, %v207, 0
    %v509 = vsel %vm266, %v208, 0
    %511 = vmatprep.subr.mxu0 0.0
    %512 = vmatpush1.msra.mxu0 0.0
    %513 = vmatprep.subr.mxu0 0.0
    %514 = vmatpush1.msra.mxu0 0.0
    %515 = vmatprep.subr.mxu0 0.0
    %516 = vmatpush1.msra.mxu0 0.0
    %517 = vmatprep.subr.mxu0 0.0
    %518 = vmatpush1.msra.mxu0 0.0
    %519 = vmatprep.subr.mxu0 0.0
    %520 = vmatpush1.msra.mxu0 0.0
    %521 = vmatprep.subr.mxu0 0.0
    %522 = vmatpush1.msra.mxu0 0.0
    %523 = vmatprep.subr.mxu0 0.0
    %524 = vmatpush1.msra.mxu0 0.0
    %525 = vmatprep.subr.mxu0 0.0
    %526 = vmatpush1.msra.mxu0 0.0
    %527 = vmatprep.subr.mxu0 0.0
    %528 = vmatpush1.msra.mxu0 %v483
    %529 = vmatprep.subr.mxu0 0.0
    %530 = vmatpush1.msra.mxu0 %v482
    %531 = vmatprep.subr.mxu0 0.0
    %532 = vmatpush1.msra.mxu0 %v481
    %533 = vmatprep.subr.mxu0 0.0
    %534 = vmatpush1.msra.mxu0 %v480
    %535 = vmatprep.subr.mxu0 0.0
    %536 = vmatpush1.msra.mxu0 %v479
    %537 = vmatprep.subr.mxu0 0.0
    %538 = vmatpush1.msra.mxu0 %v478
    %539 = vmatprep.subr.mxu0 0.0
    %540 = vmatpush1.msra.mxu0 %v477
    %541 = vmatprep.subr.mxu0 0.0
    %542 = vmatpush1.msra.mxu0 %v476
    %543 = vmatprep.subr.mxu0 0.0
    %544 = vmatpush2.msra.mxu0 0.0
    %545 = vmatprep.subr.mxu0 0.0
    %546 = vmatpush2.msra.mxu0 0.0
    %547 = vmatprep.subr.mxu0 0.0
    %548 = vmatpush2.msra.mxu0 0.0
    %549 = vmatprep.subr.mxu0 0.0
    %550 = vmatpush2.msra.mxu0 0.0
    %551 = vmatprep.subr.mxu0 0.0
    %552 = vmatpush2.msra.mxu0 0.0
    %553 = vmatprep.subr.mxu0 0.0
    %554 = vmatpush2.msra.mxu0 0.0
    %555 = vmatprep.subr.mxu0 0.0
    %556 = vmatpush2.msra.mxu0 0.0
    %557 = vmatprep.subr.mxu0 0.0
    %558 = vmatpush2.msra.mxu0 0.0
    %559 = vmatprep.subr.mxu0 0.0
    %560 = vmatpush2.msra.mxu0 0.0
    %561 = vmatprep.subr.mxu0 0.0
    %562 = vmatpush2.msra.mxu0 0.0
    %563 = vmatprep.subr.mxu0 0.0
    %564 = vmatpush2.msra.mxu0 0.0
    %565 = vmatprep.subr.mxu0 0.0
    %566 = vmatpush2.msra.mxu0 0.0
    %567 = vmatprep.subr.mxu0 0.0
    %568 = vmatpush2.msra.mxu0 0.0
    %569 = vmatprep.subr.mxu0 0.0
    %570 = vmatpush2.msra.mxu0 0.0
    %571 = vmatprep.subr.mxu0 0.0
    %572 = vmatpush2.msra.mxu0 0.0
    %573 = vmatprep.subr.mxu0 0.0
    %574 = vmatpush2.msra.mxu0 0.0
    %575 = vmatprep.mubr.f32.mxu0 0.0
    %576 = vmatmul.mubr.f32.gmra.mxu0 %v488
    %v577 = vpop.f32.mrf.mxu0
    %v578 = vadd.f32 0.0, %v577
    %v579 = vpop.f32.mrf.mxu0
    %580 = vmatprep.mubr.f32.mxu0 0.0
    %581 = vmatmul.mubr.f32.gmra.mxu0 %v491
    %v582 = vpop.f32.mrf.mxu0
    %v583 = vadd.f32 0.0, %v582
    %v584 = vpop.f32.mrf.mxu0
    %585 = vmatprep.mubr.f32.mxu0 0.0
    %586 = vmatmul.mubr.f32.gmra.mxu0 %v494
    %v587 = vpop.f32.mrf.mxu0
    %v588 = vadd.f32 0.0, %v587
    %v589 = vpop.f32.mrf.mxu0
    %590 = vmatprep.mubr.f32.mxu0 0.0
    %591 = vmatmul.mubr.f32.gmra.mxu0 %v497
    %v592 = vpop.f32.mrf.mxu0
    %v593 = vadd.f32 0.0, %v592
    %v594 = vpop.f32.mrf.mxu0
    %595 = vmatprep.mubr.f32.mxu0 0.0
    %596 = vmatmul.mubr.f32.gmra.mxu0 %v500
    %v597 = vpop.f32.mrf.mxu0
    %v598 = vadd.f32 0.0, %v597
    %v599 = vpop.f32.mrf.mxu0
    %600 = vmatprep.mubr.f32.mxu0 0.0
    %601 = vmatmul.mubr.f32.gmra.mxu0 %v503
    %v602 = vpop.f32.mrf.mxu0
    %v603 = vadd.f32 0.0, %v602
    %v604 = vpop.f32.mrf.mxu0
    %605 = vmatprep.mubr.f32.mxu0 0.0
    %606 = vmatmul.mubr.f32.gmra.mxu0 %v506
    %v607 = vpop.f32.mrf.mxu0
    %v608 = vadd.f32 0.0, %v607
    %v609 = vpop.f32.mrf.mxu0
    %610 = vmatprep.mubr.f32.mxu0 0.0
    %611 = vmatmul.mubr.f32.gmra.mxu0 %v509
    %v612 = vpop.f32.mrf.mxu0
    %v613 = vadd.f32 0.0, %v612
    %v614 = vpop.f32.mrf.mxu0
    %615 = vdwg.mxu0
    %v617 = vlaneseq
    %v618 = vshrl.u32 %v617, 7
    %v619 = vsub.s32 0, %v618
    %v620 = vrot.slane %v485, %v619
    %v622 = vmul.f32 %v578, %v620
    %v623 = vmul.f32 %v583, %v620
    %v624 = vmul.f32 %v588, %v620
    %v625 = vmul.f32 %v593, %v620
    %v626 = vmul.f32 %v598, %v620
    %v627 = vmul.f32 %v603, %v620
    %v628 = vmul.f32 %v608, %v620
    %v629 = vmul.f32 %v613, %v620
    %v630 = vsel %vm266, %v622, 0.0
    %631 = vadd.xlane.f32.xlu0 %v630
    %v632 = vpop.xlane.xlu0 %631
    %v633 = vsel %vm266, %v623, 0.0
    %634 = vadd.xlane.f32.xlu0 %v633
    %v635 = vpop.xlane.xlu0 %634
    %v636 = vsel %vm266, %v624, 0.0
    %637 = vadd.xlane.f32.xlu0 %v636
    %v638 = vpop.xlane.xlu0 %637
    %v639 = vsel %vm266, %v625, 0.0
    %640 = vadd.xlane.f32.xlu0 %v639
    %v641 = vpop.xlane.xlu0 %640
    %v642 = vsel %vm266, %v626, 0.0
    %643 = vadd.xlane.f32.xlu0 %v642
    %v644 = vpop.xlane.xlu0 %643
    %v645 = vsel %vm266, %v627, 0.0
    %646 = vadd.xlane.f32.xlu0 %v645
    %v647 = vpop.xlane.xlu0 %646
    %v648 = vsel %vm266, %v628, 0.0
    %649 = vadd.xlane.f32.xlu0 %v648
    %v650 = vpop.xlane.xlu0 %649
    %v651 = vsel %vm266, %v629, 0.0
    %652 = vadd.xlane.f32.xlu0 %v651
    %v653 = vpop.xlane.xlu0 %652
    %v655 = vsel %vm266, %v484, 0
    %v658 = vsel %vm266, %v578, 0
    %v661 = vsel %vm266, %v583, 0
    %v664 = vsel %vm266, %v588, 0
    %v667 = vsel %vm266, %v593, 0
    %v670 = vsel %vm266, %v598, 0
    %v673 = vsel %vm266, %v603, 0
    %v676 = vsel %vm266, %v608, 0
    %v679 = vsel %vm266, %v613, 0
    %681 = vmatprep.subr.mxu0 0.0
    %682 = vmatpush1.xpose.msra.mxu0 0.0
    %683 = vmatprep.subr.mxu0 0.0
    %684 = vmatpush1.xpose.msra.mxu0 0.0
    %685 = vmatprep.subr.mxu0 0.0
    %686 = vmatpush1.xpose.msra.mxu0 0.0
    %687 = vmatprep.subr.mxu0 0.0
    %688 = vmatpush1.xpose.msra.mxu0 0.0
    %689 = vmatprep.subr.mxu0 0.0
    %690 = vmatpush1.xpose.msra.mxu0 0.0
    %691 = vmatprep.subr.mxu0 0.0
    %692 = vmatpush1.xpose.msra.mxu0 0.0
    %693 = vmatprep.subr.mxu0 0.0
    %694 = vmatpush1.xpose.msra.mxu0 0.0
    %695 = vmatprep.subr.mxu0 0.0
    %696 = vmatpush1.xpose.msra.mxu0 0.0
    %697 = vmatprep.subr.mxu0 0.0
    %698 = vmatpush1.xpose.msra.mxu0 %v679
    %699 = vmatprep.subr.mxu0 0.0
    %700 = vmatpush1.xpose.msra.mxu0 %v676
    %701 = vmatprep.subr.mxu0 0.0
    %702 = vmatpush1.xpose.msra.mxu0 %v673
    %703 = vmatprep.subr.mxu0 0.0
    %704 = vmatpush1.xpose.msra.mxu0 %v670
    %705 = vmatprep.subr.mxu0 0.0
    %706 = vmatpush1.xpose.msra.mxu0 %v667
    %707 = vmatprep.subr.mxu0 0.0
    %708 = vmatpush1.xpose.msra.mxu0 %v664
    %709 = vmatprep.subr.mxu0 0.0
    %710 = vmatpush1.xpose.msra.mxu0 %v661
    %711 = vmatprep.subr.mxu0 0.0
    %712 = vmatpush1.xpose.msra.mxu0 %v658
    %713 = vmatprep.subr.mxu0 0.0
    %714 = vmatpush2.xpose.msra.mxu0 0.0
    %715 = vmatprep.subr.mxu0 0.0
    %716 = vmatpush2.xpose.msra.mxu0 0.0
    %717 = vmatprep.subr.mxu0 0.0
    %718 = vmatpush2.xpose.msra.mxu0 0.0
    %719 = vmatprep.subr.mxu0 0.0
    %720 = vmatpush2.xpose.msra.mxu0 0.0
    %721 = vmatprep.subr.mxu0 0.0
    %722 = vmatpush2.xpose.msra.mxu0 0.0
    %723 = vmatprep.subr.mxu0 0.0
    %724 = vmatpush2.xpose.msra.mxu0 0.0
    %725 = vmatprep.subr.mxu0 0.0
    %726 = vmatpush2.xpose.msra.mxu0 0.0
    %727 = vmatprep.subr.mxu0 0.0
    %728 = vmatpush2.xpose.msra.mxu0 0.0
    %729 = vmatprep.subr.mxu0 0.0
    %730 = vmatpush2.xpose.msra.mxu0 0.0
    %731 = vmatprep.subr.mxu0 0.0
    %732 = vmatpush2.xpose.msra.mxu0 0.0
    %733 = vmatprep.subr.mxu0 0.0
    %734 = vmatpush2.xpose.msra.mxu0 0.0
    %735 = vmatprep.subr.mxu0 0.0
    %736 = vmatpush2.xpose.msra.mxu0 0.0
    %737 = vmatprep.subr.mxu0 0.0
    %738 = vmatpush2.xpose.msra.mxu0 0.0
    %739 = vmatprep.subr.mxu0 0.0
    %740 = vmatpush2.xpose.msra.mxu0 0.0
    %741 = vmatprep.subr.mxu0 0.0
    %742 = vmatpush2.xpose.msra.mxu0 0.0
    %743 = vmatprep.subr.mxu0 0.0
    %744 = vmatpush2.xpose.msra.mxu0 0.0
    %745 = vmatprep.mubr.f32.mxu0 0.0
    %746 = vmatmul.mubr.f32.gmra.mxu0 %v655
    %v747 = vpop.f32.mrf.mxu0
    %v748 = vadd.f32 0.0, %v747
    %v749 = vpop.f32.mrf.mxu0
    %750 = vdwg.mxu0
    %v751 = vlaneseq
    %v752 = vshrl.u32 %v751, 7
    %v753 = vsub.s32 0, %v752
    %v754 = vrot.slane %v748, %v753
    %v755 = vadd.f32 %v632, %v754
    %v756 = vadd.f32 %v635, %v754
    %v757 = vadd.f32 %v638, %v754
    %v758 = vadd.f32 %v641, %v754
    %v759 = vadd.f32 %v644, %v754
    %v760 = vadd.f32 %v647, %v754
    %v761 = vadd.f32 %v650, %v754
    %v762 = vadd.f32 %v653, %v754
    %vm763 = vcmp.gt.f32.partialorder %v755, 0.0
    %vm764 = vcmp.gt.f32.partialorder %v756, 0.0
    %vm765 = vcmp.gt.f32.partialorder %v757, 0.0
    %vm766 = vcmp.gt.f32.partialorder %v758, 0.0
    %vm767 = vcmp.gt.f32.partialorder %v759, 0.0
    %vm768 = vcmp.gt.f32.partialorder %v760, 0.0
    %vm769 = vcmp.gt.f32.partialorder %v761, 0.0
    %vm770 = vcmp.gt.f32.partialorder %v762, 0.0
    %v771 = vmul.f32 %v755, 0.2
    %v772 = vmul.f32 %v756, 0.2
    %v773 = vmul.f32 %v757, 0.2
    %v774 = vmul.f32 %v758, 0.2
    %v775 = vmul.f32 %v759, 0.2
    %v776 = vmul.f32 %v760, 0.2
    %v777 = vmul.f32 %v761, 0.2
    %v778 = vmul.f32 %v762, 0.2
    %v779 = vsel %vm763, %v755, %v771
    %v780 = vsel %vm764, %v756, %v772
    %v781 = vsel %vm765, %v757, %v773
    %v782 = vsel %vm766, %v758, %v774
    %v783 = vsel %vm767, %v759, %v775
    %v784 = vsel %vm768, %v760, %v776
    %v785 = vsel %vm769, %v761, %v777
    %v786 = vsel %vm770, %v762, %v778
    %v787 = vsel %vm468, %v779, -1e+30
    %v788 = vsel %vm469, %v780, -1e+30
    %v789 = vsel %vm470, %v781, -1e+30
    %v790 = vsel %vm471, %v782, -1e+30
    %v791 = vsel %vm472, %v783, -1e+30
    %v792 = vsel %vm473, %v784, -1e+30
    %v793 = vsel %vm474, %v785, -1e+30
    %v794 = vsel %vm475, %v786, -1e+30
    %v795 = vsel %vm266, %v787, -inf
    %796 = vmax.xlane.f32.xlu0 %v795
    %v797 = vpop.xlane.xlu0 %796
    %v798 = vsel %vm266, %v788, -inf
    %799 = vmax.xlane.f32.xlu0 %v798
    %v800 = vpop.xlane.xlu0 %799
    %v801 = vsel %vm266, %v789, -inf
    %802 = vmax.xlane.f32.xlu0 %v801
    %v803 = vpop.xlane.xlu0 %802
    %v804 = vsel %vm266, %v790, -inf
    %805 = vmax.xlane.f32.xlu0 %v804
    %v806 = vpop.xlane.xlu0 %805
    %v807 = vsel %vm266, %v791, -inf
    %808 = vmax.xlane.f32.xlu0 %v807
    %v809 = vpop.xlane.xlu0 %808
    %v810 = vsel %vm266, %v792, -inf
    %811 = vmax.xlane.f32.xlu0 %v810
    %v812 = vpop.xlane.xlu0 %811
    %v813 = vsel %vm266, %v793, -inf
    %814 = vmax.xlane.f32.xlu0 %v813
    %v815 = vpop.xlane.xlu0 %814
    %v816 = vsel %vm266, %v794, -inf
    %817 = vmax.xlane.f32.xlu0 %v816
    %v818 = vpop.xlane.xlu0 %817
    %v819 = vsub.f32 %v787, %v797
    %v820 = vsub.f32 %v788, %v800
    %v821 = vsub.f32 %v789, %v803
    %v822 = vsub.f32 %v790, %v806
    %v823 = vsub.f32 %v791, %v809
    %v824 = vsub.f32 %v792, %v812
    %v825 = vsub.f32 %v793, %v815
    %v826 = vsub.f32 %v794, %v818
    %v827 = vmul.f32 %v819, 1.442695
    %v828 = vpow.pop %v827
    %v829 = vmul.f32 %v820, 1.442695
    %v830 = vpow.pop %v829
    %v831 = vmul.f32 %v821, 1.442695
    %v832 = vpow.pop %v831
    %v833 = vmul.f32 %v822, 1.442695
    %v834 = vpow.pop %v833
    %v835 = vmul.f32 %v823, 1.442695
    %v836 = vpow.pop %v835
    %v837 = vmul.f32 %v824, 1.442695
    %v838 = vpow.pop %v837
    %v839 = vmul.f32 %v825, 1.442695
    %v840 = vpow.pop %v839
    %v841 = vmul.f32 %v826, 1.442695
    %v842 = vpow.pop %v841
    %v843 = vsel %vm468, %v828, 0.0
    %v844 = vsel %vm469, %v830, 0.0
    %v845 = vsel %vm470, %v832, 0.0
    %v846 = vsel %vm471, %v834, 0.0
    %v847 = vsel %vm472, %v836, 0.0
    %v848 = vsel %vm473, %v838, 0.0
    %v849 = vsel %vm474, %v840, 0.0
    %v850 = vsel %vm475, %v842, 0.0
    %v851 = vsel %vm266, %v843, 0.0
    %852 = vadd.xlane.f32.xlu0 %v851
    %v853 = vpop.xlane.xlu0 %852
    %v854 = vsel %vm266, %v844, 0.0
    %855 = vadd.xlane.f32.xlu0 %v854
    %v856 = vpop.xlane.xlu0 %855
    %v857 = vsel %vm266, %v845, 0.0
    %858 = vadd.xlane.f32.xlu0 %v857
    %v859 = vpop.xlane.xlu0 %858
    %v860 = vsel %vm266, %v846, 0.0
    %861 = vadd.xlane.f32.xlu0 %v860
    %v862 = vpop.xlane.xlu0 %861
    %v863 = vsel %vm266, %v847, 0.0
    %864 = vadd.xlane.f32.xlu0 %v863
    %v865 = vpop.xlane.xlu0 %864
    %v866 = vsel %vm266, %v848, 0.0
    %867 = vadd.xlane.f32.xlu0 %v866
    %v868 = vpop.xlane.xlu0 %867
    %v869 = vsel %vm266, %v849, 0.0
    %870 = vadd.xlane.f32.xlu0 %v869
    %v871 = vpop.xlane.xlu0 %870
    %v872 = vsel %vm266, %v850, 0.0
    %873 = vadd.xlane.f32.xlu0 %v872
    %v874 = vpop.xlane.xlu0 %873
    %v875 = vmax.f32 %v853, 1e-16
    %v876 = vmax.f32 %v856, 1e-16
    %v877 = vmax.f32 %v859, 1e-16
    %v878 = vmax.f32 %v862, 1e-16
    %v879 = vmax.f32 %v865, 1e-16
    %v880 = vmax.f32 %v868, 1e-16
    %v881 = vmax.f32 %v871, 1e-16
    %v882 = vmax.f32 %v874, 1e-16
    %v883 = vrcp.pop %v875
    %v884 = vmul.f32 %v843, %v883
    %v885 = vrcp.pop %v876
    %v886 = vmul.f32 %v844, %v885
    %v887 = vrcp.pop %v877
    %v888 = vmul.f32 %v845, %v887
    %v889 = vrcp.pop %v878
    %v890 = vmul.f32 %v846, %v889
    %v891 = vrcp.pop %v879
    %v892 = vmul.f32 %v847, %v891
    %v893 = vrcp.pop %v880
    %v894 = vmul.f32 %v848, %v893
    %v895 = vrcp.pop %v881
    %v896 = vmul.f32 %v849, %v895
    %v897 = vrcp.pop %v882
    %v898 = vmul.f32 %v850, %v897
    %v900 = vlaneseq
    %v901 = vshrl.u32 %v900, 7
    %v902 = vsub.s32 0, %v901
    %v903 = vrot.slane %v486, %v902
    %v906 = vsel %vm266, %v884, 0
    %v909 = vsel %vm266, %v886, 0
    %v912 = vsel %vm266, %v888, 0
    %v915 = vsel %vm266, %v890, 0
    %v918 = vsel %vm266, %v892, 0
    %v921 = vsel %vm266, %v894, 0
    %v924 = vsel %vm266, %v896, 0
    %v927 = vsel %vm266, %v898, 0
    %929 = vmatprep.subr.mxu0 0.0
    %930 = vmatpush1.msra.mxu0 0.0
    %931 = vmatprep.subr.mxu0 0.0
    %932 = vmatpush1.msra.mxu0 0.0
    %933 = vmatprep.subr.mxu0 0.0
    %934 = vmatpush1.msra.mxu0 0.0
    %935 = vmatprep.subr.mxu0 0.0
    %936 = vmatpush1.msra.mxu0 0.0
    %937 = vmatprep.subr.mxu0 0.0
    %938 = vmatpush1.msra.mxu0 0.0
    %939 = vmatprep.subr.mxu0 0.0
    %940 = vmatpush1.msra.mxu0 0.0
    %941 = vmatprep.subr.mxu0 0.0
    %942 = vmatpush1.msra.mxu0 0.0
    %943 = vmatprep.subr.mxu0 0.0
    %944 = vmatpush1.msra.mxu0 0.0
    %945 = vmatprep.subr.mxu0 0.0
    %946 = vmatpush1.msra.mxu0 %v613
    %947 = vmatprep.subr.mxu0 0.0
    %948 = vmatpush1.msra.mxu0 %v608
    %949 = vmatprep.subr.mxu0 0.0
    %950 = vmatpush1.msra.mxu0 %v603
    %951 = vmatprep.subr.mxu0 0.0
    %952 = vmatpush1.msra.mxu0 %v598
    %953 = vmatprep.subr.mxu0 0.0
    %954 = vmatpush1.msra.mxu0 %v593
    %955 = vmatprep.subr.mxu0 0.0
    %956 = vmatpush1.msra.mxu0 %v588
    %957 = vmatprep.subr.mxu0 0.0
    %958 = vmatpush1.msra.mxu0 %v583
    %959 = vmatprep.subr.mxu0 0.0
    %960 = vmatpush1.msra.mxu0 %v578
    %961 = vmatprep.subr.mxu0 0.0
    %962 = vmatpush2.msra.mxu0 0.0
    %963 = vmatprep.subr.mxu0 0.0
    %964 = vmatpush2.msra.mxu0 0.0
    %965 = vmatprep.subr.mxu0 0.0
    %966 = vmatpush2.msra.mxu0 0.0
    %967 = vmatprep.subr.mxu0 0.0
    %968 = vmatpush2.msra.mxu0 0.0
    %969 = vmatprep.subr.mxu0 0.0
    %970 = vmatpush2.msra.mxu0 0.0
    %971 = vmatprep.subr.mxu0 0.0
    %972 = vmatpush2.msra.mxu0 0.0
    %973 = vmatprep.subr.mxu0 0.0
    %974 = vmatpush2.msra.mxu0 0.0
    %975 = vmatprep.subr.mxu0 0.0
    %976 = vmatpush2.msra.mxu0 0.0
    %977 = vmatprep.subr.mxu0 0.0
    %978 = vmatpush2.msra.mxu0 0.0
    %979 = vmatprep.subr.mxu0 0.0
    %980 = vmatpush2.msra.mxu0 0.0
    %981 = vmatprep.subr.mxu0 0.0
    %982 = vmatpush2.msra.mxu0 0.0
    %983 = vmatprep.subr.mxu0 0.0
    %984 = vmatpush2.msra.mxu0 0.0
    %985 = vmatprep.subr.mxu0 0.0
    %986 = vmatpush2.msra.mxu0 0.0
    %987 = vmatprep.subr.mxu0 0.0
    %988 = vmatpush2.msra.mxu0 0.0
    %989 = vmatprep.subr.mxu0 0.0
    %990 = vmatpush2.msra.mxu0 0.0
    %991 = vmatprep.subr.mxu0 0.0
    %992 = vmatpush2.msra.mxu0 0.0
    %993 = vmatprep.mubr.f32.mxu0 0.0
    %994 = vmatmul.mubr.f32.gmra.mxu0 %v906
    %v995 = vpop.f32.mrf.mxu0
    %v996 = vadd.f32 %v903, %v995
    %v997 = vpop.f32.mrf.mxu0
    %998 = vmatprep.mubr.f32.mxu0 0.0
    %999 = vmatmul.mubr.f32.gmra.mxu0 %v909
    %v1000 = vpop.f32.mrf.mxu0
    %v1001 = vadd.f32 %v903, %v1000
    %v1002 = vpop.f32.mrf.mxu0
    %1003 = vmatprep.mubr.f32.mxu0 0.0
    %1004 = vmatmul.mubr.f32.gmra.mxu0 %v912
    %v1005 = vpop.f32.mrf.mxu0
    %v1006 = vadd.f32 %v903, %v1005
    %v1007 = vpop.f32.mrf.mxu0
    %1008 = vmatprep.mubr.f32.mxu0 0.0
    %1009 = vmatmul.mubr.f32.gmra.mxu0 %v915
    %v1010 = vpop.f32.mrf.mxu0
    %v1011 = vadd.f32 %v903, %v1010
    %v1012 = vpop.f32.mrf.mxu0
    %1013 = vmatprep.mubr.f32.mxu0 0.0
    %1014 = vmatmul.mubr.f32.gmra.mxu0 %v918
    %v1015 = vpop.f32.mrf.mxu0
    %v1016 = vadd.f32 %v903, %v1015
    %v1017 = vpop.f32.mrf.mxu0
    %1018 = vmatprep.mubr.f32.mxu0 0.0
    %1019 = vmatmul.mubr.f32.gmra.mxu0 %v921
    %v1020 = vpop.f32.mrf.mxu0
    %v1021 = vadd.f32 %v903, %v1020
    %v1022 = vpop.f32.mrf.mxu0
    %1023 = vmatprep.mubr.f32.mxu0 0.0
    %1024 = vmatmul.mubr.f32.gmra.mxu0 %v924
    %v1025 = vpop.f32.mrf.mxu0
    %v1026 = vadd.f32 %v903, %v1025
    %v1027 = vpop.f32.mrf.mxu0
    %1028 = vmatprep.mubr.f32.mxu0 0.0
    %1029 = vmatmul.mubr.f32.gmra.mxu0 %v927
    %v1030 = vpop.f32.mrf.mxu0
    %v1031 = vadd.f32 %v903, %v1030
    %v1032 = vpop.f32.mrf.mxu0
    %1033 = vdwg.mxu0
    %v1034 = vld [vmem:[%s8] sm:$0x1]
    %s1035 = sld [smem:[#allocation2]]
    %s1036 = sld [smem:[#allocation2 + $0x1]]
    %s1037 = sld [smem:[#allocation2 + $0x2]]
    %v1039 = vlaneseq
    %v1040 = vshrl.u32 %v1039, 7
    %v1041 = vsub.s32 0, %v1040
    %v1042 = vrot.slane %v1034, %v1041
    %v1044 = vmul.f32 %v996, %v1042
    %v1045 = vmul.f32 %v1001, %v1042
    %v1046 = vmul.f32 %v1006, %v1042
    %v1047 = vmul.f32 %v1011, %v1042
    %v1048 = vmul.f32 %v1016, %v1042
    %v1049 = vmul.f32 %v1021, %v1042
    %v1050 = vmul.f32 %v1026, %v1042
    %v1051 = vmul.f32 %v1031, %v1042
    %v1052 = vsel %vm266, %v1044, 0.0
    %1053 = vadd.xlane.f32.xlu0 %v1052
    %v1054 = vpop.xlane.xlu0 %1053
    %v1055 = vsel %vm266, %v1045, 0.0
    %1056 = vadd.xlane.f32.xlu0 %v1055
    %v1057 = vpop.xlane.xlu0 %1056
    %v1058 = vsel %vm266, %v1046, 0.0
    %1059 = vadd.xlane.f32.xlu0 %v1058
    %v1060 = vpop.xlane.xlu0 %1059
    %v1061 = vsel %vm266, %v1047, 0.0
    %1062 = vadd.xlane.f32.xlu0 %v1061
    %v1063 = vpop.xlane.xlu0 %1062
    %v1064 = vsel %vm266, %v1048, 0.0
    %1065 = vadd.xlane.f32.xlu0 %v1064
    %v1066 = vpop.xlane.xlu0 %1065
    %v1067 = vsel %vm266, %v1049, 0.0
    %1068 = vadd.xlane.f32.xlu0 %v1067
    %v1069 = vpop.xlane.xlu0 %1068
    %v1070 = vsel %vm266, %v1050, 0.0
    %1071 = vadd.xlane.f32.xlu0 %v1070
    %v1072 = vpop.xlane.xlu0 %1071
    %v1073 = vsel %vm266, %v1051, 0.0
    %1074 = vadd.xlane.f32.xlu0 %v1073
    %v1075 = vpop.xlane.xlu0 %1074
    %v1076 = vsel %vm266, %v1034, 0
    %v1079 = vsel %vm266, %v996, 0
    %v1082 = vsel %vm266, %v1001, 0
    %v1085 = vsel %vm266, %v1006, 0
    %v1088 = vsel %vm266, %v1011, 0
    %v1091 = vsel %vm266, %v1016, 0
    %v1094 = vsel %vm266, %v1021, 0
    %v1097 = vsel %vm266, %v1026, 0
    %v1100 = vsel %vm266, %v1031, 0
    %1102 = vmatprep.subr.mxu0 0.0
    %1103 = vmatpush1.xpose.msra.mxu0 0.0
    %1104 = vmatprep.subr.mxu0 0.0
    %1105 = vmatpush1.xpose.msra.mxu0 0.0
    %1106 = vmatprep.subr.mxu0 0.0
    %1107 = vmatpush1.xpose.msra.mxu0 0.0
    %1108 = vmatprep.subr.mxu0 0.0
    %1109 = vmatpush1.xpose.msra.mxu0 0.0
    %1110 = vmatprep.subr.mxu0 0.0
    %1111 = vmatpush1.xpose.msra.mxu0 0.0
    %1112 = vmatprep.subr.mxu0 0.0
    %1113 = vmatpush1.xpose.msra.mxu0 0.0
    %1114 = vmatprep.subr.mxu0 0.0
    %1115 = vmatpush1.xpose.msra.mxu0 0.0
    %1116 = vmatprep.subr.mxu0 0.0
    %1117 = vmatpush1.xpose.msra.mxu0 0.0
    %1118 = vmatprep.subr.mxu0 0.0
    %1119 = vmatpush1.xpose.msra.mxu0 %v1100
    %1120 = vmatprep.subr.mxu0 0.0
    %1121 = vmatpush1.xpose.msra.mxu0 %v1097
    %1122 = vmatprep.subr.mxu0 0.0
    %1123 = vmatpush1.xpose.msra.mxu0 %v1094
    %1124 = vmatprep.subr.mxu0 0.0
    %1125 = vmatpush1.xpose.msra.mxu0 %v1091
    %1126 = vmatprep.subr.mxu0 0.0
    %1127 = vmatpush1.xpose.msra.mxu0 %v1088
    %1128 = vmatprep.subr.mxu0 0.0
    %1129 = vmatpush1.xpose.msra.mxu0 %v1085
    %1130 = vmatprep.subr.mxu0 0.0
    %1131 = vmatpush1.xpose.msra.mxu0 %v1082
    %1132 = vmatprep.subr.mxu0 0.0
    %1133 = vmatpush1.xpose.msra.mxu0 %v1079
    %1134 = vmatprep.subr.mxu0 0.0
    %1135 = vmatpush2.xpose.msra.mxu0 0.0
    %1136 = vmatprep.subr.mxu0 0.0
    %1137 = vmatpush2.xpose.msra.mxu0 0.0
    %1138 = vmatprep.subr.mxu0 0.0
    %1139 = vmatpush2.xpose.msra.mxu0 0.0
    %1140 = vmatprep.subr.mxu0 0.0
    %1141 = vmatpush2.xpose.msra.mxu0 0.0
    %1142 = vmatprep.subr.mxu0 0.0
    %1143 = vmatpush2.xpose.msra.mxu0 0.0
    %1144 = vmatprep.subr.mxu0 0.0
    %1145 = vmatpush2.xpose.msra.mxu0 0.0
    %1146 = vmatprep.subr.mxu0 0.0
    %1147 = vmatpush2.xpose.msra.mxu0 0.0
    %1148 = vmatprep.subr.mxu0 0.0
    %1149 = vmatpush2.xpose.msra.mxu0 0.0
    %1150 = vmatprep.subr.mxu0 0.0
    %1151 = vmatpush2.xpose.msra.mxu0 0.0
    %1152 = vmatprep.subr.mxu0 0.0
    %1153 = vmatpush2.xpose.msra.mxu0 0.0
    %1154 = vmatprep.subr.mxu0 0.0
    %1155 = vmatpush2.xpose.msra.mxu0 0.0
    %1156 = vmatprep.subr.mxu0 0.0
    %1157 = vmatpush2.xpose.msra.mxu0 0.0
    %1158 = vmatprep.subr.mxu0 0.0
    %1159 = vmatpush2.xpose.msra.mxu0 0.0
    %1160 = vmatprep.subr.mxu0 0.0
    %1161 = vmatpush2.xpose.msra.mxu0 0.0
    %1162 = vmatprep.subr.mxu0 0.0
    %1163 = vmatpush2.xpose.msra.mxu0 0.0
    %1164 = vmatprep.subr.mxu0 0.0
    %1165 = vmatpush2.xpose.msra.mxu0 0.0
    %1166 = vmatprep.mubr.f32.mxu0 0.0
    %1167 = vmatmul.mubr.f32.gmra.mxu0 %v1076
    %v1168 = vpop.f32.mrf.mxu0
    %v1169 = vadd.f32 0.0, %v1168
    %v1170 = vpop.f32.mrf.mxu0
    %1171 = vdwg.mxu0
    %v1172 = vstv %s1036
    %v1173 = vmul.f32 %v1172, %v1054
    %v1174 = vmul.f32 %v1172, %v1057
    %v1175 = vmul.f32 %v1172, %v1060
    %v1176 = vmul.f32 %v1172, %v1063
    %v1177 = vmul.f32 %v1172, %v1066
    %v1178 = vmul.f32 %v1172, %v1069
    %v1179 = vmul.f32 %v1172, %v1072
    %v1180 = vmul.f32 %v1172, %v1075
    %v1181 = vstv %s1035
    %v1182 = vmul.f32 %v1181, %v1169
    %v1183 = vlaneseq
    %v1184 = vshrl.u32 %v1183, 7
    %v1185 = vsub.s32 0, %v1184
    %v1186 = vrot.slane %v1182, %v1185
    %v1187 = vadd.f32 %v1173, %v1186
    %v1188 = vadd.f32 %v1174, %v1186
    %v1189 = vadd.f32 %v1175, %v1186
    %v1190 = vadd.f32 %v1176, %v1186
    %v1191 = vadd.f32 %v1177, %v1186
    %v1192 = vadd.f32 %v1178, %v1186
    %v1193 = vadd.f32 %v1179, %v1186
    %v1194 = vadd.f32 %v1180, %v1186
    %vm1195 = vcmp.gt.f32.partialorder %v1187, 0.0
    %vm1196 = vcmp.gt.f32.partialorder %v1188, 0.0
    %vm1197 = vcmp.gt.f32.partialorder %v1189, 0.0
    %vm1198 = vcmp.gt.f32.partialorder %v1190, 0.0
    %vm1199 = vcmp.gt.f32.partialorder %v1191, 0.0
    %vm1200 = vcmp.gt.f32.partialorder %v1192, 0.0
    %vm1201 = vcmp.gt.f32.partialorder %v1193, 0.0
    %vm1202 = vcmp.gt.f32.partialorder %v1194, 0.0
    %v1203 = vmul.f32 %v1187, 0.2
    %v1204 = vmul.f32 %v1188, 0.2
    %v1205 = vmul.f32 %v1189, 0.2
    %v1206 = vmul.f32 %v1190, 0.2
    %v1207 = vmul.f32 %v1191, 0.2
    %v1208 = vmul.f32 %v1192, 0.2
    %v1209 = vmul.f32 %v1193, 0.2
    %v1210 = vmul.f32 %v1194, 0.2
    %v1211 = vsel %vm1195, %v1187, %v1203
    %v1212 = vsel %vm1196, %v1188, %v1204
    %v1213 = vsel %vm1197, %v1189, %v1205
    %v1214 = vsel %vm1198, %v1190, %v1206
    %v1215 = vsel %vm1199, %v1191, %v1207
    %v1216 = vsel %vm1200, %v1192, %v1208
    %v1217 = vsel %vm1201, %v1193, %v1209
    %v1218 = vsel %vm1202, %v1194, %v1210
    %v1219 = vsel %vm468, %v1211, -1e+30
    %v1220 = vsel %vm469, %v1212, -1e+30
    %v1221 = vsel %vm470, %v1213, -1e+30
    %v1222 = vsel %vm471, %v1214, -1e+30
    %v1223 = vsel %vm472, %v1215, -1e+30
    %v1224 = vsel %vm473, %v1216, -1e+30
    %v1225 = vsel %vm474, %v1217, -1e+30
    %v1226 = vsel %vm475, %v1218, -1e+30
    %v1227 = vsel %vm266, %v1219, -inf
    %1228 = vmax.xlane.f32.xlu0 %v1227
    %v1229 = vpop.xlane.xlu0 %1228
    %v1230 = vsel %vm266, %v1220, -inf
    %1231 = vmax.xlane.f32.xlu0 %v1230
    %v1232 = vpop.xlane.xlu0 %1231
    %v1233 = vsel %vm266, %v1221, -inf
    %1234 = vmax.xlane.f32.xlu0 %v1233
    %v1235 = vpop.xlane.xlu0 %1234
    %v1236 = vsel %vm266, %v1222, -inf
    %1237 = vmax.xlane.f32.xlu0 %v1236
    %v1238 = vpop.xlane.xlu0 %1237
    %v1239 = vsel %vm266, %v1223, -inf
    %1240 = vmax.xlane.f32.xlu0 %v1239
    %v1241 = vpop.xlane.xlu0 %1240
    %v1242 = vsel %vm266, %v1224, -inf
    %1243 = vmax.xlane.f32.xlu0 %v1242
    %v1244 = vpop.xlane.xlu0 %1243
    %v1245 = vsel %vm266, %v1225, -inf
    %1246 = vmax.xlane.f32.xlu0 %v1245
    %v1247 = vpop.xlane.xlu0 %1246
    %v1248 = vsel %vm266, %v1226, -inf
    %1249 = vmax.xlane.f32.xlu0 %v1248
    %v1250 = vpop.xlane.xlu0 %1249
    %v1251 = vsub.f32 %v1219, %v1229
    %v1252 = vsub.f32 %v1220, %v1232
    %v1253 = vsub.f32 %v1221, %v1235
    %v1254 = vsub.f32 %v1222, %v1238
    %v1255 = vsub.f32 %v1223, %v1241
    %v1256 = vsub.f32 %v1224, %v1244
    %v1257 = vsub.f32 %v1225, %v1247
    %v1258 = vsub.f32 %v1226, %v1250
    %v1259 = vmul.f32 %v1251, 1.442695
    %v1260 = vpow.pop %v1259
    %v1261 = vmul.f32 %v1252, 1.442695
    %v1262 = vpow.pop %v1261
    %v1263 = vmul.f32 %v1253, 1.442695
    %v1264 = vpow.pop %v1263
    %v1265 = vmul.f32 %v1254, 1.442695
    %v1266 = vpow.pop %v1265
    %v1267 = vmul.f32 %v1255, 1.442695
    %v1268 = vpow.pop %v1267
    %v1269 = vmul.f32 %v1256, 1.442695
    %v1270 = vpow.pop %v1269
    %v1271 = vmul.f32 %v1257, 1.442695
    %v1272 = vpow.pop %v1271
    %v1273 = vmul.f32 %v1258, 1.442695
    %v1274 = vpow.pop %v1273
    %v1275 = vsel %vm468, %v1260, 0.0
    %v1276 = vsel %vm469, %v1262, 0.0
    %v1277 = vsel %vm470, %v1264, 0.0
    %v1278 = vsel %vm471, %v1266, 0.0
    %v1279 = vsel %vm472, %v1268, 0.0
    %v1280 = vsel %vm473, %v1270, 0.0
    %v1281 = vsel %vm474, %v1272, 0.0
    %v1282 = vsel %vm475, %v1274, 0.0
    %v1283 = vsel %vm266, %v1275, 0.0
    %1284 = vadd.xlane.f32.xlu0 %v1283
    %v1285 = vpop.xlane.xlu0 %1284
    %v1286 = vsel %vm266, %v1276, 0.0
    %1287 = vadd.xlane.f32.xlu0 %v1286
    %v1288 = vpop.xlane.xlu0 %1287
    %v1289 = vsel %vm266, %v1277, 0.0
    %1290 = vadd.xlane.f32.xlu0 %v1289
    %v1291 = vpop.xlane.xlu0 %1290
    %v1292 = vsel %vm266, %v1278, 0.0
    %1293 = vadd.xlane.f32.xlu0 %v1292
    %v1294 = vpop.xlane.xlu0 %1293
    %v1295 = vsel %vm266, %v1279, 0.0
    %1296 = vadd.xlane.f32.xlu0 %v1295
    %v1297 = vpop.xlane.xlu0 %1296
    %v1298 = vsel %vm266, %v1280, 0.0
    %1299 = vadd.xlane.f32.xlu0 %v1298
    %v1300 = vpop.xlane.xlu0 %1299
    %v1301 = vsel %vm266, %v1281, 0.0
    %1302 = vadd.xlane.f32.xlu0 %v1301
    %v1303 = vpop.xlane.xlu0 %1302
    %v1304 = vsel %vm266, %v1282, 0.0
    %1305 = vadd.xlane.f32.xlu0 %v1304
    %v1306 = vpop.xlane.xlu0 %1305
    %v1307 = vmax.f32 %v1285, 1e-16
    %v1308 = vmax.f32 %v1288, 1e-16
    %v1309 = vmax.f32 %v1291, 1e-16
    %v1310 = vmax.f32 %v1294, 1e-16
    %v1311 = vmax.f32 %v1297, 1e-16
    %v1312 = vmax.f32 %v1300, 1e-16
    %v1313 = vmax.f32 %v1303, 1e-16
    %v1314 = vmax.f32 %v1306, 1e-16
    %v1315 = vrcp.pop %v1307
    %v1316 = vmul.f32 %v1275, %v1315
    %v1317 = vrcp.pop %v1308
    %v1318 = vmul.f32 %v1276, %v1317
    %v1319 = vrcp.pop %v1309
    %v1320 = vmul.f32 %v1277, %v1319
    %v1321 = vrcp.pop %v1310
    %v1322 = vmul.f32 %v1278, %v1321
    %v1323 = vrcp.pop %v1311
    %v1324 = vmul.f32 %v1279, %v1323
    %v1325 = vrcp.pop %v1312
    %v1326 = vmul.f32 %v1280, %v1325
    %v1327 = vrcp.pop %v1313
    %v1328 = vmul.f32 %v1281, %v1327
    %v1329 = vrcp.pop %v1314
    %v1330 = vmul.f32 %v1282, %v1329
    %v1331 = vlaneseq
    %v1332 = vshrl.u32 %v1331, 7
    %v1333 = vsub.s32 0, %v1332
    %v1334 = vrot.slane %v1169, %v1333
    %v1335 = vmul.f32 %v1316, %v1334
    %v1336 = vmul.f32 %v1318, %v1334
    %v1337 = vmul.f32 %v1320, %v1334
    %v1338 = vmul.f32 %v1322, %v1334
    %v1339 = vmul.f32 %v1324, %v1334
    %v1340 = vmul.f32 %v1326, %v1334
    %v1341 = vmul.f32 %v1328, %v1334
    %v1342 = vmul.f32 %v1330, %v1334
    %v1343 = vsel %vm266, %v1335, 0.0
    %1344 = vadd.xlane.f32.xlu0 %v1343
    %v1345 = vpop.xlane.xlu0 %1344
    %v1346 = vsel %vm266, %v1336, 0.0
    %1347 = vadd.xlane.f32.xlu0 %v1346
    %v1348 = vpop.xlane.xlu0 %1347
    %v1349 = vsel %vm266, %v1337, 0.0
    %1350 = vadd.xlane.f32.xlu0 %v1349
    %v1351 = vpop.xlane.xlu0 %1350
    %v1352 = vsel %vm266, %v1338, 0.0
    %1353 = vadd.xlane.f32.xlu0 %v1352
    %v1354 = vpop.xlane.xlu0 %1353
    %v1355 = vsel %vm266, %v1339, 0.0
    %1356 = vadd.xlane.f32.xlu0 %v1355
    %v1357 = vpop.xlane.xlu0 %1356
    %v1358 = vsel %vm266, %v1340, 0.0
    %1359 = vadd.xlane.f32.xlu0 %v1358
    %v1360 = vpop.xlane.xlu0 %1359
    %v1361 = vsel %vm266, %v1341, 0.0
    %1362 = vadd.xlane.f32.xlu0 %v1361
    %v1363 = vpop.xlane.xlu0 %1362
    %v1364 = vsel %vm266, %v1342, 0.0
    %1365 = vadd.xlane.f32.xlu0 %v1364
    %v1366 = vpop.xlane.xlu0 %1365
    %v1367 = vstv %s1037
    %v1368 = vadd.f32 %v1345, %v1367
    %v1369 = vadd.f32 %v1348, %v1367
    %v1370 = vadd.f32 %v1351, %v1367
    %v1371 = vadd.f32 %v1354, %v1367
    %v1372 = vadd.f32 %v1357, %v1367
    %v1373 = vadd.f32 %v1360, %v1367
    %v1374 = vadd.f32 %v1363, %v1367
    %v1375 = vadd.f32 %v1366, %v1367
    %v1376 = vsel %vm266, %v996, %v1368
    %v1377 = vsel %vm266, %v1001, %v1369
    %v1378 = vsel %vm266, %v1006, %v1370
    %v1379 = vsel %vm266, %v1011, %v1371
    %v1380 = vsel %vm266, %v1016, %v1372
    %v1381 = vsel %vm266, %v1021, %v1373
    %v1382 = vsel %vm266, %v1026, %v1374
    %v1383 = vsel %vm266, %v1031, %v1375
    %1384 = vst [vmem:[%s10] sm:$0xff] %v1376
    %1385 = vst [vmem:[%s10 + $0x8] sm:$0xff] %v1377
    %1386 = vst [vmem:[%s10 + $0x10] sm:$0xff] %v1378
    %1387 = vst [vmem:[%s10 + $0x18] sm:$0xff] %v1379
    %1388 = vst [vmem:[%s10 + $0x20] sm:$0xff] %v1380
    %1389 = vst [vmem:[%s10 + $0x28] sm:$0xff] %v1381
    %1390 = vst [vmem:[%s10 + $0x30] sm:$0xff] %v1382
    %1391 = vst [vmem:[%s10 + $0x38] sm:$0xff] %v1383
    // Predicated region
    $region46: #{network_forward.4} parent=1 // pred_check
      _
    $region47: #{network_forward.4} parent=1 // pred_check_branch
      %1393 = sbr.rel (0) target = $region49
    $region48: #{network_forward.4} parent=1 // pred_region
      _
    $region49: #{network_forward.4} parent=1 // pred_fallthru
      _
    // Predicated region
    $region50: #{network_forward.4} parent=1 // pred_check
      _
    $region51: #{network_forward.4} parent=1 // pred_check_branch
      %1395 = sbr.rel (0) target = $region53
    $region52: #{network_forward.4} parent=1 // pred_region
      _
    $region53: #{network_forward.4} parent=1 // pred_fallthru
      _
    %1396 = vsyncpa [#allocation3], 1

// kernel: network_forward.5
$region0: #{network_forward.5}
  #allocation0 [shape = 'u32[]', space=smem, size = 0x4, offset = 0x4, fixed_abs, tag = 'smem constant byte address 0x4 - core index']
  #allocation1 [shape = 'u32[144,128]{1,0:T(1,128)}', space=vmem, size = 0x12000, scoped, tag = 'internal scratch']
  %s0 = inlined_call_operand.vmem [shape: f32[64,128], index: 0, kind: input, shape index: {}]
  %s1 = inlined_call_operand.vmem [shape: f32[64,1], index: 1, kind: input, shape index: {}]
  %s2 = inlined_call_operand.vmem [shape: f32[4,64,1], index: 2, kind: input, shape index: {}]
  %s3 = inlined_call_operand.vmem [shape: f32[64,128], index: 3, kind: input, shape index: {}]
  %s4 = inlined_call_operand.vmem [shape: f32[64,1], index: 4, kind: input, shape index: {}]
  %s5 = inlined_call_operand.vmem [shape: f32[4,64,1], index: 5, kind: input, shape index: {}]
  %s6 = inlined_call_operand.vmem [shape: f32[4,12], index: 6, kind: input, shape index: {}]
  %s7 = inlined_call_operand.vmem [shape: f32[128,64], index: 7, kind: input, shape index: {}]
  %s8 = inlined_call_operand.vmem [shape: f32[128,64], index: 8, kind: input, shape index: {}]
  %s9 = inlined_call_operand.vmem [shape: f32[12,64], index: 9, kind: input, shape index: {}]
  %s10 = inlined_call_operand.vmem [shape: f32[1,64], index: 10, kind: input, shape index: {}]
  %s11 = inlined_call_operand.vmem [shape: f32[1,64], index: 11, kind: input, shape index: {}]
  %s12 = inlined_call_operand.vmem [shape: f32[1,64], index: 12, kind: input, shape index: {}]
  %s13 = inlined_call_operand.vmem [shape: f32[64,32], index: 13, kind: input, shape index: {}]
  %s14 = inlined_call_operand.vmem [shape: f32[1,32], index: 14, kind: input, shape index: {}]
  %s15 = inlined_call_operand.vmem [shape: f32[1,32], index: 15, kind: input, shape index: {}]
  %s16 = inlined_call_operand.vmem [shape: f32[1,32], index: 16, kind: input, shape index: {}]
  %s17 = inlined_call_operand.vmem [shape: f32[32,2], index: 17, kind: input, shape index: {}]
  %s18 = inlined_call_operand.vmem [shape: f32[1,2], index: 18, kind: input, shape index: {}]
  %s19 = inlined_call_operand.vmem [shape: f32[4,2], index: 19, kind: output, shape index: {}]
  %s20 = sld [smem:[#allocation0]]
  $region86: #{network_forward.5} parent=0
    _
  %s22 = ssub.s32 1, %s20
  %s23 = scalar_select 0, %s22, %s20
  // Predicated region
  $region2: #{network_forward.5} parent=0 // pred_check
    _
  $region3: #{network_forward.5} parent=0 // pred_check_branch
    %25 = sbr.rel (0) target = $region5
  $region4: #{network_forward.5} parent=0 // pred_region
    _
  $region5: #{network_forward.5} parent=0 // pred_fallthru
    _
  // Predicated region
  $region6: #{network_forward.5} parent=0 // pred_check
    _
  $region7: #{network_forward.5} parent=0 // pred_check_branch
    %27 = sbr.rel (0) target = $region9
  $region8: #{network_forward.5} parent=0 // pred_region
    _
  $region9: #{network_forward.5} parent=0 // pred_fallthru
    _
  // Predicated region
  $region10: #{network_forward.5} parent=0 // pred_check
    _
  $region11: #{network_forward.5} parent=0 // pred_check_branch
    %29 = sbr.rel (0) target = $region13
  $region12: #{network_forward.5} parent=0 // pred_region
    _
  $region13: #{network_forward.5} parent=0 // pred_fallthru
    _
  // Predicated region
  $region14: #{network_forward.5} parent=0 // pred_check
    _
  $region15: #{network_forward.5} parent=0 // pred_check_branch
    %31 = sbr.rel (0) target = $region17
  $region16: #{network_forward.5} parent=0 // pred_region
    _
  $region17: #{network_forward.5} parent=0 // pred_fallthru
    _
  // Predicated region
  $region18: #{network_forward.5} parent=0 // pred_check
    _
  $region19: #{network_forward.5} parent=0 // pred_check_branch
    %33 = sbr.rel (0) target = $region21
  $region20: #{network_forward.5} parent=0 // pred_region
    _
  $region21: #{network_forward.5} parent=0 // pred_fallthru
    _
  // Predicated region
  $region22: #{network_forward.5} parent=0 // pred_check
    _
  $region23: #{network_forward.5} parent=0 // pred_check_branch
    %35 = sbr.rel (0) target = $region25
  $region24: #{network_forward.5} parent=0 // pred_region
    _
  $region25: #{network_forward.5} parent=0 // pred_fallthru
    _
  // Predicated region
  $region26: #{network_forward.5} parent=0 // pred_check
    _
  $region27: #{network_forward.5} parent=0 // pred_check_branch
    %37 = sbr.rel (0) target = $region29
  $region28: #{network_forward.5} parent=0 // pred_region
    _
  $region29: #{network_forward.5} parent=0 // pred_fallthru
    _
  // Predicated region
  $region30: #{network_forward.5} parent=0 // pred_check
    _
  $region31: #{network_forward.5} parent=0 // pred_check_branch
    %39 = sbr.rel (0) target = $region33
  $region32: #{network_forward.5} parent=0 // pred_region
    _
  $region33: #{network_forward.5} parent=0 // pred_fallthru
    _
  // Predicated region
  $region34: #{network_forward.5} parent=0 // pred_check
    _
  $region35: #{network_forward.5} parent=0 // pred_check_branch
    %41 = sbr.rel (0) target = $region37
  $region36: #{network_forward.5} parent=0 // pred_region
    _
  $region37: #{network_forward.5} parent=0 // pred_fallthru
    _
  // Predicated region
  $region38: #{network_forward.5} parent=0 // pred_check
    _
  $region39: #{network_forward.5} parent=0 // pred_check_branch
    %43 = sbr.rel (0) target = $region41
  $region40: #{network_forward.5} parent=0 // pred_region
    _
  $region41: #{network_forward.5} parent=0 // pred_fallthru
    _
  // Predicated region
  $region42: #{network_forward.5} parent=0 // pred_check
    _
  $region43: #{network_forward.5} parent=0 // pred_check_branch
    %45 = sbr.rel (0) target = $region45
  $region44: #{network_forward.5} parent=0 // pred_region
    _
  $region45: #{network_forward.5} parent=0 // pred_fallthru
    _
  // Predicated region
  $region46: #{network_forward.5} parent=0 // pred_check
    _
  $region47: #{network_forward.5} parent=0 // pred_check_branch
    %47 = sbr.rel (0) target = $region49
  $region48: #{network_forward.5} parent=0 // pred_region
    _
  $region49: #{network_forward.5} parent=0 // pred_fallthru
    _
  // Predicated region
  $region50: #{network_forward.5} parent=0 // pred_check
    _
  $region51: #{network_forward.5} parent=0 // pred_check_branch
    %49 = sbr.rel (0) target = $region53
  $region52: #{network_forward.5} parent=0 // pred_region
    _
  $region53: #{network_forward.5} parent=0 // pred_fallthru
    _
  // Predicated region
  $region54: #{network_forward.5} parent=0 // pred_check
    _
  $region55: #{network_forward.5} parent=0 // pred_check_branch
    %51 = sbr.rel (0) target = $region57
  $region56: #{network_forward.5} parent=0 // pred_region
    _
  $region57: #{network_forward.5} parent=0 // pred_fallthru
    _
  // Predicated region
  $region58: #{network_forward.5} parent=0 // pred_check
    _
  $region59: #{network_forward.5} parent=0 // pred_check_branch
    %53 = sbr.rel (0) target = $region61
  $region60: #{network_forward.5} parent=0 // pred_region
    _
  $region61: #{network_forward.5} parent=0 // pred_fallthru
    _
  // Predicated region
  $region62: #{network_forward.5} parent=0 // pred_check
    _
  $region63: #{network_forward.5} parent=0 // pred_check_branch
    %55 = sbr.rel (0) target = $region65
  $region64: #{network_forward.5} parent=0 // pred_region
    _
  $region65: #{network_forward.5} parent=0 // pred_fallthru
    _
  // Predicated region
  $region66: #{network_forward.5} parent=0 // pred_check
    _
  $region67: #{network_forward.5} parent=0 // pred_check_branch
    %57 = sbr.rel (0) target = $region69
  $region68: #{network_forward.5} parent=0 // pred_region
    _
  $region69: #{network_forward.5} parent=0 // pred_fallthru
    _
  // Predicated region
  $region70: #{network_forward.5} parent=0 // pred_check
    _
  $region71: #{network_forward.5} parent=0 // pred_check_branch
    %59 = sbr.rel (0) target = $region73
  $region72: #{network_forward.5} parent=0 // pred_region
    _
  $region73: #{network_forward.5} parent=0 // pred_fallthru
    _
  // Predicated region
  $region74: #{network_forward.5} parent=0 // pred_check
    _
  $region75: #{network_forward.5} parent=0 // pred_check_branch
    %61 = sbr.rel (0) target = $region77
  $region76: #{network_forward.5} parent=0 // pred_region
    _
  $region77: #{network_forward.5} parent=0 // pred_fallthru
    _
  %v62 = vld [vmem:[%s1] sm:$0xff]
  %v63 = vld [vmem:[%s1 + $0x8] sm:$0xff]
  %v64 = vld [vmem:[%s1 + $0x10] sm:$0xff]
  %v65 = vld [vmem:[%s1 + $0x18] sm:$0xff]
  %v66 = vld [vmem:[%s1 + $0x20] sm:$0xff]
  %v67 = vld [vmem:[%s1 + $0x28] sm:$0xff]
  %v68 = vld [vmem:[%s1 + $0x30] sm:$0xff]
  %v69 = vld [vmem:[%s1 + $0x38] sm:$0xff]
  %v70 = vld [vmem:[%s0] sm:$0xff]
  %v71 = vld [vmem:[%s0 + $0x8] sm:$0xff]
  %v72 = vld [vmem:[%s0 + $0x10] sm:$0xff]
  %v73 = vld [vmem:[%s0 + $0x18] sm:$0xff]
  %v74 = vld [vmem:[%s0 + $0x20] sm:$0xff]
  %v75 = vld [vmem:[%s0 + $0x28] sm:$0xff]
  %v76 = vld [vmem:[%s0 + $0x30] sm:$0xff]
  %v77 = vld [vmem:[%s0 + $0x38] sm:$0xff]
  %v78 = vsub.f32 0.0, %v70
  %v79 = vsub.f32 0.0, %v71
  %v80 = vsub.f32 0.0, %v72
  %v81 = vsub.f32 0.0, %v73
  %v82 = vsub.f32 0.0, %v74
  %v83 = vsub.f32 0.0, %v75
  %v84 = vsub.f32 0.0, %v76
  %v85 = vsub.f32 0.0, %v77
  %v86 = vmul.f32 %v78, 1.442695
  %v87 = vpow.pop %v86
  %v88 = vmul.f32 %v79, 1.442695
  %v89 = vpow.pop %v88
  %v90 = vmul.f32 %v80, 1.442695
  %v91 = vpow.pop %v90
  %v92 = vmul.f32 %v81, 1.442695
  %v93 = vpow.pop %v92
  %v94 = vmul.f32 %v82, 1.442695
  %v95 = vpow.pop %v94
  %v96 = vmul.f32 %v83, 1.442695
  %v97 = vpow.pop %v96
  %v98 = vmul.f32 %v84, 1.442695
  %v99 = vpow.pop %v98
  %v100 = vmul.f32 %v85, 1.442695
  %v101 = vpow.pop %v100
  %v102 = vadd.f32 %v87, 1.0
  %v103 = vadd.f32 %v89, 1.0
  %v104 = vadd.f32 %v91, 1.0
  %v105 = vadd.f32 %v93, 1.0
  %v106 = vadd.f32 %v95, 1.0
  %v107 = vadd.f32 %v97, 1.0
  %v108 = vadd.f32 %v99, 1.0
  %v109 = vadd.f32 %v101, 1.0
  %v110 = vrcp.pop %v102
  %v111 = vmul.f32 1.0, %v110
  %v112 = vrcp.pop %v103
  %v113 = vmul.f32 1.0, %v112
  %v114 = vrcp.pop %v104
  %v115 = vmul.f32 1.0, %v114
  %v116 = vrcp.pop %v105
  %v117 = vmul.f32 1.0, %v116
  %v118 = vrcp.pop %v106
  %v119 = vmul.f32 1.0, %v118
  %v120 = vrcp.pop %v107
  %v121 = vmul.f32 1.0, %v120
  %v122 = vrcp.pop %v108
  %v123 = vmul.f32 1.0, %v122
  %v124 = vrcp.pop %v109
  %v125 = vmul.f32 1.0, %v124
  %134 = vrot.lane.b32.xlu0 %v111, 64
  %v135 = vpop.permute.xlu0 %134
  %136 = vrot.lane.b32.xlu0 %v113, 64
  %v137 = vpop.permute.xlu0 %136
  %138 = vrot.lane.b32.xlu0 %v115, 64
  %v139 = vpop.permute.xlu0 %138
  %140 = vrot.lane.b32.xlu0 %v117, 64
  %v141 = vpop.permute.xlu0 %140
  %142 = vrot.lane.b32.xlu0 %v119, 64
  %v143 = vpop.permute.xlu0 %142
  %144 = vrot.lane.b32.xlu0 %v121, 64
  %v145 = vpop.permute.xlu0 %144
  %146 = vrot.lane.b32.xlu0 %v123, 64
  %v147 = vpop.permute.xlu0 %146
  %148 = vrot.lane.b32.xlu0 %v125, 64
  %v149 = vpop.permute.xlu0 %148
  %v158 = vmul.f32 %v70, %v135
  %v159 = vmul.f32 %v71, %v137
  %v160 = vmul.f32 %v72, %v139
  %v161 = vmul.f32 %v73, %v141
  %v162 = vmul.f32 %v74, %v143
  %v163 = vmul.f32 %v75, %v145
  %v164 = vmul.f32 %v76, %v147
  %v165 = vmul.f32 %v77, %v149
  %167 = vset.pattern.permute.xlu0 0
  %168 = vperm.xlu0 %167, %v62
  %v169 = vpop.permute.xlu0 %168
  %172 = vset.pattern.permute.xlu0 0
  %173 = vperm.xlu0 %172, %v63
  %v174 = vpop.permute.xlu0 %173
  %177 = vset.pattern.permute.xlu0 0
  %178 = vperm.xlu0 %177, %v64
  %v179 = vpop.permute.xlu0 %178
  %182 = vset.pattern.permute.xlu0 0
  %183 = vperm.xlu0 %182, %v65
  %v184 = vpop.permute.xlu0 %183
  %187 = vset.pattern.permute.xlu0 0
  %188 = vperm.xlu0 %187, %v66
  %v189 = vpop.permute.xlu0 %188
  %192 = vset.pattern.permute.xlu0 0
  %193 = vperm.xlu0 %192, %v67
  %v194 = vpop.permute.xlu0 %193
  %197 = vset.pattern.permute.xlu0 0
  %198 = vperm.xlu0 %197, %v68
  %v199 = vpop.permute.xlu0 %198
  %202 = vset.pattern.permute.xlu0 0
  %203 = vperm.xlu0 %202, %v69
  %v204 = vpop.permute.xlu0 %203
  %v206 = vmul.f32 %v158, %v169
  %v207 = vmul.f32 %v159, %v174
  %v208 = vmul.f32 %v160, %v179
  %v209 = vmul.f32 %v161, %v184
  %v210 = vmul.f32 %v162, %v189
  %v211 = vmul.f32 %v163, %v194
  %v212 = vmul.f32 %v164, %v199
  %v213 = vmul.f32 %v165, %v204
  %v214 = vld [vmem:[%s2] sm:$0xff]
  %v215 = vld [vmem:[%s2 + $0x8] sm:$0xff]
  %v216 = vld [vmem:[%s2 + $0x10] sm:$0xff]
  %v217 = vld [vmem:[%s2 + $0x18] sm:$0xff]
  %v218 = vld [vmem:[%s2 + $0x20] sm:$0xff]
  %v219 = vld [vmem:[%s2 + $0x28] sm:$0xff]
  %v220 = vld [vmem:[%s2 + $0x30] sm:$0xff]
  %v221 = vld [vmem:[%s2 + $0x38] sm:$0xff]
  %v222 = vld [vmem:[%s2 + $0x40] sm:$0xff]
  %v223 = vld [vmem:[%s2 + $0x48] sm:$0xff]
  %v224 = vld [vmem:[%s2 + $0x50] sm:$0xff]
  %v225 = vld [vmem:[%s2 + $0x58] sm:$0xff]
  %v226 = vld [vmem:[%s2 + $0x60] sm:$0xff]
  %v227 = vld [vmem:[%s2 + $0x68] sm:$0xff]
  %v228 = vld [vmem:[%s2 + $0x70] sm:$0xff]
  %v229 = vld [vmem:[%s2 + $0x78] sm:$0xff]
  %v230 = vld [vmem:[%s2 + $0x80] sm:$0xff]
  %v231 = vld [vmem:[%s2 + $0x88] sm:$0xff]
  %v232 = vld [vmem:[%s2 + $0x90] sm:$0xff]
  %v233 = vld [vmem:[%s2 + $0x98] sm:$0xff]
  %v234 = vld [vmem:[%s2 + $0xa0] sm:$0xff]
  %v235 = vld [vmem:[%s2 + $0xa8] sm:$0xff]
  %v236 = vld [vmem:[%s2 + $0xb0] sm:$0xff]
  %v237 = vld [vmem:[%s2 + $0xb8] sm:$0xff]
  %v238 = vld [vmem:[%s2 + $0xc0] sm:$0xff]
  %v239 = vld [vmem:[%s2 + $0xc8] sm:$0xff]
  %v240 = vld [vmem:[%s2 + $0xd0] sm:$0xff]
  %v241 = vld [vmem:[%s2 + $0xd8] sm:$0xff]
  %v242 = vld [vmem:[%s2 + $0xe0] sm:$0xff]
  %v243 = vld [vmem:[%s2 + $0xe8] sm:$0xff]
  %v244 = vld [vmem:[%s2 + $0xf0] sm:$0xff]
  %v245 = vld [vmem:[%s2 + $0xf8] sm:$0xff]
  %vm246 = vcmp.gt.f32.partialorder %v214, 0.0
  %vm247 = vcmp.gt.f32.partialorder %v215, 0.0
  %vm248 = vcmp.gt.f32.partialorder %v216, 0.0
  %vm249 = vcmp.gt.f32.partialorder %v217, 0.0
  %vm250 = vcmp.gt.f32.partialorder %v218, 0.0
  %vm251 = vcmp.gt.f32.partialorder %v219, 0.0
  %vm252 = vcmp.gt.f32.partialorder %v220, 0.0
  %vm253 = vcmp.gt.f32.partialorder %v221, 0.0
  %vm254 = vcmp.gt.f32.partialorder %v222, 0.0
  %vm255 = vcmp.gt.f32.partialorder %v223, 0.0
  %vm256 = vcmp.gt.f32.partialorder %v224, 0.0
  %vm257 = vcmp.gt.f32.partialorder %v225, 0.0
  %vm258 = vcmp.gt.f32.partialorder %v226, 0.0
  %vm259 = vcmp.gt.f32.partialorder %v227, 0.0
  %vm260 = vcmp.gt.f32.partialorder %v228, 0.0
  %vm261 = vcmp.gt.f32.partialorder %v229, 0.0
  %vm262 = vcmp.gt.f32.partialorder %v230, 0.0
  %vm263 = vcmp.gt.f32.partialorder %v231, 0.0
  %vm264 = vcmp.gt.f32.partialorder %v232, 0.0
  %vm265 = vcmp.gt.f32.partialorder %v233, 0.0
  %vm266 = vcmp.gt.f32.partialorder %v234, 0.0
  %vm267 = vcmp.gt.f32.partialorder %v235, 0.0
  %vm268 = vcmp.gt.f32.partialorder %v236, 0.0
  %vm269 = vcmp.gt.f32.partialorder %v237, 0.0
  %vm270 = vcmp.gt.f32.partialorder %v238, 0.0
  %vm271 = vcmp.gt.f32.partialorder %v239, 0.0
  %vm272 = vcmp.gt.f32.partialorder %v240, 0.0
  %vm273 = vcmp.gt.f32.partialorder %v241, 0.0
  %vm274 = vcmp.gt.f32.partialorder %v242, 0.0
  %vm275 = vcmp.gt.f32.partialorder %v243, 0.0
  %vm276 = vcmp.gt.f32.partialorder %v244, 0.0
  %vm277 = vcmp.gt.f32.partialorder %v245, 0.0
  %v278 = vsel %vm246, 1, 0
  %v279 = vsel %vm247, 1, 0
  %v280 = vsel %vm248, 1, 0
  %v281 = vsel %vm249, 1, 0
  %v282 = vsel %vm250, 1, 0
  %v283 = vsel %vm251, 1, 0
  %v284 = vsel %vm252, 1, 0
  %v285 = vsel %vm253, 1, 0
  %v286 = vsel %vm254, 1, 0
  %v287 = vsel %vm255, 1, 0
  %v288 = vsel %vm256, 1, 0
  %v289 = vsel %vm257, 1, 0
  %v290 = vsel %vm258, 1, 0
  %v291 = vsel %vm259, 1, 0
  %v292 = vsel %vm260, 1, 0
  %v293 = vsel %vm261, 1, 0
  %v294 = vsel %vm262, 1, 0
  %v295 = vsel %vm263, 1, 0
  %v296 = vsel %vm264, 1, 0
  %v297 = vsel %vm265, 1, 0
  %v298 = vsel %vm266, 1, 0
  %v299 = vsel %vm267, 1, 0
  %v300 = vsel %vm268, 1, 0
  %v301 = vsel %vm269, 1, 0
  %v302 = vsel %vm270, 1, 0
  %v303 = vsel %vm271, 1, 0
  %v304 = vsel %vm272, 1, 0
  %v305 = vsel %vm273, 1, 0
  %v306 = vsel %vm274, 1, 0
  %v307 = vsel %vm275, 1, 0
  %v308 = vsel %vm276, 1, 0
  %v309 = vsel %vm277, 1, 0
  %310 = vset.pattern.permute.xlu0 0
  %311 = vperm.xlu0 %310, %v278
  %v312 = vpop.permute.xlu0 %311
  %313 = vset.pattern.permute.xlu0 0
  %314 = vperm.xlu0 %313, %v279
  %v315 = vpop.permute.xlu0 %314
  %316 = vset.pattern.permute.xlu0 0
  %317 = vperm.xlu0 %316, %v280
  %v318 = vpop.permute.xlu0 %317
  %319 = vset.pattern.permute.xlu0 0
  %320 = vperm.xlu0 %319, %v281
  %v321 = vpop.permute.xlu0 %320
  %322 = vset.pattern.permute.xlu0 0
  %323 = vperm.xlu0 %322, %v282
  %v324 = vpop.permute.xlu0 %323
  %325 = vset.pattern.permute.xlu0 0
  %326 = vperm.xlu0 %325, %v283
  %v327 = vpop.permute.xlu0 %326
  %328 = vset.pattern.permute.xlu0 0
  %329 = vperm.xlu0 %328, %v284
  %v330 = vpop.permute.xlu0 %329
  %331 = vset.pattern.permute.xlu0 0
  %332 = vperm.xlu0 %331, %v285
  %v333 = vpop.permute.xlu0 %332
  %334 = vset.pattern.permute.xlu0 0
  %335 = vperm.xlu0 %334, %v286
  %v336 = vpop.permute.xlu0 %335
  %337 = vset.pattern.permute.xlu0 0
  %338 = vperm.xlu0 %337, %v287
  %v339 = vpop.permute.xlu0 %338
  %340 = vset.pattern.permute.xlu0 0
  %341 = vperm.xlu0 %340, %v288
  %v342 = vpop.permute.xlu0 %341
  %343 = vset.pattern.permute.xlu0 0
  %344 = vperm.xlu0 %343, %v289
  %v345 = vpop.permute.xlu0 %344
  %346 = vset.pattern.permute.xlu0 0
  %347 = vperm.xlu0 %346, %v290
  %v348 = vpop.permute.xlu0 %347
  %349 = vset.pattern.permute.xlu0 0
  %350 = vperm.xlu0 %349, %v291
  %v351 = vpop.permute.xlu0 %350
  %352 = vset.pattern.permute.xlu0 0
  %353 = vperm.xlu0 %352, %v292
  %v354 = vpop.permute.xlu0 %353
  %355 = vset.pattern.permute.xlu0 0
  %356 = vperm.xlu0 %355, %v293
  %v357 = vpop.permute.xlu0 %356
  %358 = vset.pattern.permute.xlu0 0
  %359 = vperm.xlu0 %358, %v294
  %v360 = vpop.permute.xlu0 %359
  %361 = vset.pattern.permute.xlu0 0
  %362 = vperm.xlu0 %361, %v295
  %v363 = vpop.permute.xlu0 %362
  %364 = vset.pattern.permute.xlu0 0
  %365 = vperm.xlu0 %364, %v296
  %v366 = vpop.permute.xlu0 %365
  %367 = vset.pattern.permute.xlu0 0
  %368 = vperm.xlu0 %367, %v297
  %v369 = vpop.permute.xlu0 %368
  %370 = vset.pattern.permute.xlu0 0
  %371 = vperm.xlu0 %370, %v298
  %v372 = vpop.permute.xlu0 %371
  %373 = vset.pattern.permute.xlu0 0
  %374 = vperm.xlu0 %373, %v299
  %v375 = vpop.permute.xlu0 %374
  %376 = vset.pattern.permute.xlu0 0
  %377 = vperm.xlu0 %376, %v300
  %v378 = vpop.permute.xlu0 %377
  %379 = vset.pattern.permute.xlu0 0
  %380 = vperm.xlu0 %379, %v301
  %v381 = vpop.permute.xlu0 %380
  %382 = vset.pattern.permute.xlu0 0
  %383 = vperm.xlu0 %382, %v302
  %v384 = vpop.permute.xlu0 %383
  %385 = vset.pattern.permute.xlu0 0
  %386 = vperm.xlu0 %385, %v303
  %v387 = vpop.permute.xlu0 %386
  %388 = vset.pattern.permute.xlu0 0
  %389 = vperm.xlu0 %388, %v304
  %v390 = vpop.permute.xlu0 %389
  %391 = vset.pattern.permute.xlu0 0
  %392 = vperm.xlu0 %391, %v305
  %v393 = vpop.permute.xlu0 %392
  %394 = vset.pattern.permute.xlu0 0
  %395 = vperm.xlu0 %394, %v306
  %v396 = vpop.permute.xlu0 %395
  %397 = vset.pattern.permute.xlu0 0
  %398 = vperm.xlu0 %397, %v307
  %v399 = vpop.permute.xlu0 %398
  %400 = vset.pattern.permute.xlu0 0
  %401 = vperm.xlu0 %400, %v308
  %v402 = vpop.permute.xlu0 %401
  %403 = vset.pattern.permute.xlu0 0
  %404 = vperm.xlu0 %403, %v309
  %v405 = vpop.permute.xlu0 %404
  %vm406 = vcmp.eq.s32.totalorder %v312, 1
  %vm407 = vcmp.eq.s32.totalorder %v315, 1
  %vm408 = vcmp.eq.s32.totalorder %v318, 1
  %vm409 = vcmp.eq.s32.totalorder %v321, 1
  %vm410 = vcmp.eq.s32.totalorder %v324, 1
  %vm411 = vcmp.eq.s32.totalorder %v327, 1
  %vm412 = vcmp.eq.s32.totalorder %v330, 1
  %vm413 = vcmp.eq.s32.totalorder %v333, 1
  %vm414 = vcmp.eq.s32.totalorder %v336, 1
  %vm415 = vcmp.eq.s32.totalorder %v339, 1
  %vm416 = vcmp.eq.s32.totalorder %v342, 1
  %vm417 = vcmp.eq.s32.totalorder %v345, 1
  %vm418 = vcmp.eq.s32.totalorder %v348, 1
  %vm419 = vcmp.eq.s32.totalorder %v351, 1
  %vm420 = vcmp.eq.s32.totalorder %v354, 1
  %vm421 = vcmp.eq.s32.totalorder %v357, 1
  %vm422 = vcmp.eq.s32.totalorder %v360, 1
  %vm423 = vcmp.eq.s32.totalorder %v363, 1
  %vm424 = vcmp.eq.s32.totalorder %v366, 1
  %vm425 = vcmp.eq.s32.totalorder %v369, 1
  %vm426 = vcmp.eq.s32.totalorder %v372, 1
  %vm427 = vcmp.eq.s32.totalorder %v375, 1
  %vm428 = vcmp.eq.s32.totalorder %v378, 1
  %vm429 = vcmp.eq.s32.totalorder %v381, 1
  %vm430 = vcmp.eq.s32.totalorder %v384, 1
  %vm431 = vcmp.eq.s32.totalorder %v387, 1
  %vm432 = vcmp.eq.s32.totalorder %v390, 1
  %vm433 = vcmp.eq.s32.totalorder %v393, 1
  %vm434 = vcmp.eq.s32.totalorder %v396, 1
  %vm435 = vcmp.eq.s32.totalorder %v399, 1
  %vm436 = vcmp.eq.s32.totalorder %v402, 1
  %vm437 = vcmp.eq.s32.totalorder %v405, 1
  %v438 = vsel %vm406, %v206, -1e+30
  %v439 = vsel %vm407, %v207, -1e+30
  %v440 = vsel %vm408, %v208, -1e+30
  %v441 = vsel %vm409, %v209, -1e+30
  %v442 = vsel %vm410, %v210, -1e+30
  %v443 = vsel %vm411, %v211, -1e+30
  %v444 = vsel %vm412, %v212, -1e+30
  %v445 = vsel %vm413, %v213, -1e+30
  %v446 = vsel %vm414, %v206, -1e+30
  %v447 = vsel %vm415, %v207, -1e+30
  %v448 = vsel %vm416, %v208, -1e+30
  %v449 = vsel %vm417, %v209, -1e+30
  %v450 = vsel %vm418, %v210, -1e+30
  %v451 = vsel %vm419, %v211, -1e+30
  %v452 = vsel %vm420, %v212, -1e+30
  %v453 = vsel %vm421, %v213, -1e+30
  %v454 = vsel %vm422, %v206, -1e+30
  %v455 = vsel %vm423, %v207, -1e+30
  %v456 = vsel %vm424, %v208, -1e+30
  %v457 = vsel %vm425, %v209, -1e+30
  %v458 = vsel %vm426, %v210, -1e+30
  %v459 = vsel %vm427, %v211, -1e+30
  %v460 = vsel %vm428, %v212, -1e+30
  %v461 = vsel %vm429, %v213, -1e+30
  %v462 = vsel %vm430, %v206, -1e+30
  %v463 = vsel %vm431, %v207, -1e+30
  %v464 = vsel %vm432, %v208, -1e+30
  %v465 = vsel %vm433, %v209, -1e+30
  %v466 = vsel %vm434, %v210, -1e+30
  %v467 = vsel %vm435, %v211, -1e+30
  %v468 = vsel %vm436, %v212, -1e+30
  %v469 = vsel %vm437, %v213, -1e+30
  %vm470 = vcmask 523264
  %v471 = vsel %vm470, %v438, -inf
  %v472 = vsel %vm470, %v439, -inf
  %v473 = vmax.f32 %v471, %v472
  %v474 = vsel %vm470, %v440, -inf
  %v475 = vmax.f32 %v473, %v474
  %v476 = vsel %vm470, %v441, -inf
  %v477 = vmax.f32 %v475, %v476
  %v478 = vsel %vm470, %v442, -inf
  %v479 = vmax.f32 %v477, %v478
  %v480 = vsel %vm470, %v443, -inf
  %v481 = vmax.f32 %v479, %v480
  %v482 = vsel %vm470, %v444, -inf
  %v483 = vmax.f32 %v481, %v482
  %v484 = vsel %vm470, %v445, -inf
  %v485 = vmax.f32 %v483, %v484
  %v486 = vrot.slane %v485, 4
  %v487 = vmax.f32 %v485, %v486
  %v488 = vrot.slane %v487, 2
  %v489 = vmax.f32 %v487, %v488
  %v490 = vrot.slane %v489, 1
  %v491 = vmax.f32 %v489, %v490
  %v492 = vsel %vm470, %v446, -inf
  %v493 = vsel %vm470, %v447, -inf
  %v494 = vmax.f32 %v492, %v493
  %v495 = vsel %vm470, %v448, -inf
  %v496 = vmax.f32 %v494, %v495
  %v497 = vsel %vm470, %v449, -inf
  %v498 = vmax.f32 %v496, %v497
  %v499 = vsel %vm470, %v450, -inf
  %v500 = vmax.f32 %v498, %v499
  %v501 = vsel %vm470, %v451, -inf
  %v502 = vmax.f32 %v500, %v501
  %v503 = vsel %vm470, %v452, -inf
  %v504 = vmax.f32 %v502, %v503
  %v505 = vsel %vm470, %v453, -inf
  %v506 = vmax.f32 %v504, %v505
  %v507 = vrot.slane %v506, 4
  %v508 = vmax.f32 %v506, %v507
  %v509 = vrot.slane %v508, 2
  %v510 = vmax.f32 %v508, %v509
  %v511 = vrot.slane %v510, 1
  %v512 = vmax.f32 %v510, %v511
  %v513 = vsel %vm470, %v454, -inf
  %v514 = vsel %vm470, %v455, -inf
  %v515 = vmax.f32 %v513, %v514
  %v516 = vsel %vm470, %v456, -inf
  %v517 = vmax.f32 %v515, %v516
  %v518 = vsel %vm470, %v457, -inf
  %v519 = vmax.f32 %v517, %v518
  %v520 = vsel %vm470, %v458, -inf
  %v521 = vmax.f32 %v519, %v520
  %v522 = vsel %vm470, %v459, -inf
  %v523 = vmax.f32 %v521, %v522
  %v524 = vsel %vm470, %v460, -inf
  %v525 = vmax.f32 %v523, %v524
  %v526 = vsel %vm470, %v461, -inf
  %v527 = vmax.f32 %v525, %v526
  %v528 = vrot.slane %v527, 4
  %v529 = vmax.f32 %v527, %v528
  %v530 = vrot.slane %v529, 2
  %v531 = vmax.f32 %v529, %v530
  %v532 = vrot.slane %v531, 1
  %v533 = vmax.f32 %v531, %v532
  %v534 = vsel %vm470, %v462, -inf
  %v535 = vsel %vm470, %v463, -inf
  %v536 = vmax.f32 %v534, %v535
  %v537 = vsel %vm470, %v464, -inf
  %v538 = vmax.f32 %v536, %v537
  %v539 = vsel %vm470, %v465, -inf
  %v540 = vmax.f32 %v538, %v539
  %v541 = vsel %vm470, %v466, -inf
  %v542 = vmax.f32 %v540, %v541
  %v543 = vsel %vm470, %v467, -inf
  %v544 = vmax.f32 %v542, %v543
  %v545 = vsel %vm470, %v468, -inf
  %v546 = vmax.f32 %v544, %v545
  %v547 = vsel %vm470, %v469, -inf
  %v548 = vmax.f32 %v546, %v547
  %v549 = vrot.slane %v548, 4
  %v550 = vmax.f32 %v548, %v549
  %v551 = vrot.slane %v550, 2
  %v552 = vmax.f32 %v550, %v551
  %v553 = vrot.slane %v552, 1
  %v554 = vmax.f32 %v552, %v553
  %vm555 = vcmask 7168
  %v556 = vsel %vm555, %v214, 0.0
  %v557 = vsel %vm555, %v215, 0.0
  %v558 = vadd.f32 %v556, %v557
  %v559 = vsel %vm555, %v216, 0.0
  %v560 = vadd.f32 %v558, %v559
  %v561 = vsel %vm555, %v217, 0.0
  %v562 = vadd.f32 %v560, %v561
  %v563 = vsel %vm555, %v218, 0.0
  %v564 = vadd.f32 %v562, %v563
  %v565 = vsel %vm555, %v219, 0.0
  %v566 = vadd.f32 %v564, %v565
  %v567 = vsel %vm555, %v220, 0.0
  %v568 = vadd.f32 %v566, %v567
  %v569 = vsel %vm555, %v221, 0.0
  %v570 = vadd.f32 %v568, %v569
  %v571 = vrot.slane %v570, 4
  %v572 = vadd.f32 %v570, %v571
  %v573 = vrot.slane %v572, 2
  %v574 = vadd.f32 %v572, %v573
  %v575 = vrot.slane %v574, 1
  %v576 = vadd.f32 %v574, %v575
  %v577 = vsel %vm555, %v222, 0.0
  %v578 = vsel %vm555, %v223, 0.0
  %v579 = vadd.f32 %v577, %v578
  %v580 = vsel %vm555, %v224, 0.0
  %v581 = vadd.f32 %v579, %v580
  %v582 = vsel %vm555, %v225, 0.0
  %v583 = vadd.f32 %v581, %v582
  %v584 = vsel %vm555, %v226, 0.0
  %v585 = vadd.f32 %v583, %v584
  %v586 = vsel %vm555, %v227, 0.0
  %v587 = vadd.f32 %v585, %v586
  %v588 = vsel %vm555, %v228, 0.0
  %v589 = vadd.f32 %v587, %v588
  %v590 = vsel %vm555, %v229, 0.0
  %v591 = vadd.f32 %v589, %v590
  %v592 = vrot.slane %v591, 4
  %v593 = vadd.f32 %v591, %v592
  %v594 = vrot.slane %v593, 2
  %v595 = vadd.f32 %v593, %v594
  %v596 = vrot.slane %v595, 1
  %v597 = vadd.f32 %v595, %v596
  %v598 = vsel %vm555, %v230, 0.0
  %v599 = vsel %vm555, %v231, 0.0
  %v600 = vadd.f32 %v598, %v599
  %v601 = vsel %vm555, %v232, 0.0
  %v602 = vadd.f32 %v600, %v601
  %v603 = vsel %vm555, %v233, 0.0
  %v604 = vadd.f32 %v602, %v603
  %v605 = vsel %vm555, %v234, 0.0
  %v606 = vadd.f32 %v604, %v605
  %v607 = vsel %vm555, %v235, 0.0
  %v608 = vadd.f32 %v606, %v607
  %v609 = vsel %vm555, %v236, 0.0
  %v610 = vadd.f32 %v608, %v609
  %v611 = vsel %vm555, %v237, 0.0
  %v612 = vadd.f32 %v610, %v611
  %v613 = vrot.slane %v612, 4
  %v614 = vadd.f32 %v612, %v613
  %v615 = vrot.slane %v614, 2
  %v616 = vadd.f32 %v614, %v615
  %v617 = vrot.slane %v616, 1
  %v618 = vadd.f32 %v616, %v617
  %v619 = vsel %vm555, %v238, 0.0
  %v620 = vsel %vm555, %v239, 0.0
  %v621 = vadd.f32 %v619, %v620
  %v622 = vsel %vm555, %v240, 0.0
  %v623 = vadd.f32 %v621, %v622
  %v624 = vsel %vm555, %v241, 0.0
  %v625 = vadd.f32 %v623, %v624
  %v626 = vsel %vm555, %v242, 0.0
  %v627 = vadd.f32 %v625, %v626
  %v628 = vsel %vm555, %v243, 0.0
  %v629 = vadd.f32 %v627, %v628
  %v630 = vsel %vm555, %v244, 0.0
  %v631 = vadd.f32 %v629, %v630
  %v632 = vsel %vm555, %v245, 0.0
  %v633 = vadd.f32 %v631, %v632
  %v634 = vrot.slane %v633, 4
  %v635 = vadd.f32 %v633, %v634
  %v636 = vrot.slane %v635, 2
  %v637 = vadd.f32 %v635, %v636
  %v638 = vrot.slane %v637, 1
  %v639 = vadd.f32 %v637, %v638
  %v640 = vmax.f32 %v576, 1.0
  %v641 = vmax.f32 %v597, 1.0
  %v642 = vmax.f32 %v618, 1.0
  %v643 = vmax.f32 %v639, 1.0
  %645 = vset.pattern.permute.xlu0 0
  %646 = vperm.xlu0 %645, %v214
  %v647 = vpop.permute.xlu0 %646
  %650 = vset.pattern.permute.xlu0 0
  %651 = vperm.xlu0 %650, %v215
  %v652 = vpop.permute.xlu0 %651
  %655 = vset.pattern.permute.xlu0 0
  %656 = vperm.xlu0 %655, %v216
  %v657 = vpop.permute.xlu0 %656
  %660 = vset.pattern.permute.xlu0 0
  %661 = vperm.xlu0 %660, %v217
  %v662 = vpop.permute.xlu0 %661
  %665 = vset.pattern.permute.xlu0 0
  %666 = vperm.xlu0 %665, %v218
  %v667 = vpop.permute.xlu0 %666
  %670 = vset.pattern.permute.xlu0 0
  %671 = vperm.xlu0 %670, %v219
  %v672 = vpop.permute.xlu0 %671
  %675 = vset.pattern.permute.xlu0 0
  %676 = vperm.xlu0 %675, %v220
  %v677 = vpop.permute.xlu0 %676
  %680 = vset.pattern.permute.xlu0 0
  %681 = vperm.xlu0 %680, %v221
  %v682 = vpop.permute.xlu0 %681
  %685 = vset.pattern.permute.xlu0 0
  %686 = vperm.xlu0 %685, %v222
  %v687 = vpop.permute.xlu0 %686
  %690 = vset.pattern.permute.xlu0 0
  %691 = vperm.xlu0 %690, %v223
  %v692 = vpop.permute.xlu0 %691
  %695 = vset.pattern.permute.xlu0 0
  %696 = vperm.xlu0 %695, %v224
  %v697 = vpop.permute.xlu0 %696
  %700 = vset.pattern.permute.xlu0 0
  %701 = vperm.xlu0 %700, %v225
  %v702 = vpop.permute.xlu0 %701
  %705 = vset.pattern.permute.xlu0 0
  %706 = vperm.xlu0 %705, %v226
  %v707 = vpop.permute.xlu0 %706
  %710 = vset.pattern.permute.xlu0 0
  %711 = vperm.xlu0 %710, %v227
  %v712 = vpop.permute.xlu0 %711
  %715 = vset.pattern.permute.xlu0 0
  %716 = vperm.xlu0 %715, %v228
  %v717 = vpop.permute.xlu0 %716
  %720 = vset.pattern.permute.xlu0 0
  %721 = vperm.xlu0 %720, %v229
  %v722 = vpop.permute.xlu0 %721
  %725 = vset.pattern.permute.xlu0 0
  %726 = vperm.xlu0 %725, %v230
  %v727 = vpop.permute.xlu0 %726
  %730 = vset.pattern.permute.xlu0 0
  %731 = vperm.xlu0 %730, %v231
  %v732 = vpop.permute.xlu0 %731
  %735 = vset.pattern.permute.xlu0 0
  %736 = vperm.xlu0 %735, %v232
  %v737 = vpop.permute.xlu0 %736
  %740 = vset.pattern.permute.xlu0 0
  %741 = vperm.xlu0 %740, %v233
  %v742 = vpop.permute.xlu0 %741
  %745 = vset.pattern.permute.xlu0 0
  %746 = vperm.xlu0 %745, %v234
  %v747 = vpop.permute.xlu0 %746
  %750 = vset.pattern.permute.xlu0 0
  %751 = vperm.xlu0 %750, %v235
  %v752 = vpop.permute.xlu0 %751
  %755 = vset.pattern.permute.xlu0 0
  %756 = vperm.xlu0 %755, %v236
  %v757 = vpop.permute.xlu0 %756
  %760 = vset.pattern.permute.xlu0 0
  %761 = vperm.xlu0 %760, %v237
  %v762 = vpop.permute.xlu0 %761
  %765 = vset.pattern.permute.xlu0 0
  %766 = vperm.xlu0 %765, %v238
  %v767 = vpop.permute.xlu0 %766
  %770 = vset.pattern.permute.xlu0 0
  %771 = vperm.xlu0 %770, %v239
  %v772 = vpop.permute.xlu0 %771
  %775 = vset.pattern.permute.xlu0 0
  %776 = vperm.xlu0 %775, %v240
  %v777 = vpop.permute.xlu0 %776
  %780 = vset.pattern.permute.xlu0 0
  %781 = vperm.xlu0 %780, %v241
  %v782 = vpop.permute.xlu0 %781
  %785 = vset.pattern.permute.xlu0 0
  %786 = vperm.xlu0 %785, %v242
  %v787 = vpop.permute.xlu0 %786
  %790 = vset.pattern.permute.xlu0 0
  %791 = vperm.xlu0 %790, %v243
  %v792 = vpop.permute.xlu0 %791
  %795 = vset.pattern.permute.xlu0 0
  %796 = vperm.xlu0 %795, %v244
  %v797 = vpop.permute.xlu0 %796
  %800 = vset.pattern.permute.xlu0 0
  %801 = vperm.xlu0 %800, %v245
  %v802 = vpop.permute.xlu0 %801
  %v804 = vmul.f32 %v206, %v647
  %v805 = vmul.f32 %v207, %v652
  %v806 = vmul.f32 %v208, %v657
  %v807 = vmul.f32 %v209, %v662
  %v808 = vmul.f32 %v210, %v667
  %v809 = vmul.f32 %v211, %v672
  %v810 = vmul.f32 %v212, %v677
  %v811 = vmul.f32 %v213, %v682
  %v812 = vmul.f32 %v206, %v687
  %v813 = vmul.f32 %v207, %v692
  %v814 = vmul.f32 %v208, %v697
  %v815 = vmul.f32 %v209, %v702
  %v816 = vmul.f32 %v210, %v707
  %v817 = vmul.f32 %v211, %v712
  %v818 = vmul.f32 %v212, %v717
  %v819 = vmul.f32 %v213, %v722
  %v820 = vmul.f32 %v206, %v727
  %v821 = vmul.f32 %v207, %v732
  %v822 = vmul.f32 %v208, %v737
  %v823 = vmul.f32 %v209, %v742
  %v824 = vmul.f32 %v210, %v747
  %v825 = vmul.f32 %v211, %v752
  %v826 = vmul.f32 %v212, %v757
  %v827 = vmul.f32 %v213, %v762
  %v828 = vmul.f32 %v206, %v767
  %v829 = vmul.f32 %v207, %v772
  %v830 = vmul.f32 %v208, %v777
  %v831 = vmul.f32 %v209, %v782
  %v832 = vmul.f32 %v210, %v787
  %v833 = vmul.f32 %v211, %v792
  %v834 = vmul.f32 %v212, %v797
  %v835 = vmul.f32 %v213, %v802
  %v836 = vsel %vm470, %v804, 0.0
  %v837 = vsel %vm470, %v805, 0.0
  %v838 = vadd.f32 %v836, %v837
  %v839 = vsel %vm470, %v806, 0.0
  %v840 = vadd.f32 %v838, %v839
  %v841 = vsel %vm470, %v807, 0.0
  %v842 = vadd.f32 %v840, %v841
  %v843 = vsel %vm470, %v808, 0.0
  %v844 = vadd.f32 %v842, %v843
  %v845 = vsel %vm470, %v809, 0.0
  %v846 = vadd.f32 %v844, %v845
  %v847 = vsel %vm470, %v810, 0.0
  %v848 = vadd.f32 %v846, %v847
  %v849 = vsel %vm470, %v811, 0.0
  %v850 = vadd.f32 %v848, %v849
  %v851 = vrot.slane %v850, 4
  %v852 = vadd.f32 %v850, %v851
  %v853 = vrot.slane %v852, 2
  %v854 = vadd.f32 %v852, %v853
  %v855 = vrot.slane %v854, 1
  %v856 = vadd.f32 %v854, %v855
  %v857 = vsel %vm470, %v812, 0.0
  %v858 = vsel %vm470, %v813, 0.0
  %v859 = vadd.f32 %v857, %v858
  %v860 = vsel %vm470, %v814, 0.0
  %v861 = vadd.f32 %v859, %v860
  %v862 = vsel %vm470, %v815, 0.0
  %v863 = vadd.f32 %v861, %v862
  %v864 = vsel %vm470, %v816, 0.0
  %v865 = vadd.f32 %v863, %v864
  %v866 = vsel %vm470, %v817, 0.0
  %v867 = vadd.f32 %v865, %v866
  %v868 = vsel %vm470, %v818, 0.0
  %v869 = vadd.f32 %v867, %v868
  %v870 = vsel %vm470, %v819, 0.0
  %v871 = vadd.f32 %v869, %v870
  %v872 = vrot.slane %v871, 4
  %v873 = vadd.f32 %v871, %v872
  %v874 = vrot.slane %v873, 2
  %v875 = vadd.f32 %v873, %v874
  %v876 = vrot.slane %v875, 1
  %v877 = vadd.f32 %v875, %v876
  %v878 = vsel %vm470, %v820, 0.0
  %v879 = vsel %vm470, %v821, 0.0
  %v880 = vadd.f32 %v878, %v879
  %v881 = vsel %vm470, %v822, 0.0
  %v882 = vadd.f32 %v880, %v881
  %v883 = vsel %vm470, %v823, 0.0
  %v884 = vadd.f32 %v882, %v883
  %v885 = vsel %vm470, %v824, 0.0
  %v886 = vadd.f32 %v884, %v885
  %v887 = vsel %vm470, %v825, 0.0
  %v888 = vadd.f32 %v886, %v887
  %v889 = vsel %vm470, %v826, 0.0
  %v890 = vadd.f32 %v888, %v889
  %v891 = vsel %vm470, %v827, 0.0
  %v892 = vadd.f32 %v890, %v891
  %v893 = vrot.slane %v892, 4
  %v894 = vadd.f32 %v892, %v893
  %v895 = vrot.slane %v894, 2
  %v896 = vadd.f32 %v894, %v895
  %v897 = vrot.slane %v896, 1
  %v898 = vadd.f32 %v896, %v897
  %v899 = vsel %vm470, %v828, 0.0
  %v900 = vsel %vm470, %v829, 0.0
  %v901 = vadd.f32 %v899, %v900
  %v902 = vsel %vm470, %v830, 0.0
  %v903 = vadd.f32 %v901, %v902
  %v904 = vsel %vm470, %v831, 0.0
  %v905 = vadd.f32 %v903, %v904
  %v906 = vsel %vm470, %v832, 0.0
  %v907 = vadd.f32 %v905, %v906
  %v908 = vsel %vm470, %v833, 0.0
  %v909 = vadd.f32 %v907, %v908
  %v910 = vsel %vm470, %v834, 0.0
  %v911 = vadd.f32 %v909, %v910
  %v912 = vsel %vm470, %v835, 0.0
  %v913 = vadd.f32 %v911, %v912
  %v914 = vrot.slane %v913, 4
  %v915 = vadd.f32 %v913, %v914
  %v916 = vrot.slane %v915, 2
  %v917 = vadd.f32 %v915, %v916
  %v918 = vrot.slane %v917, 1
  %v919 = vadd.f32 %v917, %v918
  %921 = vset.pattern.permute.xlu0 0
  %922 = vperm.xlu0 %921, %v640
  %v923 = vpop.permute.xlu0 %922
  %926 = vset.pattern.permute.xlu0 0
  %927 = vperm.xlu0 %926, %v641
  %v928 = vpop.permute.xlu0 %927
  %931 = vset.pattern.permute.xlu0 0
  %932 = vperm.xlu0 %931, %v642
  %v933 = vpop.permute.xlu0 %932
  %936 = vset.pattern.permute.xlu0 0
  %937 = vperm.xlu0 %936, %v643
  %v938 = vpop.permute.xlu0 %937
  %v940 = vrcp.pop %v923
  %v941 = vmul.f32 %v856, %v940
  %v942 = vrcp.pop %v928
  %v943 = vmul.f32 %v877, %v942
  %v944 = vrcp.pop %v933
  %v945 = vmul.f32 %v898, %v944
  %v946 = vrcp.pop %v938
  %v947 = vmul.f32 %v919, %v946
  %vm952 = vcmask 1041409
  %v953 = vsel %vm952, %v512, %v491
  %vm954 = vcmask 1042434
  %v955 = vsel %vm954, %v533, %v953
  %vm956 = vcmask 1043459
  %v957 = vsel %vm956, %v554, %v955
  %v963 = vsel %vm952, %v943, %v941
  %v964 = vsel %vm954, %v945, %v963
  %v965 = vsel %vm956, %v947, %v964
  %966 = vrot.lane.b32.xlu0 %v965, 64
  %v967 = vpop.permute.xlu0 %966
  %v969 = vsel %vm470, %v957, %v967
  %v970 = vld [vmem:[%s4] sm:$0xff]
  %v971 = vld [vmem:[%s4 + $0x8] sm:$0xff]
  %v972 = vld [vmem:[%s4 + $0x10] sm:$0xff]
  %v973 = vld [vmem:[%s4 + $0x18] sm:$0xff]
  %v974 = vld [vmem:[%s4 + $0x20] sm:$0xff]
  %v975 = vld [vmem:[%s4 + $0x28] sm:$0xff]
  %v976 = vld [vmem:[%s4 + $0x30] sm:$0xff]
  %v977 = vld [vmem:[%s4 + $0x38] sm:$0xff]
  %v978 = vld [vmem:[%s3] sm:$0xff]
  %v979 = vld [vmem:[%s3 + $0x8] sm:$0xff]
  %v980 = vld [vmem:[%s3 + $0x10] sm:$0xff]
  %v981 = vld [vmem:[%s3 + $0x18] sm:$0xff]
  %v982 = vld [vmem:[%s3 + $0x20] sm:$0xff]
  %v983 = vld [vmem:[%s3 + $0x28] sm:$0xff]
  %v984 = vld [vmem:[%s3 + $0x30] sm:$0xff]
  %v985 = vld [vmem:[%s3 + $0x38] sm:$0xff]
  %v986 = vsub.f32 0.0, %v978
  %v987 = vsub.f32 0.0, %v979
  %v988 = vsub.f32 0.0, %v980
  %v989 = vsub.f32 0.0, %v981
  %v990 = vsub.f32 0.0, %v982
  %v991 = vsub.f32 0.0, %v983
  %v992 = vsub.f32 0.0, %v984
  %v993 = vsub.f32 0.0, %v985
  %v994 = vmul.f32 %v986, 1.442695
  %v995 = vpow.pop %v994
  %v996 = vmul.f32 %v987, 1.442695
  %v997 = vpow.pop %v996
  %v998 = vmul.f32 %v988, 1.442695
  %v999 = vpow.pop %v998
  %v1000 = vmul.f32 %v989, 1.442695
  %v1001 = vpow.pop %v1000
  %v1002 = vmul.f32 %v990, 1.442695
  %v1003 = vpow.pop %v1002
  %v1004 = vmul.f32 %v991, 1.442695
  %v1005 = vpow.pop %v1004
  %v1006 = vmul.f32 %v992, 1.442695
  %v1007 = vpow.pop %v1006
  %v1008 = vmul.f32 %v993, 1.442695
  %v1009 = vpow.pop %v1008
  %v1010 = vadd.f32 %v995, 1.0
  %v1011 = vadd.f32 %v997, 1.0
  %v1012 = vadd.f32 %v999, 1.0
  %v1013 = vadd.f32 %v1001, 1.0
  %v1014 = vadd.f32 %v1003, 1.0
  %v1015 = vadd.f32 %v1005, 1.0
  %v1016 = vadd.f32 %v1007, 1.0
  %v1017 = vadd.f32 %v1009, 1.0
  %v1018 = vrcp.pop %v1010
  %v1019 = vmul.f32 1.0, %v1018
  %v1020 = vrcp.pop %v1011
  %v1021 = vmul.f32 1.0, %v1020
  %v1022 = vrcp.pop %v1012
  %v1023 = vmul.f32 1.0, %v1022
  %v1024 = vrcp.pop %v1013
  %v1025 = vmul.f32 1.0, %v1024
  %v1026 = vrcp.pop %v1014
  %v1027 = vmul.f32 1.0, %v1026
  %v1028 = vrcp.pop %v1015
  %v1029 = vmul.f32 1.0, %v1028
  %v1030 = vrcp.pop %v1016
  %v1031 = vmul.f32 1.0, %v1030
  %v1032 = vrcp.pop %v1017
  %v1033 = vmul.f32 1.0, %v1032
  %1042 = vrot.lane.b32.xlu0 %v1019, 64
  %v1043 = vpop.permute.xlu0 %1042
  %1044 = vrot.lane.b32.xlu0 %v1021, 64
  %v1045 = vpop.permute.xlu0 %1044
  %1046 = vrot.lane.b32.xlu0 %v1023, 64
  %v1047 = vpop.permute.xlu0 %1046
  %1048 = vrot.lane.b32.xlu0 %v1025, 64
  %v1049 = vpop.permute.xlu0 %1048
  %1050 = vrot.lane.b32.xlu0 %v1027, 64
  %v1051 = vpop.permute.xlu0 %1050
  %1052 = vrot.lane.b32.xlu0 %v1029, 64
  %v1053 = vpop.permute.xlu0 %1052
  %1054 = vrot.lane.b32.xlu0 %v1031, 64
  %v1055 = vpop.permute.xlu0 %1054
  %1056 = vrot.lane.b32.xlu0 %v1033, 64
  %v1057 = vpop.permute.xlu0 %1056
  %v1066 = vmul.f32 %v978, %v1043
  %v1067 = vmul.f32 %v979, %v1045
  %v1068 = vmul.f32 %v980, %v1047
  %v1069 = vmul.f32 %v981, %v1049
  %v1070 = vmul.f32 %v982, %v1051
  %v1071 = vmul.f32 %v983, %v1053
  %v1072 = vmul.f32 %v984, %v1055
  %v1073 = vmul.f32 %v985, %v1057
  %1075 = vset.pattern.permute.xlu0 0
  %1076 = vperm.xlu0 %1075, %v970
  %v1077 = vpop.permute.xlu0 %1076
  %1080 = vset.pattern.permute.xlu0 0
  %1081 = vperm.xlu0 %1080, %v971
  %v1082 = vpop.permute.xlu0 %1081
  %1085 = vset.pattern.permute.xlu0 0
  %1086 = vperm.xlu0 %1085, %v972
  %v1087 = vpop.permute.xlu0 %1086
  %1090 = vset.pattern.permute.xlu0 0
  %1091 = vperm.xlu0 %1090, %v973
  %v1092 = vpop.permute.xlu0 %1091
  %1095 = vset.pattern.permute.xlu0 0
  %1096 = vperm.xlu0 %1095, %v974
  %v1097 = vpop.permute.xlu0 %1096
  %1100 = vset.pattern.permute.xlu0 0
  %1101 = vperm.xlu0 %1100, %v975
  %v1102 = vpop.permute.xlu0 %1101
  %1105 = vset.pattern.permute.xlu0 0
  %1106 = vperm.xlu0 %1105, %v976
  %v1107 = vpop.permute.xlu0 %1106
  %1110 = vset.pattern.permute.xlu0 0
  %1111 = vperm.xlu0 %1110, %v977
  %v1112 = vpop.permute.xlu0 %1111
  %v1114 = vmul.f32 %v1066, %v1077
  %v1115 = vmul.f32 %v1067, %v1082
  %v1116 = vmul.f32 %v1068, %v1087
  %v1117 = vmul.f32 %v1069, %v1092
  %v1118 = vmul.f32 %v1070, %v1097
  %v1119 = vmul.f32 %v1071, %v1102
  %v1120 = vmul.f32 %v1072, %v1107
  %v1121 = vmul.f32 %v1073, %v1112
  %v1122 = vld [vmem:[%s5] sm:$0xff]
  %v1123 = vld [vmem:[%s5 + $0x8] sm:$0xff]
  %v1124 = vld [vmem:[%s5 + $0x10] sm:$0xff]
  %v1125 = vld [vmem:[%s5 + $0x18] sm:$0xff]
  %v1126 = vld [vmem:[%s5 + $0x20] sm:$0xff]
  %v1127 = vld [vmem:[%s5 + $0x28] sm:$0xff]
  %v1128 = vld [vmem:[%s5 + $0x30] sm:$0xff]
  %v1129 = vld [vmem:[%s5 + $0x38] sm:$0xff]
  %v1130 = vld [vmem:[%s5 + $0x40] sm:$0xff]
  %v1131 = vld [vmem:[%s5 + $0x48] sm:$0xff]
  %v1132 = vld [vmem:[%s5 + $0x50] sm:$0xff]
  %v1133 = vld [vmem:[%s5 + $0x58] sm:$0xff]
  %v1134 = vld [vmem:[%s5 + $0x60] sm:$0xff]
  %v1135 = vld [vmem:[%s5 + $0x68] sm:$0xff]
  %v1136 = vld [vmem:[%s5 + $0x70] sm:$0xff]
  %v1137 = vld [vmem:[%s5 + $0x78] sm:$0xff]
  %v1138 = vld [vmem:[%s5 + $0x80] sm:$0xff]
  %v1139 = vld [vmem:[%s5 + $0x88] sm:$0xff]
  %v1140 = vld [vmem:[%s5 + $0x90] sm:$0xff]
  %v1141 = vld [vmem:[%s5 + $0x98] sm:$0xff]
  %v1142 = vld [vmem:[%s5 + $0xa0] sm:$0xff]
  %v1143 = vld [vmem:[%s5 + $0xa8] sm:$0xff]
  %v1144 = vld [vmem:[%s5 + $0xb0] sm:$0xff]
  %v1145 = vld [vmem:[%s5 + $0xb8] sm:$0xff]
  %v1146 = vld [vmem:[%s5 + $0xc0] sm:$0xff]
  %v1147 = vld [vmem:[%s5 + $0xc8] sm:$0xff]
  %v1148 = vld [vmem:[%s5 + $0xd0] sm:$0xff]
  %v1149 = vld [vmem:[%s5 + $0xd8] sm:$0xff]
  %v1150 = vld [vmem:[%s5 + $0xe0] sm:$0xff]
  %v1151 = vld [vmem:[%s5 + $0xe8] sm:$0xff]
  %v1152 = vld [vmem:[%s5 + $0xf0] sm:$0xff]
  %v1153 = vld [vmem:[%s5 + $0xf8] sm:$0xff]
  %vm1154 = vcmp.gt.f32.partialorder %v1122, 0.0
  %vm1155 = vcmp.gt.f32.partialorder %v1123, 0.0
  %vm1156 = vcmp.gt.f32.partialorder %v1124, 0.0
  %vm1157 = vcmp.gt.f32.partialorder %v1125, 0.0
  %vm1158 = vcmp.gt.f32.partialorder %v1126, 0.0
  %vm1159 = vcmp.gt.f32.partialorder %v1127, 0.0
  %vm1160 = vcmp.gt.f32.partialorder %v1128, 0.0
  %vm1161 = vcmp.gt.f32.partialorder %v1129, 0.0
  %vm1162 = vcmp.gt.f32.partialorder %v1130, 0.0
  %vm1163 = vcmp.gt.f32.partialorder %v1131, 0.0
  %vm1164 = vcmp.gt.f32.partialorder %v1132, 0.0
  %vm1165 = vcmp.gt.f32.partialorder %v1133, 0.0
  %vm1166 = vcmp.gt.f32.partialorder %v1134, 0.0
  %vm1167 = vcmp.gt.f32.partialorder %v1135, 0.0
  %vm1168 = vcmp.gt.f32.partialorder %v1136, 0.0
  %vm1169 = vcmp.gt.f32.partialorder %v1137, 0.0
  %vm1170 = vcmp.gt.f32.partialorder %v1138, 0.0
  %vm1171 = vcmp.gt.f32.partialorder %v1139, 0.0
  %vm1172 = vcmp.gt.f32.partialorder %v1140, 0.0
  %vm1173 = vcmp.gt.f32.partialorder %v1141, 0.0
  %vm1174 = vcmp.gt.f32.partialorder %v1142, 0.0
  %vm1175 = vcmp.gt.f32.partialorder %v1143, 0.0
  %vm1176 = vcmp.gt.f32.partialorder %v1144, 0.0
  %vm1177 = vcmp.gt.f32.partialorder %v1145, 0.0
  %vm1178 = vcmp.gt.f32.partialorder %v1146, 0.0
  %vm1179 = vcmp.gt.f32.partialorder %v1147, 0.0
  %vm1180 = vcmp.gt.f32.partialorder %v1148, 0.0
  %vm1181 = vcmp.gt.f32.partialorder %v1149, 0.0
  %vm1182 = vcmp.gt.f32.partialorder %v1150, 0.0
  %vm1183 = vcmp.gt.f32.partialorder %v1151, 0.0
  %vm1184 = vcmp.gt.f32.partialorder %v1152, 0.0
  %vm1185 = vcmp.gt.f32.partialorder %v1153, 0.0
  %v1186 = vsel %vm1154, 1, 0
  %v1187 = vsel %vm1155, 1, 0
  %v1188 = vsel %vm1156, 1, 0
  %v1189 = vsel %vm1157, 1, 0
  %v1190 = vsel %vm1158, 1, 0
  %v1191 = vsel %vm1159, 1, 0
  %v1192 = vsel %vm1160, 1, 0
  %v1193 = vsel %vm1161, 1, 0
  %v1194 = vsel %vm1162, 1, 0
  %v1195 = vsel %vm1163, 1, 0
  %v1196 = vsel %vm1164, 1, 0
  %v1197 = vsel %vm1165, 1, 0
  %v1198 = vsel %vm1166, 1, 0
  %v1199 = vsel %vm1167, 1, 0
  %v1200 = vsel %vm1168, 1, 0
  %v1201 = vsel %vm1169, 1, 0
  %v1202 = vsel %vm1170, 1, 0
  %v1203 = vsel %vm1171, 1, 0
  %v1204 = vsel %vm1172, 1, 0
  %v1205 = vsel %vm1173, 1, 0
  %v1206 = vsel %vm1174, 1, 0
  %v1207 = vsel %vm1175, 1, 0
  %v1208 = vsel %vm1176, 1, 0
  %v1209 = vsel %vm1177, 1, 0
  %v1210 = vsel %vm1178, 1, 0
  %v1211 = vsel %vm1179, 1, 0
  %v1212 = vsel %vm1180, 1, 0
  %v1213 = vsel %vm1181, 1, 0
  %v1214 = vsel %vm1182, 1, 0
  %v1215 = vsel %vm1183, 1, 0
  %v1216 = vsel %vm1184, 1, 0
  %v1217 = vsel %vm1185, 1, 0
  %1218 = vset.pattern.permute.xlu0 0
  %1219 = vperm.xlu0 %1218, %v1186
  %v1220 = vpop.permute.xlu0 %1219
  %1221 = vset.pattern.permute.xlu0 0
  %1222 = vperm.xlu0 %1221, %v1187
  %v1223 = vpop.permute.xlu0 %1222
  %1224 = vset.pattern.permute.xlu0 0
  %1225 = vperm.xlu0 %1224, %v1188
  %v1226 = vpop.permute.xlu0 %1225
  %1227 = vset.pattern.permute.xlu0 0
  %1228 = vperm.xlu0 %1227, %v1189
  %v1229 = vpop.permute.xlu0 %1228
  %1230 = vset.pattern.permute.xlu0 0
  %1231 = vperm.xlu0 %1230, %v1190
  %v1232 = vpop.permute.xlu0 %1231
  %1233 = vset.pattern.permute.xlu0 0
  %1234 = vperm.xlu0 %1233, %v1191
  %v1235 = vpop.permute.xlu0 %1234
  %1236 = vset.pattern.permute.xlu0 0
  %1237 = vperm.xlu0 %1236, %v1192
  %v1238 = vpop.permute.xlu0 %1237
  %1239 = vset.pattern.permute.xlu0 0
  %1240 = vperm.xlu0 %1239, %v1193
  %v1241 = vpop.permute.xlu0 %1240
  %1242 = vset.pattern.permute.xlu0 0
  %1243 = vperm.xlu0 %1242, %v1194
  %v1244 = vpop.permute.xlu0 %1243
  %1245 = vset.pattern.permute.xlu0 0
  %1246 = vperm.xlu0 %1245, %v1195
  %v1247 = vpop.permute.xlu0 %1246
  %1248 = vset.pattern.permute.xlu0 0
  %1249 = vperm.xlu0 %1248, %v1196
  %v1250 = vpop.permute.xlu0 %1249
  %1251 = vset.pattern.permute.xlu0 0
  %1252 = vperm.xlu0 %1251, %v1197
  %v1253 = vpop.permute.xlu0 %1252
  %1254 = vset.pattern.permute.xlu0 0
  %1255 = vperm.xlu0 %1254, %v1198
  %v1256 = vpop.permute.xlu0 %1255
  %1257 = vset.pattern.permute.xlu0 0
  %1258 = vperm.xlu0 %1257, %v1199
  %v1259 = vpop.permute.xlu0 %1258
  %1260 = vset.pattern.permute.xlu0 0
  %1261 = vperm.xlu0 %1260, %v1200
  %v1262 = vpop.permute.xlu0 %1261
  %1263 = vset.pattern.permute.xlu0 0
  %1264 = vperm.xlu0 %1263, %v1201
  %v1265 = vpop.permute.xlu0 %1264
  %1266 = vset.pattern.permute.xlu0 0
  %1267 = vperm.xlu0 %1266, %v1202
  %v1268 = vpop.permute.xlu0 %1267
  %1269 = vset.pattern.permute.xlu0 0
  %1270 = vperm.xlu0 %1269, %v1203
  %v1271 = vpop.permute.xlu0 %1270
  %1272 = vset.pattern.permute.xlu0 0
  %1273 = vperm.xlu0 %1272, %v1204
  %v1274 = vpop.permute.xlu0 %1273
  %1275 = vset.pattern.permute.xlu0 0
  %1276 = vperm.xlu0 %1275, %v1205
  %v1277 = vpop.permute.xlu0 %1276
  %1278 = vset.pattern.permute.xlu0 0
  %1279 = vperm.xlu0 %1278, %v1206
  %v1280 = vpop.permute.xlu0 %1279
  %1281 = vset.pattern.permute.xlu0 0
  %1282 = vperm.xlu0 %1281, %v1207
  %v1283 = vpop.permute.xlu0 %1282
  %1284 = vset.pattern.permute.xlu0 0
  %1285 = vperm.xlu0 %1284, %v1208
  %v1286 = vpop.permute.xlu0 %1285
  %1287 = vset.pattern.permute.xlu0 0
  %1288 = vperm.xlu0 %1287, %v1209
  %v1289 = vpop.permute.xlu0 %1288
  %1290 = vset.pattern.permute.xlu0 0
  %1291 = vperm.xlu0 %1290, %v1210
  %v1292 = vpop.permute.xlu0 %1291
  %1293 = vset.pattern.permute.xlu0 0
  %1294 = vperm.xlu0 %1293, %v1211
  %v1295 = vpop.permute.xlu0 %1294
  %1296 = vset.pattern.permute.xlu0 0
  %1297 = vperm.xlu0 %1296, %v1212
  %v1298 = vpop.permute.xlu0 %1297
  %1299 = vset.pattern.permute.xlu0 0
  %1300 = vperm.xlu0 %1299, %v1213
  %v1301 = vpop.permute.xlu0 %1300
  %1302 = vset.pattern.permute.xlu0 0
  %1303 = vperm.xlu0 %1302, %v1214
  %v1304 = vpop.permute.xlu0 %1303
  %1305 = vset.pattern.permute.xlu0 0
  %1306 = vperm.xlu0 %1305, %v1215
  %v1307 = vpop.permute.xlu0 %1306
  %1308 = vset.pattern.permute.xlu0 0
  %1309 = vperm.xlu0 %1308, %v1216
  %v1310 = vpop.permute.xlu0 %1309
  %1311 = vset.pattern.permute.xlu0 0
  %1312 = vperm.xlu0 %1311, %v1217
  %v1313 = vpop.permute.xlu0 %1312
  %vm1314 = vcmp.eq.s32.totalorder %v1220, 1
  %vm1315 = vcmp.eq.s32.totalorder %v1223, 1
  %vm1316 = vcmp.eq.s32.totalorder %v1226, 1
  %vm1317 = vcmp.eq.s32.totalorder %v1229, 1
  %vm1318 = vcmp.eq.s32.totalorder %v1232, 1
  %vm1319 = vcmp.eq.s32.totalorder %v1235, 1
  %vm1320 = vcmp.eq.s32.totalorder %v1238, 1
  %vm1321 = vcmp.eq.s32.totalorder %v1241, 1
  %vm1322 = vcmp.eq.s32.totalorder %v1244, 1
  %vm1323 = vcmp.eq.s32.totalorder %v1247, 1
  %vm1324 = vcmp.eq.s32.totalorder %v1250, 1
  %vm1325 = vcmp.eq.s32.totalorder %v1253, 1
  %vm1326 = vcmp.eq.s32.totalorder %v1256, 1
  %vm1327 = vcmp.eq.s32.totalorder %v1259, 1
  %vm1328 = vcmp.eq.s32.totalorder %v1262, 1
  %vm1329 = vcmp.eq.s32.totalorder %v1265, 1
  %vm1330 = vcmp.eq.s32.totalorder %v1268, 1
  %vm1331 = vcmp.eq.s32.totalorder %v1271, 1
  %vm1332 = vcmp.eq.s32.totalorder %v1274, 1
  %vm1333 = vcmp.eq.s32.totalorder %v1277, 1
  %vm1334 = vcmp.eq.s32.totalorder %v1280, 1
  %vm1335 = vcmp.eq.s32.totalorder %v1283, 1
  %vm1336 = vcmp.eq.s32.totalorder %v1286, 1
  %vm1337 = vcmp.eq.s32.totalorder %v1289, 1
  %vm1338 = vcmp.eq.s32.totalorder %v1292, 1
  %vm1339 = vcmp.eq.s32.totalorder %v1295, 1
  %vm1340 = vcmp.eq.s32.totalorder %v1298, 1
  %vm1341 = vcmp.eq.s32.totalorder %v1301, 1
  %vm1342 = vcmp.eq.s32.totalorder %v1304, 1
  %vm1343 = vcmp.eq.s32.totalorder %v1307, 1
  %vm1344 = vcmp.eq.s32.totalorder %v1310, 1
  %vm1345 = vcmp.eq.s32.totalorder %v1313, 1
  %v1346 = vsel %vm1314, %v1114, -1e+30
  %v1347 = vsel %vm1315, %v1115, -1e+30
  %v1348 = vsel %vm1316, %v1116, -1e+30
  %v1349 = vsel %vm1317, %v1117, -1e+30
  %v1350 = vsel %vm1318, %v1118, -1e+30
  %v1351 = vsel %vm1319, %v1119, -1e+30
  %v1352 = vsel %vm1320, %v1120, -1e+30
  %v1353 = vsel %vm1321, %v1121, -1e+30
  %v1354 = vsel %vm1322, %v1114, -1e+30
  %v1355 = vsel %vm1323, %v1115, -1e+30
  %v1356 = vsel %vm1324, %v1116, -1e+30
  %v1357 = vsel %vm1325, %v1117, -1e+30
  %v1358 = vsel %vm1326, %v1118, -1e+30
  %v1359 = vsel %vm1327, %v1119, -1e+30
  %v1360 = vsel %vm1328, %v1120, -1e+30
  %v1361 = vsel %vm1329, %v1121, -1e+30
  %v1362 = vsel %vm1330, %v1114, -1e+30
  %v1363 = vsel %vm1331, %v1115, -1e+30
  %v1364 = vsel %vm1332, %v1116, -1e+30
  %v1365 = vsel %vm1333, %v1117, -1e+30
  %v1366 = vsel %vm1334, %v1118, -1e+30
  %v1367 = vsel %vm1335, %v1119, -1e+30
  %v1368 = vsel %vm1336, %v1120, -1e+30
  %v1369 = vsel %vm1337, %v1121, -1e+30
  %v1370 = vsel %vm1338, %v1114, -1e+30
  %v1371 = vsel %vm1339, %v1115, -1e+30
  %v1372 = vsel %vm1340, %v1116, -1e+30
  %v1373 = vsel %vm1341, %v1117, -1e+30
  %v1374 = vsel %vm1342, %v1118, -1e+30
  %v1375 = vsel %vm1343, %v1119, -1e+30
  %v1376 = vsel %vm1344, %v1120, -1e+30
  %v1377 = vsel %vm1345, %v1121, -1e+30
  %v1378 = vsel %vm470, %v1346, -inf
  %v1379 = vsel %vm470, %v1347, -inf
  %v1380 = vmax.f32 %v1378, %v1379
  %v1381 = vsel %vm470, %v1348, -inf
  %v1382 = vmax.f32 %v1380, %v1381
  %v1383 = vsel %vm470, %v1349, -inf
  %v1384 = vmax.f32 %v1382, %v1383
  %v1385 = vsel %vm470, %v1350, -inf
  %v1386 = vmax.f32 %v1384, %v1385
  %v1387 = vsel %vm470, %v1351, -inf
  %v1388 = vmax.f32 %v1386, %v1387
  %v1389 = vsel %vm470, %v1352, -inf
  %v1390 = vmax.f32 %v1388, %v1389
  %v1391 = vsel %vm470, %v1353, -inf
  %v1392 = vmax.f32 %v1390, %v1391
  %v1393 = vrot.slane %v1392, 4
  %v1394 = vmax.f32 %v1392, %v1393
  %v1395 = vrot.slane %v1394, 2
  %v1396 = vmax.f32 %v1394, %v1395
  %v1397 = vrot.slane %v1396, 1
  %v1398 = vmax.f32 %v1396, %v1397
  %v1399 = vsel %vm470, %v1354, -inf
  %v1400 = vsel %vm470, %v1355, -inf
  %v1401 = vmax.f32 %v1399, %v1400
  %v1402 = vsel %vm470, %v1356, -inf
  %v1403 = vmax.f32 %v1401, %v1402
  %v1404 = vsel %vm470, %v1357, -inf
  %v1405 = vmax.f32 %v1403, %v1404
  %v1406 = vsel %vm470, %v1358, -inf
  %v1407 = vmax.f32 %v1405, %v1406
  %v1408 = vsel %vm470, %v1359, -inf
  %v1409 = vmax.f32 %v1407, %v1408
  %v1410 = vsel %vm470, %v1360, -inf
  %v1411 = vmax.f32 %v1409, %v1410
  %v1412 = vsel %vm470, %v1361, -inf
  %v1413 = vmax.f32 %v1411, %v1412
  %v1414 = vrot.slane %v1413, 4
  %v1415 = vmax.f32 %v1413, %v1414
  %v1416 = vrot.slane %v1415, 2
  %v1417 = vmax.f32 %v1415, %v1416
  %v1418 = vrot.slane %v1417, 1
  %v1419 = vmax.f32 %v1417, %v1418
  %v1420 = vsel %vm470, %v1362, -inf
  %v1421 = vsel %vm470, %v1363, -inf
  %v1422 = vmax.f32 %v1420, %v1421
  %v1423 = vsel %vm470, %v1364, -inf
  %v1424 = vmax.f32 %v1422, %v1423
  %v1425 = vsel %vm470, %v1365, -inf
  %v1426 = vmax.f32 %v1424, %v1425
  %v1427 = vsel %vm470, %v1366, -inf
  %v1428 = vmax.f32 %v1426, %v1427
  %v1429 = vsel %vm470, %v1367, -inf
  %v1430 = vmax.f32 %v1428, %v1429
  %v1431 = vsel %vm470, %v1368, -inf
  %v1432 = vmax.f32 %v1430, %v1431
  %v1433 = vsel %vm470, %v1369, -inf
  %v1434 = vmax.f32 %v1432, %v1433
  %v1435 = vrot.slane %v1434, 4
  %v1436 = vmax.f32 %v1434, %v1435
  %v1437 = vrot.slane %v1436, 2
  %v1438 = vmax.f32 %v1436, %v1437
  %v1439 = vrot.slane %v1438, 1
  %v1440 = vmax.f32 %v1438, %v1439
  %v1441 = vsel %vm470, %v1370, -inf
  %v1442 = vsel %vm470, %v1371, -inf
  %v1443 = vmax.f32 %v1441, %v1442
  %v1444 = vsel %vm470, %v1372, -inf
  %v1445 = vmax.f32 %v1443, %v1444
  %v1446 = vsel %vm470, %v1373, -inf
  %v1447 = vmax.f32 %v1445, %v1446
  %v1448 = vsel %vm470, %v1374, -inf
  %v1449 = vmax.f32 %v1447, %v1448
  %v1450 = vsel %vm470, %v1375, -inf
  %v1451 = vmax.f32 %v1449, %v1450
  %v1452 = vsel %vm470, %v1376, -inf
  %v1453 = vmax.f32 %v1451, %v1452
  %v1454 = vsel %vm470, %v1377, -inf
  %v1455 = vmax.f32 %v1453, %v1454
  %v1456 = vrot.slane %v1455, 4
  %v1457 = vmax.f32 %v1455, %v1456
  %v1458 = vrot.slane %v1457, 2
  %v1459 = vmax.f32 %v1457, %v1458
  %v1460 = vrot.slane %v1459, 1
  %v1461 = vmax.f32 %v1459, %v1460
  %v1462 = vsel %vm555, %v1122, 0.0
  %v1463 = vsel %vm555, %v1123, 0.0
  %v1464 = vadd.f32 %v1462, %v1463
  %v1465 = vsel %vm555, %v1124, 0.0
  %v1466 = vadd.f32 %v1464, %v1465
  %v1467 = vsel %vm555, %v1125, 0.0
  %v1468 = vadd.f32 %v1466, %v1467
  %v1469 = vsel %vm555, %v1126, 0.0
  %v1470 = vadd.f32 %v1468, %v1469
  %v1471 = vsel %vm555, %v1127, 0.0
  %v1472 = vadd.f32 %v1470, %v1471
  %v1473 = vsel %vm555, %v1128, 0.0
  %v1474 = vadd.f32 %v1472, %v1473
  %v1475 = vsel %vm555, %v1129, 0.0
  %v1476 = vadd.f32 %v1474, %v1475
  %v1477 = vrot.slane %v1476, 4
  %v1478 = vadd.f32 %v1476, %v1477
  %v1479 = vrot.slane %v1478, 2
  %v1480 = vadd.f32 %v1478, %v1479
  %v1481 = vrot.slane %v1480, 1
  %v1482 = vadd.f32 %v1480, %v1481
  %v1483 = vsel %vm555, %v1130, 0.0
  %v1484 = vsel %vm555, %v1131, 0.0
  %v1485 = vadd.f32 %v1483, %v1484
  %v1486 = vsel %vm555, %v1132, 0.0
  %v1487 = vadd.f32 %v1485, %v1486
  %v1488 = vsel %vm555, %v1133, 0.0
  %v1489 = vadd.f32 %v1487, %v1488
  %v1490 = vsel %vm555, %v1134, 0.0
  %v1491 = vadd.f32 %v1489, %v1490
  %v1492 = vsel %vm555, %v1135, 0.0
  %v1493 = vadd.f32 %v1491, %v1492
  %v1494 = vsel %vm555, %v1136, 0.0
  %v1495 = vadd.f32 %v1493, %v1494
  %v1496 = vsel %vm555, %v1137, 0.0
  %v1497 = vadd.f32 %v1495, %v1496
  %v1498 = vrot.slane %v1497, 4
  %v1499 = vadd.f32 %v1497, %v1498
  %v1500 = vrot.slane %v1499, 2
  %v1501 = vadd.f32 %v1499, %v1500
  %v1502 = vrot.slane %v1501, 1
  %v1503 = vadd.f32 %v1501, %v1502
  %v1504 = vsel %vm555, %v1138, 0.0
  %v1505 = vsel %vm555, %v1139, 0.0
  %v1506 = vadd.f32 %v1504, %v1505
  %v1507 = vsel %vm555, %v1140, 0.0
  %v1508 = vadd.f32 %v1506, %v1507
  %v1509 = vsel %vm555, %v1141, 0.0
  %v1510 = vadd.f32 %v1508, %v1509
  %v1511 = vsel %vm555, %v1142, 0.0
  %v1512 = vadd.f32 %v1510, %v1511
  %v1513 = vsel %vm555, %v1143, 0.0
  %v1514 = vadd.f32 %v1512, %v1513
  %v1515 = vsel %vm555, %v1144, 0.0
  %v1516 = vadd.f32 %v1514, %v1515
  %v1517 = vsel %vm555, %v1145, 0.0
  %v1518 = vadd.f32 %v1516, %v1517
  %v1519 = vrot.slane %v1518, 4
  %v1520 = vadd.f32 %v1518, %v1519
  %v1521 = vrot.slane %v1520, 2
  %v1522 = vadd.f32 %v1520, %v1521
  %v1523 = vrot.slane %v1522, 1
  %v1524 = vadd.f32 %v1522, %v1523
  %v1525 = vsel %vm555, %v1146, 0.0
  %v1526 = vsel %vm555, %v1147, 0.0
  %v1527 = vadd.f32 %v1525, %v1526
  %v1528 = vsel %vm555, %v1148, 0.0
  %v1529 = vadd.f32 %v1527, %v1528
  %v1530 = vsel %vm555, %v1149, 0.0
  %v1531 = vadd.f32 %v1529, %v1530
  %v1532 = vsel %vm555, %v1150, 0.0
  %v1533 = vadd.f32 %v1531, %v1532
  %v1534 = vsel %vm555, %v1151, 0.0
  %v1535 = vadd.f32 %v1533, %v1534
  %v1536 = vsel %vm555, %v1152, 0.0
  %v1537 = vadd.f32 %v1535, %v1536
  %v1538 = vsel %vm555, %v1153, 0.0
  %v1539 = vadd.f32 %v1537, %v1538
  %v1540 = vrot.slane %v1539, 4
  %v1541 = vadd.f32 %v1539, %v1540
  %v1542 = vrot.slane %v1541, 2
  %v1543 = vadd.f32 %v1541, %v1542
  %v1544 = vrot.slane %v1543, 1
  %v1545 = vadd.f32 %v1543, %v1544
  %v1546 = vmax.f32 %v1482, 1.0
  %v1547 = vmax.f32 %v1503, 1.0
  %v1548 = vmax.f32 %v1524, 1.0
  %v1549 = vmax.f32 %v1545, 1.0
  %1551 = vset.pattern.permute.xlu0 0
  %1552 = vperm.xlu0 %1551, %v1122
  %v1553 = vpop.permute.xlu0 %1552
  %1556 = vset.pattern.permute.xlu0 0
  %1557 = vperm.xlu0 %1556, %v1123
  %v1558 = vpop.permute.xlu0 %1557
  %1561 = vset.pattern.permute.xlu0 0
  %1562 = vperm.xlu0 %1561, %v1124
  %v1563 = vpop.permute.xlu0 %1562
  %1566 = vset.pattern.permute.xlu0 0
  %1567 = vperm.xlu0 %1566, %v1125
  %v1568 = vpop.permute.xlu0 %1567
  %1571 = vset.pattern.permute.xlu0 0
  %1572 = vperm.xlu0 %1571, %v1126
  %v1573 = vpop.permute.xlu0 %1572
  %1576 = vset.pattern.permute.xlu0 0
  %1577 = vperm.xlu0 %1576, %v1127
  %v1578 = vpop.permute.xlu0 %1577
  %1581 = vset.pattern.permute.xlu0 0
  %1582 = vperm.xlu0 %1581, %v1128
  %v1583 = vpop.permute.xlu0 %1582
  %1586 = vset.pattern.permute.xlu0 0
  %1587 = vperm.xlu0 %1586, %v1129
  %v1588 = vpop.permute.xlu0 %1587
  %1591 = vset.pattern.permute.xlu0 0
  %1592 = vperm.xlu0 %1591, %v1130
  %v1593 = vpop.permute.xlu0 %1592
  %1596 = vset.pattern.permute.xlu0 0
  %1597 = vperm.xlu0 %1596, %v1131
  %v1598 = vpop.permute.xlu0 %1597
  %1601 = vset.pattern.permute.xlu0 0
  %1602 = vperm.xlu0 %1601, %v1132
  %v1603 = vpop.permute.xlu0 %1602
  %1606 = vset.pattern.permute.xlu0 0
  %1607 = vperm.xlu0 %1606, %v1133
  %v1608 = vpop.permute.xlu0 %1607
  %1611 = vset.pattern.permute.xlu0 0
  %1612 = vperm.xlu0 %1611, %v1134
  %v1613 = vpop.permute.xlu0 %1612
  %1616 = vset.pattern.permute.xlu0 0
  %1617 = vperm.xlu0 %1616, %v1135
  %v1618 = vpop.permute.xlu0 %1617
  %1621 = vset.pattern.permute.xlu0 0
  %1622 = vperm.xlu0 %1621, %v1136
  %v1623 = vpop.permute.xlu0 %1622
  %1626 = vset.pattern.permute.xlu0 0
  %1627 = vperm.xlu0 %1626, %v1137
  %v1628 = vpop.permute.xlu0 %1627
  %1631 = vset.pattern.permute.xlu0 0
  %1632 = vperm.xlu0 %1631, %v1138
  %v1633 = vpop.permute.xlu0 %1632
  %1636 = vset.pattern.permute.xlu0 0
  %1637 = vperm.xlu0 %1636, %v1139
  %v1638 = vpop.permute.xlu0 %1637
  %1641 = vset.pattern.permute.xlu0 0
  %1642 = vperm.xlu0 %1641, %v1140
  %v1643 = vpop.permute.xlu0 %1642
  %1646 = vset.pattern.permute.xlu0 0
  %1647 = vperm.xlu0 %1646, %v1141
  %v1648 = vpop.permute.xlu0 %1647
  %1651 = vset.pattern.permute.xlu0 0
  %1652 = vperm.xlu0 %1651, %v1142
  %v1653 = vpop.permute.xlu0 %1652
  %1656 = vset.pattern.permute.xlu0 0
  %1657 = vperm.xlu0 %1656, %v1143
  %v1658 = vpop.permute.xlu0 %1657
  %1661 = vset.pattern.permute.xlu0 0
  %1662 = vperm.xlu0 %1661, %v1144
  %v1663 = vpop.permute.xlu0 %1662
  %1666 = vset.pattern.permute.xlu0 0
  %1667 = vperm.xlu0 %1666, %v1145
  %v1668 = vpop.permute.xlu0 %1667
  %1671 = vset.pattern.permute.xlu0 0
  %1672 = vperm.xlu0 %1671, %v1146
  %v1673 = vpop.permute.xlu0 %1672
  %1676 = vset.pattern.permute.xlu0 0
  %1677 = vperm.xlu0 %1676, %v1147
  %v1678 = vpop.permute.xlu0 %1677
  %1681 = vset.pattern.permute.xlu0 0
  %1682 = vperm.xlu0 %1681, %v1148
  %v1683 = vpop.permute.xlu0 %1682
  %1686 = vset.pattern.permute.xlu0 0
  %1687 = vperm.xlu0 %1686, %v1149
  %v1688 = vpop.permute.xlu0 %1687
  %1691 = vset.pattern.permute.xlu0 0
  %1692 = vperm.xlu0 %1691, %v1150
  %v1693 = vpop.permute.xlu0 %1692
  %1696 = vset.pattern.permute.xlu0 0
  %1697 = vperm.xlu0 %1696, %v1151
  %v1698 = vpop.permute.xlu0 %1697
  %1701 = vset.pattern.permute.xlu0 0
  %1702 = vperm.xlu0 %1701, %v1152
  %v1703 = vpop.permute.xlu0 %1702
  %1706 = vset.pattern.permute.xlu0 0
  %1707 = vperm.xlu0 %1706, %v1153
  %v1708 = vpop.permute.xlu0 %1707
  %v1710 = vmul.f32 %v1114, %v1553
  %v1711 = vmul.f32 %v1115, %v1558
  %v1712 = vmul.f32 %v1116, %v1563
  %v1713 = vmul.f32 %v1117, %v1568
  %v1714 = vmul.f32 %v1118, %v1573
  %v1715 = vmul.f32 %v1119, %v1578
  %v1716 = vmul.f32 %v1120, %v1583
  %v1717 = vmul.f32 %v1121, %v1588
  %v1718 = vmul.f32 %v1114, %v1593
  %v1719 = vmul.f32 %v1115, %v1598
  %v1720 = vmul.f32 %v1116, %v1603
  %v1721 = vmul.f32 %v1117, %v1608
  %v1722 = vmul.f32 %v1118, %v1613
  %v1723 = vmul.f32 %v1119, %v1618
  %v1724 = vmul.f32 %v1120, %v1623
  %v1725 = vmul.f32 %v1121, %v1628
  %v1726 = vmul.f32 %v1114, %v1633
  %v1727 = vmul.f32 %v1115, %v1638
  %v1728 = vmul.f32 %v1116, %v1643
  %v1729 = vmul.f32 %v1117, %v1648
  %v1730 = vmul.f32 %v1118, %v1653
  %v1731 = vmul.f32 %v1119, %v1658
  %v1732 = vmul.f32 %v1120, %v1663
  %v1733 = vmul.f32 %v1121, %v1668
  %v1734 = vmul.f32 %v1114, %v1673
  %v1735 = vmul.f32 %v1115, %v1678
  %v1736 = vmul.f32 %v1116, %v1683
  %v1737 = vmul.f32 %v1117, %v1688
  %v1738 = vmul.f32 %v1118, %v1693
  %v1739 = vmul.f32 %v1119, %v1698
  %v1740 = vmul.f32 %v1120, %v1703
  %v1741 = vmul.f32 %v1121, %v1708
  %v1742 = vsel %vm470, %v1710, 0.0
  %v1743 = vsel %vm470, %v1711, 0.0
  %v1744 = vadd.f32 %v1742, %v1743
  %v1745 = vsel %vm470, %v1712, 0.0
  %v1746 = vadd.f32 %v1744, %v1745
  %v1747 = vsel %vm470, %v1713, 0.0
  %v1748 = vadd.f32 %v1746, %v1747
  %v1749 = vsel %vm470, %v1714, 0.0
  %v1750 = vadd.f32 %v1748, %v1749
  %v1751 = vsel %vm470, %v1715, 0.0
  %v1752 = vadd.f32 %v1750, %v1751
  %v1753 = vsel %vm470, %v1716, 0.0
  %v1754 = vadd.f32 %v1752, %v1753
  %v1755 = vsel %vm470, %v1717, 0.0
  %v1756 = vadd.f32 %v1754, %v1755
  %v1757 = vrot.slane %v1756, 4
  %v1758 = vadd.f32 %v1756, %v1757
  %v1759 = vrot.slane %v1758, 2
  %v1760 = vadd.f32 %v1758, %v1759
  %v1761 = vrot.slane %v1760, 1
  %v1762 = vadd.f32 %v1760, %v1761
  %v1763 = vsel %vm470, %v1718, 0.0
  %v1764 = vsel %vm470, %v1719, 0.0
  %v1765 = vadd.f32 %v1763, %v1764
  %v1766 = vsel %vm470, %v1720, 0.0
  %v1767 = vadd.f32 %v1765, %v1766
  %v1768 = vsel %vm470, %v1721, 0.0
  %v1769 = vadd.f32 %v1767, %v1768
  %v1770 = vsel %vm470, %v1722, 0.0
  %v1771 = vadd.f32 %v1769, %v1770
  %v1772 = vsel %vm470, %v1723, 0.0
  %v1773 = vadd.f32 %v1771, %v1772
  %v1774 = vsel %vm470, %v1724, 0.0
  %v1775 = vadd.f32 %v1773, %v1774
  %v1776 = vsel %vm470, %v1725, 0.0
  %v1777 = vadd.f32 %v1775, %v1776
  %v1778 = vrot.slane %v1777, 4
  %v1779 = vadd.f32 %v1777, %v1778
  %v1780 = vrot.slane %v1779, 2
  %v1781 = vadd.f32 %v1779, %v1780
  %v1782 = vrot.slane %v1781, 1
  %v1783 = vadd.f32 %v1781, %v1782
  %v1784 = vsel %vm470, %v1726, 0.0
  %v1785 = vsel %vm470, %v1727, 0.0
  %v1786 = vadd.f32 %v1784, %v1785
  %v1787 = vsel %vm470, %v1728, 0.0
  %v1788 = vadd.f32 %v1786, %v1787
  %v1789 = vsel %vm470, %v1729, 0.0
  %v1790 = vadd.f32 %v1788, %v1789
  %v1791 = vsel %vm470, %v1730, 0.0
  %v1792 = vadd.f32 %v1790, %v1791
  %v1793 = vsel %vm470, %v1731, 0.0
  %v1794 = vadd.f32 %v1792, %v1793
  %v1795 = vsel %vm470, %v1732, 0.0
  %v1796 = vadd.f32 %v1794, %v1795
  %v1797 = vsel %vm470, %v1733, 0.0
  %v1798 = vadd.f32 %v1796, %v1797
  %v1799 = vrot.slane %v1798, 4
  %v1800 = vadd.f32 %v1798, %v1799
  %v1801 = vrot.slane %v1800, 2
  %v1802 = vadd.f32 %v1800, %v1801
  %v1803 = vrot.slane %v1802, 1
  %v1804 = vadd.f32 %v1802, %v1803
  %v1805 = vsel %vm470, %v1734, 0.0
  %v1806 = vsel %vm470, %v1735, 0.0
  %v1807 = vadd.f32 %v1805, %v1806
  %v1808 = vsel %vm470, %v1736, 0.0
  %v1809 = vadd.f32 %v1807, %v1808
  %v1810 = vsel %vm470, %v1737, 0.0
  %v1811 = vadd.f32 %v1809, %v1810
  %v1812 = vsel %vm470, %v1738, 0.0
  %v1813 = vadd.f32 %v1811, %v1812
  %v1814 = vsel %vm470, %v1739, 0.0
  %v1815 = vadd.f32 %v1813, %v1814
  %v1816 = vsel %vm470, %v1740, 0.0
  %v1817 = vadd.f32 %v1815, %v1816
  %v1818 = vsel %vm470, %v1741, 0.0
  %v1819 = vadd.f32 %v1817, %v1818
  %v1820 = vrot.slane %v1819, 4
  %v1821 = vadd.f32 %v1819, %v1820
  %v1822 = vrot.slane %v1821, 2
  %v1823 = vadd.f32 %v1821, %v1822
  %v1824 = vrot.slane %v1823, 1
  %v1825 = vadd.f32 %v1823, %v1824
  %1827 = vset.pattern.permute.xlu0 0
  %1828 = vperm.xlu0 %1827, %v1546
  %v1829 = vpop.permute.xlu0 %1828
  %1832 = vset.pattern.permute.xlu0 0
  %1833 = vperm.xlu0 %1832, %v1547
  %v1834 = vpop.permute.xlu0 %1833
  %1837 = vset.pattern.permute.xlu0 0
  %1838 = vperm.xlu0 %1837, %v1548
  %v1839 = vpop.permute.xlu0 %1838
  %1842 = vset.pattern.permute.xlu0 0
  %1843 = vperm.xlu0 %1842, %v1549
  %v1844 = vpop.permute.xlu0 %1843
  %v1846 = vrcp.pop %v1829
  %v1847 = vmul.f32 %v1762, %v1846
  %v1848 = vrcp.pop %v1834
  %v1849 = vmul.f32 %v1783, %v1848
  %v1850 = vrcp.pop %v1839
  %v1851 = vmul.f32 %v1804, %v1850
  %v1852 = vrcp.pop %v1844
  %v1853 = vmul.f32 %v1825, %v1852
  %v1858 = vsel %vm952, %v1419, %v1398
  %v1859 = vsel %vm954, %v1440, %v1858
  %v1860 = vsel %vm956, %v1461, %v1859
  %v1866 = vsel %vm952, %v1849, %v1847
  %v1867 = vsel %vm954, %v1851, %v1866
  %v1868 = vsel %vm956, %v1853, %v1867
  %1869 = vrot.lane.b32.xlu0 %v1868, 64
  %v1870 = vpop.permute.xlu0 %1869
  %v1872 = vsel %vm470, %v1860, %v1870
  %v1873 = vld [vmem:[%s7] sm:$0xff]
  %v1874 = vld [vmem:[%s7 + $0x8] sm:$0xff]
  %v1875 = vld [vmem:[%s7 + $0x10] sm:$0xff]
  %v1876 = vld [vmem:[%s7 + $0x18] sm:$0xff]
  %v1877 = vld [vmem:[%s7 + $0x20] sm:$0xff]
  %v1878 = vld [vmem:[%s7 + $0x28] sm:$0xff]
  %v1879 = vld [vmem:[%s7 + $0x30] sm:$0xff]
  %v1880 = vld [vmem:[%s7 + $0x38] sm:$0xff]
  %v1881 = vld [vmem:[%s7 + $0x40] sm:$0xff]
  %v1882 = vld [vmem:[%s7 + $0x48] sm:$0xff]
  %v1883 = vld [vmem:[%s7 + $0x50] sm:$0xff]
  %v1884 = vld [vmem:[%s7 + $0x58] sm:$0xff]
  %v1885 = vld [vmem:[%s7 + $0x60] sm:$0xff]
  %v1886 = vld [vmem:[%s7 + $0x68] sm:$0xff]
  %v1887 = vld [vmem:[%s7 + $0x70] sm:$0xff]
  %v1888 = vld [vmem:[%s7 + $0x78] sm:$0xff]
  %v1889 = vld [vmem:[%s8] sm:$0xff]
  %v1890 = vld [vmem:[%s8 + $0x8] sm:$0xff]
  %v1891 = vld [vmem:[%s8 + $0x10] sm:$0xff]
  %v1892 = vld [vmem:[%s8 + $0x18] sm:$0xff]
  %v1893 = vld [vmem:[%s8 + $0x20] sm:$0xff]
  %v1894 = vld [vmem:[%s8 + $0x28] sm:$0xff]
  %v1895 = vld [vmem:[%s8 + $0x30] sm:$0xff]
  %v1896 = vld [vmem:[%s8 + $0x38] sm:$0xff]
  %v1897 = vld [vmem:[%s8 + $0x40] sm:$0xff]
  %v1898 = vld [vmem:[%s8 + $0x48] sm:$0xff]
  %v1899 = vld [vmem:[%s8 + $0x50] sm:$0xff]
  %v1900 = vld [vmem:[%s8 + $0x58] sm:$0xff]
  %v1901 = vld [vmem:[%s8 + $0x60] sm:$0xff]
  %v1902 = vld [vmem:[%s8 + $0x68] sm:$0xff]
  %v1903 = vld [vmem:[%s8 + $0x70] sm:$0xff]
  %v1904 = vld [vmem:[%s8 + $0x78] sm:$0xff]
  %1905 = vmatprep.subr.mxu0 0.0
  %1906 = vmatpush1.msra.mxu0 %v1904
  %1907 = vmatprep.subr.mxu0 0.0
  %1908 = vmatpush1.msra.mxu0 %v1903
  %1909 = vmatprep.subr.mxu0 0.0
  %1910 = vmatpush1.msra.mxu0 %v1902
  %1911 = vmatprep.subr.mxu0 0.0
  %1912 = vmatpush1.msra.mxu0 %v1901
  %1913 = vmatprep.subr.mxu0 0.0
  %1914 = vmatpush1.msra.mxu0 %v1900
  %1915 = vmatprep.subr.mxu0 0.0
  %1916 = vmatpush1.msra.mxu0 %v1899
  %1917 = vmatprep.subr.mxu0 0.0
  %1918 = vmatpush1.msra.mxu0 %v1898
  %1919 = vmatprep.subr.mxu0 0.0
  %1920 = vmatpush1.msra.mxu0 %v1897
  %1921 = vmatprep.subr.mxu0 0.0
  %1922 = vmatpush1.msra.mxu0 %v1896
  %1923 = vmatprep.subr.mxu0 0.0
  %1924 = vmatpush1.msra.mxu0 %v1895
  %1925 = vmatprep.subr.mxu0 0.0
  %1926 = vmatpush1.msra.mxu0 %v1894
  %1927 = vmatprep.subr.mxu0 0.0
  %1928 = vmatpush1.msra.mxu0 %v1893
  %1929 = vmatprep.subr.mxu0 0.0
  %1930 = vmatpush1.msra.mxu0 %v1892
  %1931 = vmatprep.subr.mxu0 0.0
  %1932 = vmatpush1.msra.mxu0 %v1891
  %1933 = vmatprep.subr.mxu0 0.0
  %1934 = vmatpush1.msra.mxu0 %v1890
  %1935 = vmatprep.subr.mxu0 0.0
  %1936 = vmatpush1.msra.mxu0 %v1889
  %1937 = vmatprep.subr.mxu0 0.0
  %1938 = vmatpush2.msra.mxu0 0.0
  %1939 = vmatprep.subr.mxu0 0.0
  %1940 = vmatpush2.msra.mxu0 0.0
  %1941 = vmatprep.subr.mxu0 0.0
  %1942 = vmatpush2.msra.mxu0 0.0
  %1943 = vmatprep.subr.mxu0 0.0
  %1944 = vmatpush2.msra.mxu0 0.0
  %1945 = vmatprep.subr.mxu0 0.0
  %1946 = vmatpush2.msra.mxu0 0.0
  %1947 = vmatprep.subr.mxu0 0.0
  %1948 = vmatpush2.msra.mxu0 0.0
  %1949 = vmatprep.subr.mxu0 0.0
  %1950 = vmatpush2.msra.mxu0 0.0
  %1951 = vmatprep.subr.mxu0 0.0
  %1952 = vmatpush2.msra.mxu0 0.0
  %1953 = vmatprep.subr.mxu0 0.0
  %1954 = vmatpush2.msra.mxu0 0.0
  %1955 = vmatprep.subr.mxu0 0.0
  %1956 = vmatpush2.msra.mxu0 0.0
  %1957 = vmatprep.subr.mxu0 0.0
  %1958 = vmatpush2.msra.mxu0 0.0
  %1959 = vmatprep.subr.mxu0 0.0
  %1960 = vmatpush2.msra.mxu0 0.0
  %1961 = vmatprep.subr.mxu0 0.0
  %1962 = vmatpush2.msra.mxu0 0.0
  %1963 = vmatprep.subr.mxu0 0.0
  %1964 = vmatpush2.msra.mxu0 0.0
  %1965 = vmatprep.subr.mxu0 0.0
  %1966 = vmatpush2.msra.mxu0 0.0
  %1967 = vmatprep.subr.mxu0 0.0
  %1968 = vmatpush2.msra.mxu0 0.0
  %1969 = vmatprep.mubr.f32.mxu0 0.0
  %1970 = vmatmul.mubr.f32.gmra.mxu0 %v1872
  %v1971 = vpop.f32.mrf.mxu0
  %v1972 = vadd.f32 0.0, %v1971
  %v1973 = vpop.f32.mrf.mxu0
  %1974 = vdwg.mxu0
  %1975 = vmatprep.subr.mxu0 0.0
  %1976 = vmatpush1.msra.mxu0 %v1888
  %1977 = vmatprep.subr.mxu0 0.0
  %1978 = vmatpush1.msra.mxu0 %v1887
  %1979 = vmatprep.subr.mxu0 0.0
  %1980 = vmatpush1.msra.mxu0 %v1886
  %1981 = vmatprep.subr.mxu0 0.0
  %1982 = vmatpush1.msra.mxu0 %v1885
  %1983 = vmatprep.subr.mxu0 0.0
  %1984 = vmatpush1.msra.mxu0 %v1884
  %1985 = vmatprep.subr.mxu0 0.0
  %1986 = vmatpush1.msra.mxu0 %v1883
  %1987 = vmatprep.subr.mxu0 0.0
  %1988 = vmatpush1.msra.mxu0 %v1882
  %1989 = vmatprep.subr.mxu0 0.0
  %1990 = vmatpush1.msra.mxu0 %v1881
  %1991 = vmatprep.subr.mxu0 0.0
  %1992 = vmatpush1.msra.mxu0 %v1880
  %1993 = vmatprep.subr.mxu0 0.0
  %1994 = vmatpush1.msra.mxu0 %v1879
  %1995 = vmatprep.subr.mxu0 0.0
  %1996 = vmatpush1.msra.mxu0 %v1878
  %1997 = vmatprep.subr.mxu0 0.0
  %1998 = vmatpush1.msra.mxu0 %v1877
  %1999 = vmatprep.subr.mxu0 0.0
  %2000 = vmatpush1.msra.mxu0 %v1876
  %2001 = vmatprep.subr.mxu0 0.0
  %2002 = vmatpush1.msra.mxu0 %v1875
  %2003 = vmatprep.subr.mxu0 0.0
  %2004 = vmatpush1.msra.mxu0 %v1874
  %2005 = vmatprep.subr.mxu0 0.0
  %2006 = vmatpush1.msra.mxu0 %v1873
  %2007 = vmatprep.subr.mxu0 0.0
  %2008 = vmatpush2.msra.mxu0 0.0
  %2009 = vmatprep.subr.mxu0 0.0
  %2010 = vmatpush2.msra.mxu0 0.0
  %2011 = vmatprep.subr.mxu0 0.0
  %2012 = vmatpush2.msra.mxu0 0.0
  %2013 = vmatprep.subr.mxu0 0.0
  %2014 = vmatpush2.msra.mxu0 0.0
  %2015 = vmatprep.subr.mxu0 0.0
  %2016 = vmatpush2.msra.mxu0 0.0
  %2017 = vmatprep.subr.mxu0 0.0
  %2018 = vmatpush2.msra.mxu0 0.0
  %2019 = vmatprep.subr.mxu0 0.0
  %2020 = vmatpush2.msra.mxu0 0.0
  %2021 = vmatprep.subr.mxu0 0.0
  %2022 = vmatpush2.msra.mxu0 0.0
  %2023 = vmatprep.subr.mxu0 0.0
  %2024 = vmatpush2.msra.mxu0 0.0
  %2025 = vmatprep.subr.mxu0 0.0
  %2026 = vmatpush2.msra.mxu0 0.0
  %2027 = vmatprep.subr.mxu0 0.0
  %2028 = vmatpush2.msra.mxu0 0.0
  %2029 = vmatprep.subr.mxu0 0.0
  %2030 = vmatpush2.msra.mxu0 0.0
  %2031 = vmatprep.subr.mxu0 0.0
  %2032 = vmatpush2.msra.mxu0 0.0
  %2033 = vmatprep.subr.mxu0 0.0
  %2034 = vmatpush2.msra.mxu0 0.0
  %2035 = vmatprep.subr.mxu0 0.0
  %2036 = vmatpush2.msra.mxu0 0.0
  %2037 = vmatprep.subr.mxu0 0.0
  %2038 = vmatpush2.msra.mxu0 0.0
  %2039 = vmatprep.mubr.f32.mxu0 0.0
  %2040 = vmatmul.mubr.f32.gmra.mxu0 %v969
  %v2041 = vpop.f32.mrf.mxu0
  %v2042 = vadd.f32 %v1972, %v2041
  %v2043 = vpop.f32.mrf.mxu0
  %2044 = vdwg.mxu0
  %v2045 = vld [vmem:[%s6] sm:$0xf]
  %v2046 = vld [vmem:[%s9] sm:$0xff]
  %v2047 = vld [vmem:[%s9 + $0x8] sm:$0xf]
  %vm2048 = vcmask 97280
  %v2050 = vsel %vm2048, %v2045, 0
  %vm2052 = vcmask 1043456
  %v2054 = vsel %vm2052, %v2047, 0
  %2056 = vmatprep.subr.mxu0 0.0
  %2057 = vmatpush1.msra.mxu0 0.0
  %2058 = vmatprep.subr.mxu0 0.0
  %2059 = vmatpush1.msra.mxu0 0.0
  %2060 = vmatprep.subr.mxu0 0.0
  %2061 = vmatpush1.msra.mxu0 0.0
  %2062 = vmatprep.subr.mxu0 0.0
  %2063 = vmatpush1.msra.mxu0 0.0
  %2064 = vmatprep.subr.mxu0 0.0
  %2065 = vmatpush1.msra.mxu0 0.0
  %2066 = vmatprep.subr.mxu0 0.0
  %2067 = vmatpush1.msra.mxu0 0.0
  %2068 = vmatprep.subr.mxu0 0.0
  %2069 = vmatpush1.msra.mxu0 0.0
  %2070 = vmatprep.subr.mxu0 0.0
  %2071 = vmatpush1.msra.mxu0 0.0
  %2072 = vmatprep.subr.mxu0 0.0
  %2073 = vmatpush1.msra.mxu0 0.0
  %2074 = vmatprep.subr.mxu0 0.0
  %2075 = vmatpush1.msra.mxu0 0.0
  %2076 = vmatprep.subr.mxu0 0.0
  %2077 = vmatpush1.msra.mxu0 0.0
  %2078 = vmatprep.subr.mxu0 0.0
  %2079 = vmatpush1.msra.mxu0 0.0
  %2080 = vmatprep.subr.mxu0 0.0
  %2081 = vmatpush1.msra.mxu0 0.0
  %2082 = vmatprep.subr.mxu0 0.0
  %2083 = vmatpush1.msra.mxu0 0.0
  %2084 = vmatprep.subr.mxu0 0.0
  %2085 = vmatpush1.msra.mxu0 %v2054
  %2086 = vmatprep.subr.mxu0 0.0
  %2087 = vmatpush1.msra.mxu0 %v2046
  %2088 = vmatprep.subr.mxu0 0.0
  %2089 = vmatpush2.msra.mxu0 0.0
  %2090 = vmatprep.subr.mxu0 0.0
  %2091 = vmatpush2.msra.mxu0 0.0
  %2092 = vmatprep.subr.mxu0 0.0
  %2093 = vmatpush2.msra.mxu0 0.0
  %2094 = vmatprep.subr.mxu0 0.0
  %2095 = vmatpush2.msra.mxu0 0.0
  %2096 = vmatprep.subr.mxu0 0.0
  %2097 = vmatpush2.msra.mxu0 0.0
  %2098 = vmatprep.subr.mxu0 0.0
  %2099 = vmatpush2.msra.mxu0 0.0
  %2100 = vmatprep.subr.mxu0 0.0
  %2101 = vmatpush2.msra.mxu0 0.0
  %2102 = vmatprep.subr.mxu0 0.0
  %2103 = vmatpush2.msra.mxu0 0.0
  %2104 = vmatprep.subr.mxu0 0.0
  %2105 = vmatpush2.msra.mxu0 0.0
  %2106 = vmatprep.subr.mxu0 0.0
  %2107 = vmatpush2.msra.mxu0 0.0
  %2108 = vmatprep.subr.mxu0 0.0
  %2109 = vmatpush2.msra.mxu0 0.0
  %2110 = vmatprep.subr.mxu0 0.0
  %2111 = vmatpush2.msra.mxu0 0.0
  %2112 = vmatprep.subr.mxu0 0.0
  %2113 = vmatpush2.msra.mxu0 0.0
  %2114 = vmatprep.subr.mxu0 0.0
  %2115 = vmatpush2.msra.mxu0 0.0
  %2116 = vmatprep.subr.mxu0 0.0
  %2117 = vmatpush2.msra.mxu0 0.0
  %2118 = vmatprep.subr.mxu0 0.0
  %2119 = vmatpush2.msra.mxu0 0.0
  %2120 = vmatprep.mubr.f32.mxu0 0.0
  %2121 = vmatmul.mubr.f32.gmra.mxu0 %v2050
  %v2122 = vpop.f32.mrf.mxu0
  %v2123 = vadd.f32 0.0, %v2122
  %v2124 = vpop.f32.mrf.mxu0
  %2125 = vdwg.mxu0
  %v2126 = vadd.f32 %v2042, %v2123
  %v2127 = vld [vmem:[%s10] sm:$0x1]
  %v2129 = vlaneseq
  %v2130 = vshrl.u32 %v2129, 7
  %v2131 = vsub.s32 0, %v2130
  %v2132 = vrot.slane %v2127, %v2131
  %v2134 = vadd.f32 %v2126, %v2132
  %v2135 = vmax.f32 %v2134, 0.0
  %v2136 = vld [vmem:[%s11] sm:$0x1]
  %v2138 = vlaneseq
  %v2139 = vshrl.u32 %v2138, 7
  %v2140 = vsub.s32 0, %v2139
  %v2141 = vrot.slane %v2136, %v2140
  %v2143 = vmul.f32 %v2135, %v2141
  %v2144 = vld [vmem:[%s12] sm:$0x1]
  %v2146 = vlaneseq
  %v2147 = vshrl.u32 %v2146, 7
  %v2148 = vsub.s32 0, %v2147
  %v2149 = vrot.slane %v2144, %v2148
  %v2151 = vadd.f32 %v2143, %v2149
  %v2152 = vld [vmem:[%s13] sm:$0xff]
  %v2153 = vld [vmem:[%s13 + $0x8] sm:$0xff]
  %v2154 = vld [vmem:[%s13 + $0x10] sm:$0xff]
  %v2155 = vld [vmem:[%s13 + $0x18] sm:$0xff]
  %v2156 = vld [vmem:[%s13 + $0x20] sm:$0xff]
  %v2157 = vld [vmem:[%s13 + $0x28] sm:$0xff]
  %v2158 = vld [vmem:[%s13 + $0x30] sm:$0xff]
  %v2159 = vld [vmem:[%s13 + $0x38] sm:$0xff]
  %v2160 = vld [vmem:[%s14] sm:$0x1]
  %v2162 = vlaneseq
  %v2163 = vshrl.u32 %v2162, 7
  %v2164 = vsub.s32 0, %v2163
  %v2165 = vrot.slane %v2160, %v2164
  %v2168 = vsel %vm470, %v2151, 0
  %2170 = vmatprep.subr.mxu0 0.0
  %2171 = vmatpush1.msra.mxu0 0.0
  %2172 = vmatprep.subr.mxu0 0.0
  %2173 = vmatpush1.msra.mxu0 0.0
  %2174 = vmatprep.subr.mxu0 0.0
  %2175 = vmatpush1.msra.mxu0 0.0
  %2176 = vmatprep.subr.mxu0 0.0
  %2177 = vmatpush1.msra.mxu0 0.0
  %2178 = vmatprep.subr.mxu0 0.0
  %2179 = vmatpush1.msra.mxu0 0.0
  %2180 = vmatprep.subr.mxu0 0.0
  %2181 = vmatpush1.msra.mxu0 0.0
  %2182 = vmatprep.subr.mxu0 0.0
  %2183 = vmatpush1.msra.mxu0 0.0
  %2184 = vmatprep.subr.mxu0 0.0
  %2185 = vmatpush1.msra.mxu0 0.0
  %2186 = vmatprep.subr.mxu0 0.0
  %2187 = vmatpush1.msra.mxu0 %v2159
  %2188 = vmatprep.subr.mxu0 0.0
  %2189 = vmatpush1.msra.mxu0 %v2158
  %2190 = vmatprep.subr.mxu0 0.0
  %2191 = vmatpush1.msra.mxu0 %v2157
  %2192 = vmatprep.subr.mxu0 0.0
  %2193 = vmatpush1.msra.mxu0 %v2156
  %2194 = vmatprep.subr.mxu0 0.0
  %2195 = vmatpush1.msra.mxu0 %v2155
  %2196 = vmatprep.subr.mxu0 0.0
  %2197 = vmatpush1.msra.mxu0 %v2154
  %2198 = vmatprep.subr.mxu0 0.0
  %2199 = vmatpush1.msra.mxu0 %v2153
  %2200 = vmatprep.subr.mxu0 0.0
  %2201 = vmatpush1.msra.mxu0 %v2152
  %2202 = vmatprep.subr.mxu0 0.0
  %2203 = vmatpush2.msra.mxu0 0.0
  %2204 = vmatprep.subr.mxu0 0.0
  %2205 = vmatpush2.msra.mxu0 0.0
  %2206 = vmatprep.subr.mxu0 0.0
  %2207 = vmatpush2.msra.mxu0 0.0
  %2208 = vmatprep.subr.mxu0 0.0
  %2209 = vmatpush2.msra.mxu0 0.0
  %2210 = vmatprep.subr.mxu0 0.0
  %2211 = vmatpush2.msra.mxu0 0.0
  %2212 = vmatprep.subr.mxu0 0.0
  %2213 = vmatpush2.msra.mxu0 0.0
  %2214 = vmatprep.subr.mxu0 0.0
  %2215 = vmatpush2.msra.mxu0 0.0
  %2216 = vmatprep.subr.mxu0 0.0
  %2217 = vmatpush2.msra.mxu0 0.0
  %2218 = vmatprep.subr.mxu0 0.0
  %2219 = vmatpush2.msra.mxu0 0.0
  %2220 = vmatprep.subr.mxu0 0.0
  %2221 = vmatpush2.msra.mxu0 0.0
  %2222 = vmatprep.subr.mxu0 0.0
  %2223 = vmatpush2.msra.mxu0 0.0
  %2224 = vmatprep.subr.mxu0 0.0
  %2225 = vmatpush2.msra.mxu0 0.0
  %2226 = vmatprep.subr.mxu0 0.0
  %2227 = vmatpush2.msra.mxu0 0.0
  %2228 = vmatprep.subr.mxu0 0.0
  %2229 = vmatpush2.msra.mxu0 0.0
  %2230 = vmatprep.subr.mxu0 0.0
  %2231 = vmatpush2.msra.mxu0 0.0
  %2232 = vmatprep.subr.mxu0 0.0
  %2233 = vmatpush2.msra.mxu0 0.0
  %2234 = vmatprep.mubr.f32.mxu0 0.0
  %2235 = vmatmul.mubr.f32.gmra.mxu0 %v2168
  %v2236 = vpop.f32.mrf.mxu0
  %v2237 = vadd.f32 %v2165, %v2236
  %v2238 = vpop.f32.mrf.mxu0
  %2239 = vdwg.mxu0
  %v2240 = vmax.f32 %v2237, 0.0
  %v2241 = vld [vmem:[%s15] sm:$0x1]
  %v2243 = vlaneseq
  %v2244 = vshrl.u32 %v2243, 7
  %v2245 = vsub.s32 0, %v2244
  %v2246 = vrot.slane %v2241, %v2245
  %v2248 = vmul.f32 %v2240, %v2246
  %v2249 = vld [vmem:[%s16] sm:$0x1]
  %v2251 = vlaneseq
  %v2252 = vshrl.u32 %v2251, 7
  %v2253 = vsub.s32 0, %v2252
  %v2254 = vrot.slane %v2249, %v2253
  %v2256 = vadd.f32 %v2248, %v2254
  %v2257 = vld [vmem:[%s17] sm:$0xff]
  %v2258 = vld [vmem:[%s17 + $0x8] sm:$0xff]
  %v2259 = vld [vmem:[%s17 + $0x10] sm:$0xff]
  %v2260 = vld [vmem:[%s17 + $0x18] sm:$0xff]
  %v2261 = vld [vmem:[%s18] sm:$0x1]
  %v2263 = vlaneseq
  %v2264 = vshrl.u32 %v2263, 7
  %v2265 = vsub.s32 0, %v2264
  %v2266 = vrot.slane %v2261, %v2265
  %vm2268 = vcmask 261120
  %v2270 = vsel %vm2268, %v2256, 0
  %2272 = vmatprep.subr.mxu0 0.0
  %2273 = vmatpush1.msra.mxu0 0.0
  %2274 = vmatprep.subr.mxu0 0.0
  %2275 = vmatpush1.msra.mxu0 0.0
  %2276 = vmatprep.subr.mxu0 0.0
  %2277 = vmatpush1.msra.mxu0 0.0
  %2278 = vmatprep.subr.mxu0 0.0
  %2279 = vmatpush1.msra.mxu0 0.0
  %2280 = vmatprep.subr.mxu0 0.0
  %2281 = vmatpush1.msra.mxu0 0.0
  %2282 = vmatprep.subr.mxu0 0.0
  %2283 = vmatpush1.msra.mxu0 0.0
  %2284 = vmatprep.subr.mxu0 0.0
  %2285 = vmatpush1.msra.mxu0 0.0
  %2286 = vmatprep.subr.mxu0 0.0
  %2287 = vmatpush1.msra.mxu0 0.0
  %2288 = vmatprep.subr.mxu0 0.0
  %2289 = vmatpush1.msra.mxu0 0.0
  %2290 = vmatprep.subr.mxu0 0.0
  %2291 = vmatpush1.msra.mxu0 0.0
  %2292 = vmatprep.subr.mxu0 0.0
  %2293 = vmatpush1.msra.mxu0 0.0
  %2294 = vmatprep.subr.mxu0 0.0
  %2295 = vmatpush1.msra.mxu0 0.0
  %2296 = vmatprep.subr.mxu0 0.0
  %2297 = vmatpush1.msra.mxu0 %v2260
  %2298 = vmatprep.subr.mxu0 0.0
  %2299 = vmatpush1.msra.mxu0 %v2259
  %2300 = vmatprep.subr.mxu0 0.0
  %2301 = vmatpush1.msra.mxu0 %v2258
  %2302 = vmatprep.subr.mxu0 0.0
  %2303 = vmatpush1.msra.mxu0 %v2257
  %2304 = vmatprep.subr.mxu0 0.0
  %2305 = vmatpush2.msra.mxu0 0.0
  %2306 = vmatprep.subr.mxu0 0.0
  %2307 = vmatpush2.msra.mxu0 0.0
  %2308 = vmatprep.subr.mxu0 0.0
  %2309 = vmatpush2.msra.mxu0 0.0
  %2310 = vmatprep.subr.mxu0 0.0
  %2311 = vmatpush2.msra.mxu0 0.0
  %2312 = vmatprep.subr.mxu0 0.0
  %2313 = vmatpush2.msra.mxu0 0.0
  %2314 = vmatprep.subr.mxu0 0.0
  %2315 = vmatpush2.msra.mxu0 0.0
  %2316 = vmatprep.subr.mxu0 0.0
  %2317 = vmatpush2.msra.mxu0 0.0
  %2318 = vmatprep.subr.mxu0 0.0
  %2319 = vmatpush2.msra.mxu0 0.0
  %2320 = vmatprep.subr.mxu0 0.0
  %2321 = vmatpush2.msra.mxu0 0.0
  %2322 = vmatprep.subr.mxu0 0.0
  %2323 = vmatpush2.msra.mxu0 0.0
  %2324 = vmatprep.subr.mxu0 0.0
  %2325 = vmatpush2.msra.mxu0 0.0
  %2326 = vmatprep.subr.mxu0 0.0
  %2327 = vmatpush2.msra.mxu0 0.0
  %2328 = vmatprep.subr.mxu0 0.0
  %2329 = vmatpush2.msra.mxu0 0.0
  %2330 = vmatprep.subr.mxu0 0.0
  %2331 = vmatpush2.msra.mxu0 0.0
  %2332 = vmatprep.subr.mxu0 0.0
  %2333 = vmatpush2.msra.mxu0 0.0
  %2334 = vmatprep.subr.mxu0 0.0
  %2335 = vmatpush2.msra.mxu0 0.0
  %2336 = vmatprep.mubr.f32.mxu0 0.0
  %2337 = vmatmul.mubr.f32.gmra.mxu0 %v2270
  %v2338 = vpop.f32.mrf.mxu0
  %v2339 = vadd.f32 %v2266, %v2338
  %v2340 = vpop.f32.mrf.mxu0
  %2341 = vdwg.mxu0
  %vm2342 = vcmask 11264
  %v2343 = vsel %vm2342, %v2339, -inf
  %2344 = vmax.xlane.f32.xlu0 %v2343
  %v2345 = vpop.xlane.xlu0 %2344
  %v2346 = vsub.f32 %v2339, %v2345
  %v2347 = vmul.f32 %v2346, 1.442695
  %v2348 = vpow.pop %v2347
  %v2349 = vsel %vm2342, %v2348, 0.0
  %2350 = vadd.xlane.f32.xlu0 %v2349
  %v2351 = vpop.xlane.xlu0 %2350
  %v2352 = vlog2.pop %v2351
  %v2353 = vmul.f32 %v2352, 0.6931472
  %v2354 = vadd.f32 %v2345, %v2353
  %v2355 = vsub.f32 %v2339, %v2354
  %2356 = vst.msk [vmem:[%s19] sm:$0xf] %vm2342, %v2355
  // Predicated region
  $region78: #{network_forward.5} parent=0 // pred_check
    _
  $region79: #{network_forward.5} parent=0 // pred_check_branch
    %2358 = sbr.rel (0) target = $region81
  $region80: #{network_forward.5} parent=0 // pred_region
    _
  $region81: #{network_forward.5} parent=0 // pred_fallthru
    _
  // Predicated region
  $region82: #{network_forward.5} parent=0 // pred_check
    _
  $region83: #{network_forward.5} parent=0 // pred_check_branch
    %2360 = sbr.rel (0) target = $region85
  $region84: #{network_forward.5} parent=0 // pred_region
    _
  $region85: #{network_forward.5} parent=0 // pred_fallthru
    _

</llo_original>
